<compile_context>
chip_gen: v7x
topology: tpu7x:2x2x1
jax: 0.10.0
libtpu: 0.0.40
codegen_flags: <defaults>
</compile_context>

<pallas_src>
import jax
import jax.numpy as jnp
from jax.experimental import pallas as pl
from jax.experimental.pallas import tpu as pltpu

_BN_EPS = 1e-5
_LANE = 128


def _round_up(x, m):
    return (x + m - 1) // m * m


# --------------------------------------------------------------------------- kernel
def _cheb_accumulate(L, L2, t0_f32, w_ref, n_slices, c_blk):
    """Chebyshev recurrence with per-k accumulation of the weight contraction.

    L, L2:   (V, V) bf16 Laplacian and 2*Laplacian (kept resident in VMEM).
    t0_f32:  (V, n_slices * c_blk) f32 — T_0(L) x with batch folded along lanes.
    w_ref:   (K, c_blk, Fout) bf16 Chebyshev weights.

    Returns a list of n_slices f32 (V, Fout) accumulators, i.e.
    sum_k T_k(L) x_b @ W_k for each batch slice b, without materializing a
    (V, K*c_blk) concatenated feature tensor.
    """
    K = w_ref.shape[0]
    t_cur_bf = t0_f32.astype(jnp.bfloat16)
    accs = [
        jnp.dot(t_cur_bf[:, s * c_blk:(s + 1) * c_blk], w_ref[0],
                preferred_element_type=jnp.float32)
        for s in range(n_slices)
    ]
    t_prev_f32 = None
    t_cur_f32 = t0_f32
    for k in range(1, K):
        if k == 1:
            t_new_f32 = jnp.dot(L, t_cur_bf, preferred_element_type=jnp.float32)
        else:
            # T_k = 2 L T_{k-1} - T_{k-2}; 2L is precomputed once per call.
            t_new_f32 = (jnp.dot(L2, t_cur_bf, preferred_element_type=jnp.float32)
                         - t_prev_f32)
        t_new_bf = t_new_f32.astype(jnp.bfloat16)
        for s in range(n_slices):
            accs[s] = accs[s] + jnp.dot(
                t_new_bf[:, s * c_blk:(s + 1) * c_blk], w_ref[k],
                preferred_element_type=jnp.float32)
        t_prev_f32 = t_cur_f32
        t_cur_f32 = t_new_f32
        t_cur_bf = t_new_bf
    return accs


def _fused_kernel(u_ref, lap_ref, x_ref, w1_ref, sh1_ref, w2_ref, sh2_ref, o_ref):
    """Fused: unpool -> Cheb(Cin->mid, BN-scale folded in W1) + shift + ReLU
              -> Cheb(mid->out_pad) + bias.

    u_ref:   (V, Vc)           bf16 0/1 unpool matrix (row v selects coarse vertex v//4)
    lap_ref: (V, V)            bf16 Laplacian
    x_ref:   (Vc, B*Cin)       bf16 coarse features, batch folded along lanes
    w1_ref:  (K, Cin, mid)     bf16, BN(eval) scale pre-folded into the columns
    sh1_ref: (1, mid)          f32 folded BN shift (+ conv1 bias)
    w2_ref:  (K, mid, out_pad) bf16 (zero-padded to a lane-dense width)
    sh2_ref: (1, out_pad)      f32 conv2 bias (zero-padded)
    o_ref:   (B, V, out_pad)   f32
    """
    B = o_ref.shape[0]
    Cin = w1_ref.shape[1]
    mid = w1_ref.shape[2]

    L = lap_ref[...]
    L2 = L + L                                   # 2L, formed once per kernel call

    # Unpool fused into the kernel as a 0/1 matmul on the MXU.
    t0 = jnp.dot(u_ref[...], x_ref[...],
                 preferred_element_type=jnp.float32)          # (V, B*Cin) f32

    # --- ChebConv(Cin -> mid) + fused BN(eval)+ReLU epilogue (scale folded in W1) ---
    acc1 = _cheb_accumulate(L, L2, t0, w1_ref, B, Cin)
    # TODO(synk): BatchNorm is folded in eval mode (running stats); train-mode
    # batch statistics are not computed inside the kernel.
    h = [jnp.maximum(a + sh1_ref[...], 0.0) for a in acc1]    # (V, mid) f32 each

    # --- ChebConv(mid -> out_pad); intermediate stays in VMEM, batch folded ------
    h2 = jnp.concatenate(h, axis=-1) if B > 1 else h[0]       # (V, B*mid) f32
    acc2 = _cheb_accumulate(L, L2, h2, w2_ref, B, mid)
    for b in range(B):
        o_ref[b] = (acc2[b] + sh2_ref[...]).astype(o_ref.dtype)   # lane-dense store


# --------------------------------------------------------------------------- wrapper
def spherical_cheb_bn_pool_cheb(lap, x, w1, scale1, shift1, w2, bias2):
    """SphericalChebBNPoolCheb.forward.  x: [B, Vc, Cin] -> [B, 4*Vc, out]."""
    B, Vc, Cin = x.shape
    V = lap.shape[0]
    assert V == 4 * Vc, (V, Vc)
    K, _, mid = w1.shape
    out = w2.shape[2]
    out_pad = _round_up(out, _LANE)

    # Fold batch along lanes so the L-recurrence is one (V,V)@(V,B*Cin) matmul.
    x2d = jnp.transpose(x, (1, 0, 2)).reshape(Vc, B * Cin).astype(jnp.bfloat16)
    # Nearest (x4) unpooling as a 0/1 matrix applied on the MXU inside the kernel.
    u = (jnp.arange(V)[:, None] // 4 == jnp.arange(Vc)[None, :]).astype(jnp.bfloat16)

    # Fold the eval-mode BN scale into the conv-1 weights (one-time, wrapper side);
    # the kernel epilogue is then just add-shift + ReLU.
    w1b = (w1 * scale1[None, None, :]).astype(jnp.bfloat16)
    w2b = jnp.pad(w2, ((0, 0), (0, 0), (0, out_pad - out))).astype(jnp.bfloat16)
    sh1 = shift1.reshape(1, mid).astype(jnp.float32)
    sh2 = jnp.pad(bias2, (0, out_pad - out)).reshape(1, out_pad).astype(jnp.float32)

    vmem_spec = pl.BlockSpec(memory_space=pltpu.MemorySpace.VMEM)
    y = pl.pallas_call(
        _fused_kernel,
        out_shape=jax.ShapeDtypeStruct((B, V, out_pad), jnp.float32),
        in_specs=[vmem_spec] * 7,
        out_specs=vmem_spec,
        compiler_params=pltpu.CompilerParams(vmem_limit_bytes=32 * 1024 * 1024),
    )(u, lap.astype(jnp.bfloat16), x2d, w1b, sh1, w2b, sh2)
    return y[..., :out]


# --------------------------------------------------------------------- parameter init
def init_params(key, K, in_channels, mid_channels, out_channels):
    k1, k2, k3, k4, k5, k6 = jax.random.split(key, 6)
    std1 = (2.0 / (in_channels * K)) ** 0.5
    w1 = std1 * jax.random.normal(k1, (K, in_channels, mid_channels), jnp.float32)
    b1 = 0.01 * jax.random.normal(k2, (mid_channels,), jnp.float32)
    gamma = 1.0 + 0.1 * jax.random.normal(k3, (mid_channels,), jnp.float32)
    beta = 0.1 * jax.random.normal(k4, (mid_channels,), jnp.float32)
    running_mean = jnp.zeros((mid_channels,), jnp.float32)
    running_var = jnp.ones((mid_channels,), jnp.float32)
    scale1 = gamma / jnp.sqrt(running_var + _BN_EPS)
    shift1 = beta - running_mean * scale1 + b1 * scale1      # BN(conv(x) + bias)
    std2 = (2.0 / (mid_channels * K)) ** 0.5
    w2 = std2 * jax.random.normal(k5, (K, mid_channels, out_channels), jnp.float32)
    b2 = 0.01 * jax.random.normal(k6, (out_channels,), jnp.float32)
    return dict(w1=w1, scale1=scale1, shift1=shift1, w2=w2, bias2=b2)


# --------------------------------------------------------------------- pure-JAX reference
def _cheb_conv_ref(lap, x, w):
    K = w.shape[0]
    t0 = x
    y = jnp.einsum("bvc,co->bvo", t0, w[0])
    if K > 1:
        t1 = jnp.einsum("vw,bwc->bvc", lap, t0)
        y = y + jnp.einsum("bvc,co->bvo", t1, w[1])
        for k in range(2, K):
            t2 = 2.0 * jnp.einsum("vw,bwc->bvc", lap, t1) - t0
            y = y + jnp.einsum("bvc,co->bvo", t2, w[k])
            t0, t1 = t1, t2
    return y


def reference_forward(params, lap, x):
    xu = jnp.repeat(x, 4, axis=1)
    h = _cheb_conv_ref(lap, xu, params["w1"])
    h = jnp.maximum(h * params["scale1"] + params["shift1"], 0.0)
    return _cheb_conv_ref(lap, h, params["w2"]) + params["bias2"]


# ------------------------------------------------------------------------------- main
if __name__ == "__main__":
    key = jax.random.PRNGKey(0)
    B, Vc = 2, 32
    V = 4 * Vc
    K = 3
    in_channels, mid_channels, out_channels = 256, 128, 8

    k_lap, k_x, k_par = jax.random.split(key, 3)
    a = jax.random.normal(k_lap, (V, V), dtype=jnp.float32)
    lap = 0.5 * (a + a.T) / (2.0 * jnp.sqrt(jnp.float32(V)))   # symmetric, |eig| < 1
    x = jax.random.normal(k_x, (B, Vc, in_channels), dtype=jnp.float32)
    params = init_params(k_par, K, in_channels, mid_channels, out_channels)

    fwd = jax.jit(lambda p, l, xx: spherical_cheb_bn_pool_cheb(
        l, xx, p["w1"], p["scale1"], p["shift1"], p["w2"], p["bias2"]))
    out = jax.block_until_ready(fwd(params, lap, x))

    assert out.shape == (B, V, out_channels), out.shape
    assert out.dtype == jnp.float32
    assert bool(jnp.all(jnp.isfinite(out)))

    ref = reference_forward(params, lap, x)
    err = jnp.max(jnp.abs(out - ref))
    assert bool(err < 0.2), f"max abs error vs reference: {err}"
    print("KERNEL_OK")
</pallas_src>

<mosaic_0001>
module attributes {stable_mosaic.version = 11 : i64} {
  func.func @_fused_kernel(%arg0: memref<128x32xbf16, #tpu.memory_space<vmem>>, %arg1: memref<128x128xbf16, #tpu.memory_space<vmem>>, %arg2: memref<32x512xbf16, #tpu.memory_space<vmem>>, %arg3: memref<3x256x128xbf16, #tpu.memory_space<vmem>>, %arg4: memref<1x128xf32, #tpu.memory_space<vmem>>, %arg5: memref<3x128x128xbf16, #tpu.memory_space<vmem>>, %arg6: memref<1x128xf32, #tpu.memory_space<vmem>>, %arg7: memref<2x128x128xf32, #tpu.memory_space<vmem>>) attributes {dimension_semantics = [], scalar_prefetch = 0 : i64, scratch_operands = 0 : i64, tpu.core_type = #tpu.core_type<tc>} {
    %c0 = arith.constant 0 : index
    %c0_0 = arith.constant 0 : index
    %0 = vector.load %arg1[%c0, %c0_0] : memref<128x128xbf16, #tpu.memory_space<vmem>>, vector<128x128xbf16>
    %1 = arith.addf %0, %0 : vector<128x128xbf16>
    %c0_1 = arith.constant 0 : index
    %c0_2 = arith.constant 0 : index
    %2 = vector.load %arg0[%c0_1, %c0_2] : memref<128x32xbf16, #tpu.memory_space<vmem>>, vector<128x32xbf16>
    %c0_3 = arith.constant 0 : index
    %c0_4 = arith.constant 0 : index
    %3 = vector.load %arg2[%c0_3, %c0_4] : memref<32x512xbf16, #tpu.memory_space<vmem>>, vector<32x512xbf16>
    %cst = arith.constant dense<0.000000e+00> : vector<128x512xf32>
    %4 = tpu.matmul %2, %3, %cst {dimension_numbers = #tpu.dot_dimension_numbers<[1], [0], [0], [1], [0, 0, 1, 1], [], []>} : vector<128x32xbf16>, vector<32x512xbf16>, vector<128x512xf32> -> vector<128x512xf32>
    %5 = arith.truncf %4 : vector<128x512xf32> to vector<128x512xbf16>
    %6 = vector.extract_strided_slice %5 {offsets = [0, 0], sizes = [128, 256], strides = [1, 1]} : vector<128x512xbf16> to vector<128x256xbf16>
    %c0_5 = arith.constant 0 : index
    %c0_6 = arith.constant 0 : index
    %c0_7 = arith.constant 0 : index
    %7 = vector.load %arg3[%c0_5, %c0_6, %c0_7] : memref<3x256x128xbf16, #tpu.memory_space<vmem>>, vector<1x256x128xbf16>
    %8 = vector.shape_cast %7 : vector<1x256x128xbf16> to vector<256x128xbf16>
    %cst_8 = arith.constant dense<0.000000e+00> : vector<128x128xf32>
    %9 = tpu.matmul %6, %8, %cst_8 {dimension_numbers = #tpu.dot_dimension_numbers<[1], [0], [0], [1], [0, 0, 1, 1], [], []>} : vector<128x256xbf16>, vector<256x128xbf16>, vector<128x128xf32> -> vector<128x128xf32>
    %10 = vector.extract_strided_slice %5 {offsets = [0, 256], sizes = [128, 256], strides = [1, 1]} : vector<128x512xbf16> to vector<128x256xbf16>
    %c0_9 = arith.constant 0 : index
    %c0_10 = arith.constant 0 : index
    %c0_11 = arith.constant 0 : index
    %11 = vector.load %arg3[%c0_9, %c0_10, %c0_11] : memref<3x256x128xbf16, #tpu.memory_space<vmem>>, vector<1x256x128xbf16>
    %12 = vector.shape_cast %11 : vector<1x256x128xbf16> to vector<256x128xbf16>
    %cst_12 = arith.constant dense<0.000000e+00> : vector<128x128xf32>
    %13 = tpu.matmul %10, %12, %cst_12 {dimension_numbers = #tpu.dot_dimension_numbers<[1], [0], [0], [1], [0, 0, 1, 1], [], []>} : vector<128x256xbf16>, vector<256x128xbf16>, vector<128x128xf32> -> vector<128x128xf32>
    %cst_13 = arith.constant dense<0.000000e+00> : vector<128x512xf32>
    %14 = tpu.matmul %0, %5, %cst_13 {dimension_numbers = #tpu.dot_dimension_numbers<[1], [0], [0], [1], [0, 0, 1, 1], [], []>} : vector<128x128xbf16>, vector<128x512xbf16>, vector<128x512xf32> -> vector<128x512xf32>
    %15 = arith.truncf %14 : vector<128x512xf32> to vector<128x512xbf16>
    %16 = vector.extract_strided_slice %15 {offsets = [0, 0], sizes = [128, 256], strides = [1, 1]} : vector<128x512xbf16> to vector<128x256xbf16>
    %c1 = arith.constant 1 : index
    %c0_14 = arith.constant 0 : index
    %c0_15 = arith.constant 0 : index
    %17 = vector.load %arg3[%c1, %c0_14, %c0_15] : memref<3x256x128xbf16, #tpu.memory_space<vmem>>, vector<1x256x128xbf16>
    %18 = vector.shape_cast %17 : vector<1x256x128xbf16> to vector<256x128xbf16>
    %cst_16 = arith.constant dense<0.000000e+00> : vector<128x128xf32>
    %19 = tpu.matmul %16, %18, %cst_16 {dimension_numbers = #tpu.dot_dimension_numbers<[1], [0], [0], [1], [0, 0, 1, 1], [], []>} : vector<128x256xbf16>, vector<256x128xbf16>, vector<128x128xf32> -> vector<128x128xf32>
    %20 = arith.addf %9, %19 : vector<128x128xf32>
    %21 = vector.extract_strided_slice %15 {offsets = [0, 256], sizes = [128, 256], strides = [1, 1]} : vector<128x512xbf16> to vector<128x256xbf16>
    %c1_17 = arith.constant 1 : index
    %c0_18 = arith.constant 0 : index
    %c0_19 = arith.constant 0 : index
    %22 = vector.load %arg3[%c1_17, %c0_18, %c0_19] : memref<3x256x128xbf16, #tpu.memory_space<vmem>>, vector<1x256x128xbf16>
    %23 = vector.shape_cast %22 : vector<1x256x128xbf16> to vector<256x128xbf16>
    %cst_20 = arith.constant dense<0.000000e+00> : vector<128x128xf32>
    %24 = tpu.matmul %21, %23, %cst_20 {dimension_numbers = #tpu.dot_dimension_numbers<[1], [0], [0], [1], [0, 0, 1, 1], [], []>} : vector<128x256xbf16>, vector<256x128xbf16>, vector<128x128xf32> -> vector<128x128xf32>
    %25 = arith.addf %13, %24 : vector<128x128xf32>
    %cst_21 = arith.constant dense<0.000000e+00> : vector<128x512xf32>
    %26 = tpu.matmul %1, %15, %cst_21 {dimension_numbers = #tpu.dot_dimension_numbers<[1], [0], [0], [1], [0, 0, 1, 1], [], []>} : vector<128x128xbf16>, vector<128x512xbf16>, vector<128x512xf32> -> vector<128x512xf32>
    %27 = arith.subf %26, %4 : vector<128x512xf32>
    %28 = arith.truncf %27 : vector<128x512xf32> to vector<128x512xbf16>
    %29 = vector.extract_strided_slice %28 {offsets = [0, 0], sizes = [128, 256], strides = [1, 1]} : vector<128x512xbf16> to vector<128x256xbf16>
    %c2 = arith.constant 2 : index
    %c0_22 = arith.constant 0 : index
    %c0_23 = arith.constant 0 : index
    %30 = vector.load %arg3[%c2, %c0_22, %c0_23] : memref<3x256x128xbf16, #tpu.memory_space<vmem>>, vector<1x256x128xbf16>
    %31 = vector.shape_cast %30 : vector<1x256x128xbf16> to vector<256x128xbf16>
    %cst_24 = arith.constant dense<0.000000e+00> : vector<128x128xf32>
    %32 = tpu.matmul %29, %31, %cst_24 {dimension_numbers = #tpu.dot_dimension_numbers<[1], [0], [0], [1], [0, 0, 1, 1], [], []>} : vector<128x256xbf16>, vector<256x128xbf16>, vector<128x128xf32> -> vector<128x128xf32>
    %33 = arith.addf %20, %32 : vector<128x128xf32>
    %34 = vector.extract_strided_slice %28 {offsets = [0, 256], sizes = [128, 256], strides = [1, 1]} : vector<128x512xbf16> to vector<128x256xbf16>
    %c2_25 = arith.constant 2 : index
    %c0_26 = arith.constant 0 : index
    %c0_27 = arith.constant 0 : index
    %35 = vector.load %arg3[%c2_25, %c0_26, %c0_27] : memref<3x256x128xbf16, #tpu.memory_space<vmem>>, vector<1x256x128xbf16>
    %36 = vector.shape_cast %35 : vector<1x256x128xbf16> to vector<256x128xbf16>
    %cst_28 = arith.constant dense<0.000000e+00> : vector<128x128xf32>
    %37 = tpu.matmul %34, %36, %cst_28 {dimension_numbers = #tpu.dot_dimension_numbers<[1], [0], [0], [1], [0, 0, 1, 1], [], []>} : vector<128x256xbf16>, vector<256x128xbf16>, vector<128x128xf32> -> vector<128x128xf32>
    %38 = arith.addf %25, %37 : vector<128x128xf32>
    %c0_29 = arith.constant 0 : index
    %c0_30 = arith.constant 0 : index
    %39 = vector.load %arg4[%c0_29, %c0_30] : memref<1x128xf32, #tpu.memory_space<vmem>>, vector<1x128xf32>
    %40 = vector.broadcast %39 : vector<1x128xf32> to vector<128x128xf32>
    %41 = arith.addf %33, %40 : vector<128x128xf32>
    %cst_31 = arith.constant 0.000000e+00 : f32
    %42 = vector.broadcast %cst_31 : f32 to vector<128x128xf32>
    %43 = arith.maximumf %41, %42 : vector<128x128xf32>
    %c0_32 = arith.constant 0 : index
    %c0_33 = arith.constant 0 : index
    %44 = vector.load %arg4[%c0_32, %c0_33] : memref<1x128xf32, #tpu.memory_space<vmem>>, vector<1x128xf32>
    %45 = vector.broadcast %44 : vector<1x128xf32> to vector<128x128xf32>
    %46 = arith.addf %38, %45 : vector<128x128xf32>
    %cst_34 = arith.constant 0.000000e+00 : f32
    %47 = vector.broadcast %cst_34 : f32 to vector<128x128xf32>
    %48 = arith.maximumf %46, %47 : vector<128x128xf32>
    %49 = tpu.concatenate %43, %48 in 1 : vector<128x128xf32>, vector<128x128xf32> -> vector<128x256xf32>
    %50 = arith.truncf %49 : vector<128x256xf32> to vector<128x256xbf16>
    %51 = vector.extract_strided_slice %50 {offsets = [0, 0], sizes = [128, 128], strides = [1, 1]} : vector<128x256xbf16> to vector<128x128xbf16>
    %c0_35 = arith.constant 0 : index
    %c0_36 = arith.constant 0 : index
    %c0_37 = arith.constant 0 : index
    %52 = vector.load %arg5[%c0_35, %c0_36, %c0_37] : memref<3x128x128xbf16, #tpu.memory_space<vmem>>, vector<1x128x128xbf16>
    %53 = vector.shape_cast %52 : vector<1x128x128xbf16> to vector<128x128xbf16>
    %cst_38 = arith.constant dense<0.000000e+00> : vector<128x128xf32>
    %54 = tpu.matmul %51, %53, %cst_38 {dimension_numbers = #tpu.dot_dimension_numbers<[1], [0], [0], [1], [0, 0, 1, 1], [], []>} : vector<128x128xbf16>, vector<128x128xbf16>, vector<128x128xf32> -> vector<128x128xf32>
    %55 = vector.extract_strided_slice %50 {offsets = [0, 128], sizes = [128, 128], strides = [1, 1]} : vector<128x256xbf16> to vector<128x128xbf16>
    %c0_39 = arith.constant 0 : index
    %c0_40 = arith.constant 0 : index
    %c0_41 = arith.constant 0 : index
    %56 = vector.load %arg5[%c0_39, %c0_40, %c0_41] : memref<3x128x128xbf16, #tpu.memory_space<vmem>>, vector<1x128x128xbf16>
    %57 = vector.shape_cast %56 : vector<1x128x128xbf16> to vector<128x128xbf16>
    %cst_42 = arith.constant dense<0.000000e+00> : vector<128x128xf32>
    %58 = tpu.matmul %55, %57, %cst_42 {dimension_numbers = #tpu.dot_dimension_numbers<[1], [0], [0], [1], [0, 0, 1, 1], [], []>} : vector<128x128xbf16>, vector<128x128xbf16>, vector<128x128xf32> -> vector<128x128xf32>
    %cst_43 = arith.constant dense<0.000000e+00> : vector<128x256xf32>
    %59 = tpu.matmul %0, %50, %cst_43 {dimension_numbers = #tpu.dot_dimension_numbers<[1], [0], [0], [1], [0, 0, 1, 1], [], []>} : vector<128x128xbf16>, vector<128x256xbf16>, vector<128x256xf32> -> vector<128x256xf32>
    %60 = arith.truncf %59 : vector<128x256xf32> to vector<128x256xbf16>
    %61 = vector.extract_strided_slice %60 {offsets = [0, 0], sizes = [128, 128], strides = [1, 1]} : vector<128x256xbf16> to vector<128x128xbf16>
    %c1_44 = arith.constant 1 : index
    %c0_45 = arith.constant 0 : index
    %c0_46 = arith.constant 0 : index
    %62 = vector.load %arg5[%c1_44, %c0_45, %c0_46] : memref<3x128x128xbf16, #tpu.memory_space<vmem>>, vector<1x128x128xbf16>
    %63 = vector.shape_cast %62 : vector<1x128x128xbf16> to vector<128x128xbf16>
    %cst_47 = arith.constant dense<0.000000e+00> : vector<128x128xf32>
    %64 = tpu.matmul %61, %63, %cst_47 {dimension_numbers = #tpu.dot_dimension_numbers<[1], [0], [0], [1], [0, 0, 1, 1], [], []>} : vector<128x128xbf16>, vector<128x128xbf16>, vector<128x128xf32> -> vector<128x128xf32>
    %65 = arith.addf %54, %64 : vector<128x128xf32>
    %66 = vector.extract_strided_slice %60 {offsets = [0, 128], sizes = [128, 128], strides = [1, 1]} : vector<128x256xbf16> to vector<128x128xbf16>
    %c1_48 = arith.constant 1 : index
    %c0_49 = arith.constant 0 : index
    %c0_50 = arith.constant 0 : index
    %67 = vector.load %arg5[%c1_48, %c0_49, %c0_50] : memref<3x128x128xbf16, #tpu.memory_space<vmem>>, vector<1x128x128xbf16>
    %68 = vector.shape_cast %67 : vector<1x128x128xbf16> to vector<128x128xbf16>
    %cst_51 = arith.constant dense<0.000000e+00> : vector<128x128xf32>
    %69 = tpu.matmul %66, %68, %cst_51 {dimension_numbers = #tpu.dot_dimension_numbers<[1], [0], [0], [1], [0, 0, 1, 1], [], []>} : vector<128x128xbf16>, vector<128x128xbf16>, vector<128x128xf32> -> vector<128x128xf32>
    %70 = arith.addf %58, %69 : vector<128x128xf32>
    %cst_52 = arith.constant dense<0.000000e+00> : vector<128x256xf32>
    %71 = tpu.matmul %1, %60, %cst_52 {dimension_numbers = #tpu.dot_dimension_numbers<[1], [0], [0], [1], [0, 0, 1, 1], [], []>} : vector<128x128xbf16>, vector<128x256xbf16>, vector<128x256xf32> -> vector<128x256xf32>
    %72 = arith.subf %71, %49 : vector<128x256xf32>
    %73 = arith.truncf %72 : vector<128x256xf32> to vector<128x256xbf16>
    %74 = vector.extract_strided_slice %73 {offsets = [0, 0], sizes = [128, 128], strides = [1, 1]} : vector<128x256xbf16> to vector<128x128xbf16>
    %c2_53 = arith.constant 2 : index
    %c0_54 = arith.constant 0 : index
    %c0_55 = arith.constant 0 : index
    %75 = vector.load %arg5[%c2_53, %c0_54, %c0_55] : memref<3x128x128xbf16, #tpu.memory_space<vmem>>, vector<1x128x128xbf16>
    %76 = vector.shape_cast %75 : vector<1x128x128xbf16> to vector<128x128xbf16>
    %cst_56 = arith.constant dense<0.000000e+00> : vector<128x128xf32>
    %77 = tpu.matmul %74, %76, %cst_56 {dimension_numbers = #tpu.dot_dimension_numbers<[1], [0], [0], [1], [0, 0, 1, 1], [], []>} : vector<128x128xbf16>, vector<128x128xbf16>, vector<128x128xf32> -> vector<128x128xf32>
    %78 = arith.addf %65, %77 : vector<128x128xf32>
    %79 = vector.extract_strided_slice %73 {offsets = [0, 128], sizes = [128, 128], strides = [1, 1]} : vector<128x256xbf16> to vector<128x128xbf16>
    %c2_57 = arith.constant 2 : index
    %c0_58 = arith.constant 0 : index
    %c0_59 = arith.constant 0 : index
    %80 = vector.load %arg5[%c2_57, %c0_58, %c0_59] : memref<3x128x128xbf16, #tpu.memory_space<vmem>>, vector<1x128x128xbf16>
    %81 = vector.shape_cast %80 : vector<1x128x128xbf16> to vector<128x128xbf16>
    %cst_60 = arith.constant dense<0.000000e+00> : vector<128x128xf32>
    %82 = tpu.matmul %79, %81, %cst_60 {dimension_numbers = #tpu.dot_dimension_numbers<[1], [0], [0], [1], [0, 0, 1, 1], [], []>} : vector<128x128xbf16>, vector<128x128xbf16>, vector<128x128xf32> -> vector<128x128xf32>
    %83 = arith.addf %70, %82 : vector<128x128xf32>
    %c0_61 = arith.constant 0 : index
    %c0_62 = arith.constant 0 : index
    %84 = vector.load %arg6[%c0_61, %c0_62] : memref<1x128xf32, #tpu.memory_space<vmem>>, vector<1x128xf32>
    %85 = vector.broadcast %84 : vector<1x128xf32> to vector<128x128xf32>
    %86 = arith.addf %78, %85 : vector<128x128xf32>
    %c0_63 = arith.constant 0 : index
    %c0_64 = arith.constant 0 : index
    %c0_65 = arith.constant 0 : index
    %87 = vector.load %arg7[%c0_63, %c0_64, %c0_65] : memref<2x128x128xf32, #tpu.memory_space<vmem>>, vector<1x128x128xf32>
    %88 = vector.shape_cast %87 : vector<1x128x128xf32> to vector<128x128xf32>
    %89 = vector.shape_cast %86 : vector<128x128xf32> to vector<1x128x128xf32>
    tpu.vector_store %arg7[%c0_63, %c0_64, %c0_65], %89 {strides = array<i32>} : memref<2x128x128xf32, #tpu.memory_space<vmem>>, vector<1x128x128xf32>,
    %c0_66 = arith.constant 0 : index
    %c0_67 = arith.constant 0 : index
    %90 = vector.load %arg6[%c0_66, %c0_67] : memref<1x128xf32, #tpu.memory_space<vmem>>, vector<1x128xf32>
    %91 = vector.broadcast %90 : vector<1x128xf32> to vector<128x128xf32>
    %92 = arith.addf %83, %91 : vector<128x128xf32>
    %c1_68 = arith.constant 1 : index
    %c0_69 = arith.constant 0 : index
    %c0_70 = arith.constant 0 : index
    %93 = vector.load %arg7[%c1_68, %c0_69, %c0_70] : memref<2x128x128xf32, #tpu.memory_space<vmem>>, vector<1x128x128xf32>
    %94 = vector.shape_cast %93 : vector<1x128x128xf32> to vector<128x128xf32>
    %95 = vector.shape_cast %92 : vector<128x128xf32> to vector<1x128x128xf32>
    tpu.vector_store %arg7[%c1_68, %c0_69, %c0_70], %95 {strides = array<i32>} : memref<2x128x128xf32, #tpu.memory_space<vmem>>, vector<1x128x128xf32>,
    return
  }
}

</mosaic_0001>

<llo_original>
// kernel: _lambda_.1
$region0: #{_lambda_.1}
  #allocation0 [shape = 'u32[]', space=smem, size = 0x4, offset = 0x4, fixed_abs, tag = 'smem constant byte address 0x4 - core index']
  #allocation1 [shape = 'u32[144,128]{1,0:T(1,128)}', space=vmem, size = 0x12000, scoped, tag = 'internal scratch']
  %s0 = inlined_call_operand.vmem [shape: bf16[128,32], index: 0, kind: input, shape index: {}]
  %s1 = inlined_call_operand.vmem [shape: bf16[128,128], index: 1, kind: input, shape index: {}]
  %s2 = inlined_call_operand.vmem [shape: bf16[32,512], index: 2, kind: input, shape index: {}]
  %s3 = inlined_call_operand.vmem [shape: bf16[3,256,128], index: 3, kind: input, shape index: {}]
  %s4 = inlined_call_operand.vmem [shape: f32[1,128], index: 4, kind: input, shape index: {}]
  %s5 = inlined_call_operand.vmem [shape: bf16[3,128,128], index: 5, kind: input, shape index: {}]
  %s6 = inlined_call_operand.vmem [shape: f32[1,128], index: 6, kind: input, shape index: {}]
  %s7 = inlined_call_operand.vmem [shape: f32[2,128,128], index: 7, kind: output, shape index: {}]
  %s8 = sld [smem:[#allocation0]]
  $region38: #{_lambda_.1} parent=0
    _
  %s10 = ssub.s32 1, %s8
  %s11 = scalar_select 0, %s10, %s8
  // Predicated region
  $region2: #{_lambda_.1} parent=0 // pred_check
    _
  $region3: #{_lambda_.1} parent=0 // pred_check_branch
    %13 = sbr.rel (0) target = $region5
  $region4: #{_lambda_.1} parent=0 // pred_region
    _
  $region5: #{_lambda_.1} parent=0 // pred_fallthru
    _
  // Predicated region
  $region6: #{_lambda_.1} parent=0 // pred_check
    _
  $region7: #{_lambda_.1} parent=0 // pred_check_branch
    %15 = sbr.rel (0) target = $region9
  $region8: #{_lambda_.1} parent=0 // pred_region
    _
  $region9: #{_lambda_.1} parent=0 // pred_fallthru
    _
  // Predicated region
  $region10: #{_lambda_.1} parent=0 // pred_check
    _
  $region11: #{_lambda_.1} parent=0 // pred_check_branch
    %17 = sbr.rel (0) target = $region13
  $region12: #{_lambda_.1} parent=0 // pred_region
    _
  $region13: #{_lambda_.1} parent=0 // pred_fallthru
    _
  // Predicated region
  $region14: #{_lambda_.1} parent=0 // pred_check
    _
  $region15: #{_lambda_.1} parent=0 // pred_check_branch
    %19 = sbr.rel (0) target = $region17
  $region16: #{_lambda_.1} parent=0 // pred_region
    _
  $region17: #{_lambda_.1} parent=0 // pred_fallthru
    _
  // Predicated region
  $region18: #{_lambda_.1} parent=0 // pred_check
    _
  $region19: #{_lambda_.1} parent=0 // pred_check_branch
    %21 = sbr.rel (0) target = $region21
  $region20: #{_lambda_.1} parent=0 // pred_region
    _
  $region21: #{_lambda_.1} parent=0 // pred_fallthru
    _
  // Predicated region
  $region22: #{_lambda_.1} parent=0 // pred_check
    _
  $region23: #{_lambda_.1} parent=0 // pred_check_branch
    %23 = sbr.rel (0) target = $region25
  $region24: #{_lambda_.1} parent=0 // pred_region
    _
  $region25: #{_lambda_.1} parent=0 // pred_fallthru
    _
  // Predicated region
  $region26: #{_lambda_.1} parent=0 // pred_check
    _
  $region27: #{_lambda_.1} parent=0 // pred_check_branch
    %25 = sbr.rel (0) target = $region29
  $region28: #{_lambda_.1} parent=0 // pred_region
    _
  $region29: #{_lambda_.1} parent=0 // pred_fallthru
    _
  %v27 = vld [vmem:[%s1] sm:$0xf]
  %v28 = vld [vmem:[%s1 + $0x4] sm:$0xf]
  %v29 = vld [vmem:[%s1 + $0x8] sm:$0xf]
  %v30 = vld [vmem:[%s1 + $0xc] sm:$0xf]
  %v31 = vld [vmem:[%s1 + $0x10] sm:$0xf]
  %v32 = vld [vmem:[%s1 + $0x14] sm:$0xf]
  %v33 = vld [vmem:[%s1 + $0x18] sm:$0xf]
  %v34 = vld [vmem:[%s1 + $0x1c] sm:$0xf]
  %v35 = vld [vmem:[%s1 + $0x20] sm:$0xf]
  %v36 = vld [vmem:[%s1 + $0x24] sm:$0xf]
  %v37 = vld [vmem:[%s1 + $0x28] sm:$0xf]
  %v38 = vld [vmem:[%s1 + $0x2c] sm:$0xf]
  %v39 = vld [vmem:[%s1 + $0x30] sm:$0xf]
  %v40 = vld [vmem:[%s1 + $0x34] sm:$0xf]
  %v41 = vld [vmem:[%s1 + $0x38] sm:$0xf]
  %v42 = vld [vmem:[%s1 + $0x3c] sm:$0xf]
  %v43 = vadd.bf16 %v27, %v27
  %v44 = vadd.bf16 %v28, %v28
  %v45 = vadd.bf16 %v29, %v29
  %v46 = vadd.bf16 %v30, %v30
  %v47 = vadd.bf16 %v31, %v31
  %v48 = vadd.bf16 %v32, %v32
  %v49 = vadd.bf16 %v33, %v33
  %v50 = vadd.bf16 %v34, %v34
  %v51 = vadd.bf16 %v35, %v35
  %v52 = vadd.bf16 %v36, %v36
  %v53 = vadd.bf16 %v37, %v37
  %v54 = vadd.bf16 %v38, %v38
  %v55 = vadd.bf16 %v39, %v39
  %v56 = vadd.bf16 %v40, %v40
  %v57 = vadd.bf16 %v41, %v41
  %v58 = vadd.bf16 %v42, %v42
  %v59 = vld [vmem:[%s0] sm:$0xf]
  %v60 = vld [vmem:[%s0 + $0x4] sm:$0xf]
  %v61 = vld [vmem:[%s0 + $0x8] sm:$0xf]
  %v62 = vld [vmem:[%s0 + $0xc] sm:$0xf]
  %v63 = vld [vmem:[%s0 + $0x10] sm:$0xf]
  %v64 = vld [vmem:[%s0 + $0x14] sm:$0xf]
  %v65 = vld [vmem:[%s0 + $0x18] sm:$0xf]
  %v66 = vld [vmem:[%s0 + $0x1c] sm:$0xf]
  %v67 = vld [vmem:[%s0 + $0x20] sm:$0xf]
  %v68 = vld [vmem:[%s0 + $0x24] sm:$0xf]
  %v69 = vld [vmem:[%s0 + $0x28] sm:$0xf]
  %v70 = vld [vmem:[%s0 + $0x2c] sm:$0xf]
  %v71 = vld [vmem:[%s0 + $0x30] sm:$0xf]
  %v72 = vld [vmem:[%s0 + $0x34] sm:$0xf]
  %v73 = vld [vmem:[%s0 + $0x38] sm:$0xf]
  %v74 = vld [vmem:[%s0 + $0x3c] sm:$0xf]
  %v75 = vld [vmem:[%s2] sm:$0xff]
  %v76 = vld [vmem:[%s2 + $0x8] sm:$0xff]
  %v77 = vld [vmem:[%s2 + $0x10] sm:$0xff]
  %v78 = vld [vmem:[%s2 + $0x18] sm:$0xff]
  %v79 = vld [vmem:[%s2 + $0x20] sm:$0xff]
  %v80 = vld [vmem:[%s2 + $0x28] sm:$0xff]
  %v81 = vld [vmem:[%s2 + $0x30] sm:$0xff]
  %v82 = vld [vmem:[%s2 + $0x38] sm:$0xff]
  %v99 = vunpack.c.l.b16 %v59
  %v100 = vunpack.c.l.b16 %v60
  %v101 = vunpack.c.l.b16 %v61
  %v102 = vunpack.c.l.b16 %v62
  %v103 = vunpack.c.l.b16 %v63
  %v104 = vunpack.c.l.b16 %v64
  %v105 = vunpack.c.l.b16 %v65
  %v106 = vunpack.c.l.b16 %v66
  %v107 = vunpack.c.l.b16 %v67
  %v108 = vunpack.c.l.b16 %v68
  %v109 = vunpack.c.l.b16 %v69
  %v110 = vunpack.c.l.b16 %v70
  %v111 = vunpack.c.l.b16 %v71
  %v112 = vunpack.c.l.b16 %v72
  %v113 = vunpack.c.l.b16 %v73
  %v114 = vunpack.c.l.b16 %v74
  %v115 = vpack.c.b16 %v100, %v99
  %v116 = vpack.c.b16 %v102, %v101
  %v117 = vpack.c.b16 %v104, %v103
  %v118 = vpack.c.b16 %v106, %v105
  %v119 = vpack.c.b16 %v108, %v107
  %v120 = vpack.c.b16 %v110, %v109
  %v121 = vpack.c.b16 %v112, %v111
  %v122 = vpack.c.b16 %v114, %v113
  %v131 = vunpack.c.l.b16 %v75
  %v132 = vunpack.c.h.b16 %v75
  %v133 = vunpack.c.l.b16 %v76
  %v134 = vunpack.c.h.b16 %v76
  %v135 = vunpack.c.l.b16 %v77
  %v136 = vunpack.c.h.b16 %v77
  %v137 = vunpack.c.l.b16 %v78
  %v138 = vunpack.c.h.b16 %v78
  %v139 = vunpack.c.l.b16 %v79
  %v140 = vunpack.c.h.b16 %v79
  %v141 = vunpack.c.l.b16 %v80
  %v142 = vunpack.c.h.b16 %v80
  %v143 = vunpack.c.l.b16 %v81
  %v144 = vunpack.c.h.b16 %v81
  %v145 = vunpack.c.l.b16 %v82
  %v146 = vunpack.c.h.b16 %v82
  %v147 = vpack.c.b16 %v135, %v131
  %v148 = vpack.c.b16 %v136, %v132
  %v149 = vpack.c.b16 %v137, %v133
  %v150 = vpack.c.b16 %v138, %v134
  %v151 = vpack.c.b16 %v143, %v139
  %v152 = vpack.c.b16 %v144, %v140
  %v153 = vpack.c.b16 %v145, %v141
  %v154 = vpack.c.b16 %v146, %v142
  %vm163 = vcmask 261120
  %v165 = vsel %vm163, %v115, 0
  %v168 = vsel %vm163, %v116, 0
  %v171 = vsel %vm163, %v117, 0
  %v174 = vsel %vm163, %v118, 0
  %v177 = vsel %vm163, %v119, 0
  %v180 = vsel %vm163, %v120, 0
  %v183 = vsel %vm163, %v121, 0
  %v186 = vsel %vm163, %v122, 0
  %188 = vmatprep.subr.bf16.mxu0 %v148
  %189 = vmatpush1.bf16.msra.mxu0 %v147
  %190 = vmatprep.subr.bf16.mxu0 %v152
  %191 = vmatpush1.bf16.msra.mxu0 %v151
  %192 = vmatprep.subr.bf16.mxu0 0
  %193 = vmatpush1.bf16.msra.mxu0 0
  %194 = vmatprep.subr.bf16.mxu0 0
  %195 = vmatpush1.bf16.msra.mxu0 0
  %196 = vmatprep.subr.bf16.mxu0 0
  %197 = vmatpush1.bf16.msra.mxu0 0
  %198 = vmatprep.subr.bf16.mxu0 0
  %199 = vmatpush1.bf16.msra.mxu0 0
  %200 = vmatprep.subr.bf16.mxu0 0
  %201 = vmatpush1.bf16.msra.mxu0 0
  %202 = vmatprep.subr.bf16.mxu0 0
  %203 = vmatpush1.bf16.msra.mxu0 0
  %204 = vmatprep.subr.bf16.mxu0 0
  %205 = vmatpush1.bf16.msra.mxu0 0
  %206 = vmatprep.subr.bf16.mxu0 0
  %207 = vmatpush1.bf16.msra.mxu0 0
  %208 = vmatprep.subr.bf16.mxu0 0
  %209 = vmatpush1.bf16.msra.mxu0 0
  %210 = vmatprep.subr.bf16.mxu0 0
  %211 = vmatpush1.bf16.msra.mxu0 0
  %212 = vmatprep.subr.bf16.mxu0 0
  %213 = vmatpush1.bf16.msra.mxu0 0
  %214 = vmatprep.subr.bf16.mxu0 0
  %215 = vmatpush1.bf16.msra.mxu0 0
  %216 = vmatprep.subr.bf16.mxu0 0
  %217 = vmatpush1.bf16.msra.mxu0 0
  %218 = vmatprep.subr.bf16.mxu0 0
  %219 = vmatpush1.bf16.msra.mxu0 0
  %220 = vmatprep.mubr.bf16.mxu0 0
  %221 = vmatmul.mubr.bf16.gmra.mrb[0].mxu0 %v165
  %v222 = vpop.f32.mrb[0].mxu0
  %v223 = vadd.f32 0.0, %v222
  %v224 = vpop.f32.mrb[0].mxu0
  %v225 = vadd.f32 0.0, %v224
  %v226 = vpop.f32.mrb[0].mxu0
  %v227 = vadd.f32 0.0, %v226
  %v228 = vpop.f32.mrb[0].mxu0
  %v229 = vadd.f32 0.0, %v228
  %230 = vmatprep.mubr.bf16.mxu0 0
  %231 = vmatmul.mubr.bf16.gmra.mrb[0].mxu0 %v168
  %v232 = vpop.f32.mrb[0].mxu0
  %v233 = vadd.f32 0.0, %v232
  %v234 = vpop.f32.mrb[0].mxu0
  %v235 = vadd.f32 0.0, %v234
  %v236 = vpop.f32.mrb[0].mxu0
  %v237 = vadd.f32 0.0, %v236
  %v238 = vpop.f32.mrb[0].mxu0
  %v239 = vadd.f32 0.0, %v238
  %240 = vmatprep.mubr.bf16.mxu0 0
  %241 = vmatmul.mubr.bf16.gmra.mrb[0].mxu0 %v171
  %v242 = vpop.f32.mrb[0].mxu0
  %v243 = vadd.f32 0.0, %v242
  %v244 = vpop.f32.mrb[0].mxu0
  %v245 = vadd.f32 0.0, %v244
  %v246 = vpop.f32.mrb[0].mxu0
  %v247 = vadd.f32 0.0, %v246
  %v248 = vpop.f32.mrb[0].mxu0
  %v249 = vadd.f32 0.0, %v248
  %250 = vmatprep.mubr.bf16.mxu0 0
  %251 = vmatmul.mubr.bf16.gmra.mrb[0].mxu0 %v174
  %v252 = vpop.f32.mrb[0].mxu0
  %v253 = vadd.f32 0.0, %v252
  %v254 = vpop.f32.mrb[0].mxu0
  %v255 = vadd.f32 0.0, %v254
  %v256 = vpop.f32.mrb[0].mxu0
  %v257 = vadd.f32 0.0, %v256
  %v258 = vpop.f32.mrb[0].mxu0
  %v259 = vadd.f32 0.0, %v258
  %260 = vmatprep.mubr.bf16.mxu0 0
  %261 = vmatmul.mubr.bf16.gmra.mrb[0].mxu0 %v177
  %v262 = vpop.f32.mrb[0].mxu0
  %v263 = vadd.f32 0.0, %v262
  %v264 = vpop.f32.mrb[0].mxu0
  %v265 = vadd.f32 0.0, %v264
  %v266 = vpop.f32.mrb[0].mxu0
  %v267 = vadd.f32 0.0, %v266
  %v268 = vpop.f32.mrb[0].mxu0
  %v269 = vadd.f32 0.0, %v268
  %270 = vmatprep.mubr.bf16.mxu0 0
  %271 = vmatmul.mubr.bf16.gmra.mrb[0].mxu0 %v180
  %v272 = vpop.f32.mrb[0].mxu0
  %v273 = vadd.f32 0.0, %v272
  %v274 = vpop.f32.mrb[0].mxu0
  %v275 = vadd.f32 0.0, %v274
  %v276 = vpop.f32.mrb[0].mxu0
  %v277 = vadd.f32 0.0, %v276
  %v278 = vpop.f32.mrb[0].mxu0
  %v279 = vadd.f32 0.0, %v278
  %280 = vmatprep.mubr.bf16.mxu0 0
  %281 = vmatmul.mubr.bf16.gmra.mrb[0].mxu0 %v183
  %v282 = vpop.f32.mrb[0].mxu0
  %v283 = vadd.f32 0.0, %v282
  %v284 = vpop.f32.mrb[0].mxu0
  %v285 = vadd.f32 0.0, %v284
  %v286 = vpop.f32.mrb[0].mxu0
  %v287 = vadd.f32 0.0, %v286
  %v288 = vpop.f32.mrb[0].mxu0
  %v289 = vadd.f32 0.0, %v288
  %290 = vmatprep.mubr.bf16.mxu0 0
  %291 = vmatmul.mubr.bf16.gmra.mrb[0].mxu0 %v186
  %v292 = vpop.f32.mrb[0].mxu0
  %v293 = vadd.f32 0.0, %v292
  %v294 = vpop.f32.mrb[0].mxu0
  %v295 = vadd.f32 0.0, %v294
  %v296 = vpop.f32.mrb[0].mxu0
  %v297 = vadd.f32 0.0, %v296
  %v298 = vpop.f32.mrb[0].mxu0
  %v299 = vadd.f32 0.0, %v298
  %300 = vdwg.mxu0
  %301 = vmatprep.subr.bf16.mxu0 %v150
  %302 = vmatpush1.bf16.msra.mxu0 %v149
  %303 = vmatprep.subr.bf16.mxu0 %v154
  %304 = vmatpush1.bf16.msra.mxu0 %v153
  %305 = vmatprep.subr.bf16.mxu0 0
  %306 = vmatpush1.bf16.msra.mxu0 0
  %307 = vmatprep.subr.bf16.mxu0 0
  %308 = vmatpush1.bf16.msra.mxu0 0
  %309 = vmatprep.subr.bf16.mxu0 0
  %310 = vmatpush1.bf16.msra.mxu0 0
  %311 = vmatprep.subr.bf16.mxu0 0
  %312 = vmatpush1.bf16.msra.mxu0 0
  %313 = vmatprep.subr.bf16.mxu0 0
  %314 = vmatpush1.bf16.msra.mxu0 0
  %315 = vmatprep.subr.bf16.mxu0 0
  %316 = vmatpush1.bf16.msra.mxu0 0
  %317 = vmatprep.subr.bf16.mxu0 0
  %318 = vmatpush1.bf16.msra.mxu0 0
  %319 = vmatprep.subr.bf16.mxu0 0
  %320 = vmatpush1.bf16.msra.mxu0 0
  %321 = vmatprep.subr.bf16.mxu0 0
  %322 = vmatpush1.bf16.msra.mxu0 0
  %323 = vmatprep.subr.bf16.mxu0 0
  %324 = vmatpush1.bf16.msra.mxu0 0
  %325 = vmatprep.subr.bf16.mxu0 0
  %326 = vmatpush1.bf16.msra.mxu0 0
  %327 = vmatprep.subr.bf16.mxu0 0
  %328 = vmatpush1.bf16.msra.mxu0 0
  %329 = vmatprep.subr.bf16.mxu0 0
  %330 = vmatpush1.bf16.msra.mxu0 0
  %331 = vmatprep.subr.bf16.mxu0 0
  %332 = vmatpush1.bf16.msra.mxu0 0
  %333 = vmatprep.mubr.bf16.mxu0 0
  %334 = vmatmul.mubr.bf16.gmra.mrb[0].mxu0 %v165
  %v335 = vpop.f32.mrb[0].mxu0
  %v336 = vadd.f32 0.0, %v335
  %v337 = vpop.f32.mrb[0].mxu0
  %v338 = vadd.f32 0.0, %v337
  %v339 = vpop.f32.mrb[0].mxu0
  %v340 = vadd.f32 0.0, %v339
  %v341 = vpop.f32.mrb[0].mxu0
  %v342 = vadd.f32 0.0, %v341
  %343 = vmatprep.mubr.bf16.mxu0 0
  %344 = vmatmul.mubr.bf16.gmra.mrb[0].mxu0 %v168
  %v345 = vpop.f32.mrb[0].mxu0
  %v346 = vadd.f32 0.0, %v345
  %v347 = vpop.f32.mrb[0].mxu0
  %v348 = vadd.f32 0.0, %v347
  %v349 = vpop.f32.mrb[0].mxu0
  %v350 = vadd.f32 0.0, %v349
  %v351 = vpop.f32.mrb[0].mxu0
  %v352 = vadd.f32 0.0, %v351
  %353 = vmatprep.mubr.bf16.mxu0 0
  %354 = vmatmul.mubr.bf16.gmra.mrb[0].mxu0 %v171
  %v355 = vpop.f32.mrb[0].mxu0
  %v356 = vadd.f32 0.0, %v355
  %v357 = vpop.f32.mrb[0].mxu0
  %v358 = vadd.f32 0.0, %v357
  %v359 = vpop.f32.mrb[0].mxu0
  %v360 = vadd.f32 0.0, %v359
  %v361 = vpop.f32.mrb[0].mxu0
  %v362 = vadd.f32 0.0, %v361
  %363 = vmatprep.mubr.bf16.mxu0 0
  %364 = vmatmul.mubr.bf16.gmra.mrb[0].mxu0 %v174
  %v365 = vpop.f32.mrb[0].mxu0
  %v366 = vadd.f32 0.0, %v365
  %v367 = vpop.f32.mrb[0].mxu0
  %v368 = vadd.f32 0.0, %v367
  %v369 = vpop.f32.mrb[0].mxu0
  %v370 = vadd.f32 0.0, %v369
  %v371 = vpop.f32.mrb[0].mxu0
  %v372 = vadd.f32 0.0, %v371
  %373 = vmatprep.mubr.bf16.mxu0 0
  %374 = vmatmul.mubr.bf16.gmra.mrb[0].mxu0 %v177
  %v375 = vpop.f32.mrb[0].mxu0
  %v376 = vadd.f32 0.0, %v375
  %v377 = vpop.f32.mrb[0].mxu0
  %v378 = vadd.f32 0.0, %v377
  %v379 = vpop.f32.mrb[0].mxu0
  %v380 = vadd.f32 0.0, %v379
  %v381 = vpop.f32.mrb[0].mxu0
  %v382 = vadd.f32 0.0, %v381
  %383 = vmatprep.mubr.bf16.mxu0 0
  %384 = vmatmul.mubr.bf16.gmra.mrb[0].mxu0 %v180
  %v385 = vpop.f32.mrb[0].mxu0
  %v386 = vadd.f32 0.0, %v385
  %v387 = vpop.f32.mrb[0].mxu0
  %v388 = vadd.f32 0.0, %v387
  %v389 = vpop.f32.mrb[0].mxu0
  %v390 = vadd.f32 0.0, %v389
  %v391 = vpop.f32.mrb[0].mxu0
  %v392 = vadd.f32 0.0, %v391
  %393 = vmatprep.mubr.bf16.mxu0 0
  %394 = vmatmul.mubr.bf16.gmra.mrb[0].mxu0 %v183
  %v395 = vpop.f32.mrb[0].mxu0
  %v396 = vadd.f32 0.0, %v395
  %v397 = vpop.f32.mrb[0].mxu0
  %v398 = vadd.f32 0.0, %v397
  %v399 = vpop.f32.mrb[0].mxu0
  %v400 = vadd.f32 0.0, %v399
  %v401 = vpop.f32.mrb[0].mxu0
  %v402 = vadd.f32 0.0, %v401
  %403 = vmatprep.mubr.bf16.mxu0 0
  %404 = vmatmul.mubr.bf16.gmra.mrb[0].mxu0 %v186
  %v405 = vpop.f32.mrb[0].mxu0
  %v406 = vadd.f32 0.0, %v405
  %v407 = vpop.f32.mrb[0].mxu0
  %v408 = vadd.f32 0.0, %v407
  %v409 = vpop.f32.mrb[0].mxu0
  %v410 = vadd.f32 0.0, %v409
  %v411 = vpop.f32.mrb[0].mxu0
  %v412 = vadd.f32 0.0, %v411
  %413 = vdwg.mxu0
  %v414 = vpack.c.bf16 %v227, %v223
  %v415 = vpack.c.bf16 %v229, %v225
  %v416 = vpack.c.bf16 %v340, %v336
  %v417 = vpack.c.bf16 %v342, %v338
  %v418 = vpack.c.bf16 %v237, %v233
  %v419 = vpack.c.bf16 %v239, %v235
  %v420 = vpack.c.bf16 %v350, %v346
  %v421 = vpack.c.bf16 %v352, %v348
  %v422 = vpack.c.bf16 %v247, %v243
  %v423 = vpack.c.bf16 %v249, %v245
  %v424 = vpack.c.bf16 %v360, %v356
  %v425 = vpack.c.bf16 %v362, %v358
  %v426 = vpack.c.bf16 %v257, %v253
  %v427 = vpack.c.bf16 %v259, %v255
  %v428 = vpack.c.bf16 %v370, %v366
  %v429 = vpack.c.bf16 %v372, %v368
  %v430 = vpack.c.bf16 %v267, %v263
  %v431 = vpack.c.bf16 %v269, %v265
  %v432 = vpack.c.bf16 %v380, %v376
  %v433 = vpack.c.bf16 %v382, %v378
  %v434 = vpack.c.bf16 %v277, %v273
  %v435 = vpack.c.bf16 %v279, %v275
  %v436 = vpack.c.bf16 %v390, %v386
  %v437 = vpack.c.bf16 %v392, %v388
  %v438 = vpack.c.bf16 %v287, %v283
  %v439 = vpack.c.bf16 %v289, %v285
  %v440 = vpack.c.bf16 %v400, %v396
  %v441 = vpack.c.bf16 %v402, %v398
  %v442 = vpack.c.bf16 %v297, %v293
  %v443 = vpack.c.bf16 %v299, %v295
  %v444 = vpack.c.bf16 %v410, %v406
  %v445 = vpack.c.bf16 %v412, %v408
  %v446 = vld [vmem:[%s3] sm:$0xf]
  %v447 = vld [vmem:[%s3 + $0x4] sm:$0xf]
  %v448 = vld [vmem:[%s3 + $0x8] sm:$0xf]
  %v449 = vld [vmem:[%s3 + $0xc] sm:$0xf]
  %v450 = vld [vmem:[%s3 + $0x10] sm:$0xf]
  %v451 = vld [vmem:[%s3 + $0x14] sm:$0xf]
  %v452 = vld [vmem:[%s3 + $0x18] sm:$0xf]
  %v453 = vld [vmem:[%s3 + $0x1c] sm:$0xf]
  %v454 = vld [vmem:[%s3 + $0x20] sm:$0xf]
  %v455 = vld [vmem:[%s3 + $0x24] sm:$0xf]
  %v456 = vld [vmem:[%s3 + $0x28] sm:$0xf]
  %v457 = vld [vmem:[%s3 + $0x2c] sm:$0xf]
  %v458 = vld [vmem:[%s3 + $0x30] sm:$0xf]
  %v459 = vld [vmem:[%s3 + $0x34] sm:$0xf]
  %v460 = vld [vmem:[%s3 + $0x38] sm:$0xf]
  %v461 = vld [vmem:[%s3 + $0x3c] sm:$0xf]
  %v462 = vld [vmem:[%s3 + $0x40] sm:$0xf]
  %v463 = vld [vmem:[%s3 + $0x44] sm:$0xf]
  %v464 = vld [vmem:[%s3 + $0x48] sm:$0xf]
  %v465 = vld [vmem:[%s3 + $0x4c] sm:$0xf]
  %v466 = vld [vmem:[%s3 + $0x50] sm:$0xf]
  %v467 = vld [vmem:[%s3 + $0x54] sm:$0xf]
  %v468 = vld [vmem:[%s3 + $0x58] sm:$0xf]
  %v469 = vld [vmem:[%s3 + $0x5c] sm:$0xf]
  %v470 = vld [vmem:[%s3 + $0x60] sm:$0xf]
  %v471 = vld [vmem:[%s3 + $0x64] sm:$0xf]
  %v472 = vld [vmem:[%s3 + $0x68] sm:$0xf]
  %v473 = vld [vmem:[%s3 + $0x6c] sm:$0xf]
  %v474 = vld [vmem:[%s3 + $0x70] sm:$0xf]
  %v475 = vld [vmem:[%s3 + $0x74] sm:$0xf]
  %v476 = vld [vmem:[%s3 + $0x78] sm:$0xf]
  %v477 = vld [vmem:[%s3 + $0x7c] sm:$0xf]
  %v494 = vunpack.c.l.b16 %v27
  %v495 = vunpack.c.l.b16 %v28
  %v496 = vunpack.c.l.b16 %v29
  %v497 = vunpack.c.l.b16 %v30
  %v498 = vunpack.c.l.b16 %v31
  %v499 = vunpack.c.l.b16 %v32
  %v500 = vunpack.c.l.b16 %v33
  %v501 = vunpack.c.l.b16 %v34
  %v502 = vunpack.c.l.b16 %v35
  %v503 = vunpack.c.l.b16 %v36
  %v504 = vunpack.c.l.b16 %v37
  %v505 = vunpack.c.l.b16 %v38
  %v506 = vunpack.c.l.b16 %v39
  %v507 = vunpack.c.l.b16 %v40
  %v508 = vunpack.c.l.b16 %v41
  %v509 = vunpack.c.l.b16 %v42
  %v510 = vpack.c.b16 %v495, %v494
  %v511 = vpack.c.b16 %v497, %v496
  %v512 = vpack.c.b16 %v499, %v498
  %v513 = vpack.c.b16 %v501, %v500
  %v514 = vpack.c.b16 %v503, %v502
  %v515 = vpack.c.b16 %v505, %v504
  %v516 = vpack.c.b16 %v507, %v506
  %v517 = vpack.c.b16 %v509, %v508
  %526 = vmatprep.subr.bf16.mxu0 %v415
  %527 = vmatpush1.bf16.msra.mxu0 %v414
  %528 = vmatprep.subr.bf16.mxu0 %v419
  %529 = vmatpush1.bf16.msra.mxu0 %v418
  %530 = vmatprep.subr.bf16.mxu0 %v423
  %531 = vmatpush1.bf16.msra.mxu0 %v422
  %532 = vmatprep.subr.bf16.mxu0 %v427
  %533 = vmatpush1.bf16.msra.mxu0 %v426
  %534 = vmatprep.subr.bf16.mxu0 %v431
  %535 = vmatpush1.bf16.msra.mxu0 %v430
  %536 = vmatprep.subr.bf16.mxu0 %v435
  %537 = vmatpush1.bf16.msra.mxu0 %v434
  %538 = vmatprep.subr.bf16.mxu0 %v439
  %539 = vmatpush1.bf16.msra.mxu0 %v438
  %540 = vmatprep.subr.bf16.mxu0 %v443
  %541 = vmatpush1.bf16.msra.mxu0 %v442
  %542 = vmatprep.subr.bf16.mxu0 0
  %543 = vmatpush1.bf16.msra.mxu0 0
  %544 = vmatprep.subr.bf16.mxu0 0
  %545 = vmatpush1.bf16.msra.mxu0 0
  %546 = vmatprep.subr.bf16.mxu0 0
  %547 = vmatpush1.bf16.msra.mxu0 0
  %548 = vmatprep.subr.bf16.mxu0 0
  %549 = vmatpush1.bf16.msra.mxu0 0
  %550 = vmatprep.subr.bf16.mxu0 0
  %551 = vmatpush1.bf16.msra.mxu0 0
  %552 = vmatprep.subr.bf16.mxu0 0
  %553 = vmatpush1.bf16.msra.mxu0 0
  %554 = vmatprep.subr.bf16.mxu0 0
  %555 = vmatpush1.bf16.msra.mxu0 0
  %556 = vmatprep.subr.bf16.mxu0 0
  %557 = vmatpush1.bf16.msra.mxu0 0
  %558 = vmatprep.mubr.bf16.mxu0 0
  %559 = vmatmul.mubr.bf16.gmra.mrb[0].mxu0 %v510
  %v560 = vpop.f32.mrb[0].mxu0
  %v561 = vadd.f32 0.0, %v560
  %v562 = vpop.f32.mrb[0].mxu0
  %v563 = vadd.f32 0.0, %v562
  %v564 = vpop.f32.mrb[0].mxu0
  %v565 = vadd.f32 0.0, %v564
  %v566 = vpop.f32.mrb[0].mxu0
  %v567 = vadd.f32 0.0, %v566
  %568 = vmatprep.mubr.bf16.mxu0 0
  %569 = vmatmul.mubr.bf16.gmra.mrb[0].mxu0 %v511
  %v570 = vpop.f32.mrb[0].mxu0
  %v571 = vadd.f32 0.0, %v570
  %v572 = vpop.f32.mrb[0].mxu0
  %v573 = vadd.f32 0.0, %v572
  %v574 = vpop.f32.mrb[0].mxu0
  %v575 = vadd.f32 0.0, %v574
  %v576 = vpop.f32.mrb[0].mxu0
  %v577 = vadd.f32 0.0, %v576
  %578 = vmatprep.mubr.bf16.mxu0 0
  %579 = vmatmul.mubr.bf16.gmra.mrb[0].mxu0 %v512
  %v580 = vpop.f32.mrb[0].mxu0
  %v581 = vadd.f32 0.0, %v580
  %v582 = vpop.f32.mrb[0].mxu0
  %v583 = vadd.f32 0.0, %v582
  %v584 = vpop.f32.mrb[0].mxu0
  %v585 = vadd.f32 0.0, %v584
  %v586 = vpop.f32.mrb[0].mxu0
  %v587 = vadd.f32 0.0, %v586
  %588 = vmatprep.mubr.bf16.mxu0 0
  %589 = vmatmul.mubr.bf16.gmra.mrb[0].mxu0 %v513
  %v590 = vpop.f32.mrb[0].mxu0
  %v591 = vadd.f32 0.0, %v590
  %v592 = vpop.f32.mrb[0].mxu0
  %v593 = vadd.f32 0.0, %v592
  %v594 = vpop.f32.mrb[0].mxu0
  %v595 = vadd.f32 0.0, %v594
  %v596 = vpop.f32.mrb[0].mxu0
  %v597 = vadd.f32 0.0, %v596
  %598 = vmatprep.mubr.bf16.mxu0 0
  %599 = vmatmul.mubr.bf16.gmra.mrb[0].mxu0 %v514
  %v600 = vpop.f32.mrb[0].mxu0
  %v601 = vadd.f32 0.0, %v600
  %v602 = vpop.f32.mrb[0].mxu0
  %v603 = vadd.f32 0.0, %v602
  %v604 = vpop.f32.mrb[0].mxu0
  %v605 = vadd.f32 0.0, %v604
  %v606 = vpop.f32.mrb[0].mxu0
  %v607 = vadd.f32 0.0, %v606
  %608 = vmatprep.mubr.bf16.mxu0 0
  %609 = vmatmul.mubr.bf16.gmra.mrb[0].mxu0 %v515
  %v610 = vpop.f32.mrb[0].mxu0
  %v611 = vadd.f32 0.0, %v610
  %v612 = vpop.f32.mrb[0].mxu0
  %v613 = vadd.f32 0.0, %v612
  %v614 = vpop.f32.mrb[0].mxu0
  %v615 = vadd.f32 0.0, %v614
  %v616 = vpop.f32.mrb[0].mxu0
  %v617 = vadd.f32 0.0, %v616
  %618 = vmatprep.mubr.bf16.mxu0 0
  %619 = vmatmul.mubr.bf16.gmra.mrb[0].mxu0 %v516
  %v620 = vpop.f32.mrb[0].mxu0
  %v621 = vadd.f32 0.0, %v620
  %v622 = vpop.f32.mrb[0].mxu0
  %v623 = vadd.f32 0.0, %v622
  %v624 = vpop.f32.mrb[0].mxu0
  %v625 = vadd.f32 0.0, %v624
  %v626 = vpop.f32.mrb[0].mxu0
  %v627 = vadd.f32 0.0, %v626
  %628 = vmatprep.mubr.bf16.mxu0 0
  %629 = vmatmul.mubr.bf16.gmra.mrb[0].mxu0 %v517
  %v630 = vpop.f32.mrb[0].mxu0
  %v631 = vadd.f32 0.0, %v630
  %v632 = vpop.f32.mrb[0].mxu0
  %v633 = vadd.f32 0.0, %v632
  %v634 = vpop.f32.mrb[0].mxu0
  %v635 = vadd.f32 0.0, %v634
  %v636 = vpop.f32.mrb[0].mxu0
  %v637 = vadd.f32 0.0, %v636
  %638 = vdwg.mxu0
  %639 = vmatprep.subr.bf16.mxu0 %v417
  %640 = vmatpush1.bf16.msra.mxu0 %v416
  %641 = vmatprep.subr.bf16.mxu0 %v421
  %642 = vmatpush1.bf16.msra.mxu0 %v420
  %643 = vmatprep.subr.bf16.mxu0 %v425
  %644 = vmatpush1.bf16.msra.mxu0 %v424
  %645 = vmatprep.subr.bf16.mxu0 %v429
  %646 = vmatpush1.bf16.msra.mxu0 %v428
  %647 = vmatprep.subr.bf16.mxu0 %v433
  %648 = vmatpush1.bf16.msra.mxu0 %v432
  %649 = vmatprep.subr.bf16.mxu0 %v437
  %650 = vmatpush1.bf16.msra.mxu0 %v436
  %651 = vmatprep.subr.bf16.mxu0 %v441
  %652 = vmatpush1.bf16.msra.mxu0 %v440
  %653 = vmatprep.subr.bf16.mxu0 %v445
  %654 = vmatpush1.bf16.msra.mxu0 %v444
  %655 = vmatprep.subr.bf16.mxu0 0
  %656 = vmatpush1.bf16.msra.mxu0 0
  %657 = vmatprep.subr.bf16.mxu0 0
  %658 = vmatpush1.bf16.msra.mxu0 0
  %659 = vmatprep.subr.bf16.mxu0 0
  %660 = vmatpush1.bf16.msra.mxu0 0
  %661 = vmatprep.subr.bf16.mxu0 0
  %662 = vmatpush1.bf16.msra.mxu0 0
  %663 = vmatprep.subr.bf16.mxu0 0
  %664 = vmatpush1.bf16.msra.mxu0 0
  %665 = vmatprep.subr.bf16.mxu0 0
  %666 = vmatpush1.bf16.msra.mxu0 0
  %667 = vmatprep.subr.bf16.mxu0 0
  %668 = vmatpush1.bf16.msra.mxu0 0
  %669 = vmatprep.subr.bf16.mxu0 0
  %670 = vmatpush1.bf16.msra.mxu0 0
  %671 = vmatprep.mubr.bf16.mxu0 0
  %672 = vmatmul.mubr.bf16.gmra.mrb[0].mxu0 %v510
  %v673 = vpop.f32.mrb[0].mxu0
  %v674 = vadd.f32 0.0, %v673
  %v675 = vpop.f32.mrb[0].mxu0
  %v676 = vadd.f32 0.0, %v675
  %v677 = vpop.f32.mrb[0].mxu0
  %v678 = vadd.f32 0.0, %v677
  %v679 = vpop.f32.mrb[0].mxu0
  %v680 = vadd.f32 0.0, %v679
  %681 = vmatprep.mubr.bf16.mxu0 0
  %682 = vmatmul.mubr.bf16.gmra.mrb[0].mxu0 %v511
  %v683 = vpop.f32.mrb[0].mxu0
  %v684 = vadd.f32 0.0, %v683
  %v685 = vpop.f32.mrb[0].mxu0
  %v686 = vadd.f32 0.0, %v685
  %v687 = vpop.f32.mrb[0].mxu0
  %v688 = vadd.f32 0.0, %v687
  %v689 = vpop.f32.mrb[0].mxu0
  %v690 = vadd.f32 0.0, %v689
  %691 = vmatprep.mubr.bf16.mxu0 0
  %692 = vmatmul.mubr.bf16.gmra.mrb[0].mxu0 %v512
  %v693 = vpop.f32.mrb[0].mxu0
  %v694 = vadd.f32 0.0, %v693
  %v695 = vpop.f32.mrb[0].mxu0
  %v696 = vadd.f32 0.0, %v695
  %v697 = vpop.f32.mrb[0].mxu0
  %v698 = vadd.f32 0.0, %v697
  %v699 = vpop.f32.mrb[0].mxu0
  %v700 = vadd.f32 0.0, %v699
  %701 = vmatprep.mubr.bf16.mxu0 0
  %702 = vmatmul.mubr.bf16.gmra.mrb[0].mxu0 %v513
  %v703 = vpop.f32.mrb[0].mxu0
  %v704 = vadd.f32 0.0, %v703
  %v705 = vpop.f32.mrb[0].mxu0
  %v706 = vadd.f32 0.0, %v705
  %v707 = vpop.f32.mrb[0].mxu0
  %v708 = vadd.f32 0.0, %v707
  %v709 = vpop.f32.mrb[0].mxu0
  %v710 = vadd.f32 0.0, %v709
  %711 = vmatprep.mubr.bf16.mxu0 0
  %712 = vmatmul.mubr.bf16.gmra.mrb[0].mxu0 %v514
  %v713 = vpop.f32.mrb[0].mxu0
  %v714 = vadd.f32 0.0, %v713
  %v715 = vpop.f32.mrb[0].mxu0
  %v716 = vadd.f32 0.0, %v715
  %v717 = vpop.f32.mrb[0].mxu0
  %v718 = vadd.f32 0.0, %v717
  %v719 = vpop.f32.mrb[0].mxu0
  %v720 = vadd.f32 0.0, %v719
  %721 = vmatprep.mubr.bf16.mxu0 0
  %722 = vmatmul.mubr.bf16.gmra.mrb[0].mxu0 %v515
  %v723 = vpop.f32.mrb[0].mxu0
  %v724 = vadd.f32 0.0, %v723
  %v725 = vpop.f32.mrb[0].mxu0
  %v726 = vadd.f32 0.0, %v725
  %v727 = vpop.f32.mrb[0].mxu0
  %v728 = vadd.f32 0.0, %v727
  %v729 = vpop.f32.mrb[0].mxu0
  %v730 = vadd.f32 0.0, %v729
  %731 = vmatprep.mubr.bf16.mxu0 0
  %732 = vmatmul.mubr.bf16.gmra.mrb[0].mxu0 %v516
  %v733 = vpop.f32.mrb[0].mxu0
  %v734 = vadd.f32 0.0, %v733
  %v735 = vpop.f32.mrb[0].mxu0
  %v736 = vadd.f32 0.0, %v735
  %v737 = vpop.f32.mrb[0].mxu0
  %v738 = vadd.f32 0.0, %v737
  %v739 = vpop.f32.mrb[0].mxu0
  %v740 = vadd.f32 0.0, %v739
  %741 = vmatprep.mubr.bf16.mxu0 0
  %742 = vmatmul.mubr.bf16.gmra.mrb[0].mxu0 %v517
  %v743 = vpop.f32.mrb[0].mxu0
  %v744 = vadd.f32 0.0, %v743
  %v745 = vpop.f32.mrb[0].mxu0
  %v746 = vadd.f32 0.0, %v745
  %v747 = vpop.f32.mrb[0].mxu0
  %v748 = vadd.f32 0.0, %v747
  %v749 = vpop.f32.mrb[0].mxu0
  %v750 = vadd.f32 0.0, %v749
  %751 = vdwg.mxu0
  %v752 = vpack.c.bf16 %v565, %v561
  %v753 = vpack.c.bf16 %v567, %v563
  %v754 = vpack.c.bf16 %v678, %v674
  %v755 = vpack.c.bf16 %v680, %v676
  %v756 = vpack.c.bf16 %v575, %v571
  %v757 = vpack.c.bf16 %v577, %v573
  %v758 = vpack.c.bf16 %v688, %v684
  %v759 = vpack.c.bf16 %v690, %v686
  %v760 = vpack.c.bf16 %v585, %v581
  %v761 = vpack.c.bf16 %v587, %v583
  %v762 = vpack.c.bf16 %v698, %v694
  %v763 = vpack.c.bf16 %v700, %v696
  %v764 = vpack.c.bf16 %v595, %v591
  %v765 = vpack.c.bf16 %v597, %v593
  %v766 = vpack.c.bf16 %v708, %v704
  %v767 = vpack.c.bf16 %v710, %v706
  %v768 = vpack.c.bf16 %v605, %v601
  %v769 = vpack.c.bf16 %v607, %v603
  %v770 = vpack.c.bf16 %v718, %v714
  %v771 = vpack.c.bf16 %v720, %v716
  %v772 = vpack.c.bf16 %v615, %v611
  %v773 = vpack.c.bf16 %v617, %v613
  %v774 = vpack.c.bf16 %v728, %v724
  %v775 = vpack.c.bf16 %v730, %v726
  %v776 = vpack.c.bf16 %v625, %v621
  %v777 = vpack.c.bf16 %v627, %v623
  %v778 = vpack.c.bf16 %v738, %v734
  %v779 = vpack.c.bf16 %v740, %v736
  %v780 = vpack.c.bf16 %v635, %v631
  %v781 = vpack.c.bf16 %v637, %v633
  %v782 = vpack.c.bf16 %v748, %v744
  %v783 = vpack.c.bf16 %v750, %v746
  %s784 = scalar_lea.vmem %s3, 128
  %v785 = vld [vmem:[%s784] sm:$0xf]
  %v786 = vld [vmem:[%s784 + $0x4] sm:$0xf]
  %v787 = vld [vmem:[%s784 + $0x8] sm:$0xf]
  %v788 = vld [vmem:[%s784 + $0xc] sm:$0xf]
  %v789 = vld [vmem:[%s784 + $0x10] sm:$0xf]
  %v790 = vld [vmem:[%s784 + $0x14] sm:$0xf]
  %v791 = vld [vmem:[%s784 + $0x18] sm:$0xf]
  %v792 = vld [vmem:[%s784 + $0x1c] sm:$0xf]
  %v793 = vld [vmem:[%s784 + $0x20] sm:$0xf]
  %v794 = vld [vmem:[%s784 + $0x24] sm:$0xf]
  %v795 = vld [vmem:[%s784 + $0x28] sm:$0xf]
  %v796 = vld [vmem:[%s784 + $0x2c] sm:$0xf]
  %v797 = vld [vmem:[%s784 + $0x30] sm:$0xf]
  %v798 = vld [vmem:[%s784 + $0x34] sm:$0xf]
  %v799 = vld [vmem:[%s784 + $0x38] sm:$0xf]
  %v800 = vld [vmem:[%s784 + $0x3c] sm:$0xf]
  %v801 = vld [vmem:[%s784 + $0x40] sm:$0xf]
  %v802 = vld [vmem:[%s784 + $0x44] sm:$0xf]
  %v803 = vld [vmem:[%s784 + $0x48] sm:$0xf]
  %v804 = vld [vmem:[%s784 + $0x4c] sm:$0xf]
  %v805 = vld [vmem:[%s784 + $0x50] sm:$0xf]
  %v806 = vld [vmem:[%s784 + $0x54] sm:$0xf]
  %v807 = vld [vmem:[%s784 + $0x58] sm:$0xf]
  %v808 = vld [vmem:[%s784 + $0x5c] sm:$0xf]
  %v809 = vld [vmem:[%s784 + $0x60] sm:$0xf]
  %v810 = vld [vmem:[%s784 + $0x64] sm:$0xf]
  %v811 = vld [vmem:[%s784 + $0x68] sm:$0xf]
  %v812 = vld [vmem:[%s784 + $0x6c] sm:$0xf]
  %v813 = vld [vmem:[%s784 + $0x70] sm:$0xf]
  %v814 = vld [vmem:[%s784 + $0x74] sm:$0xf]
  %v815 = vld [vmem:[%s784 + $0x78] sm:$0xf]
  %v816 = vld [vmem:[%s784 + $0x7c] sm:$0xf]
  %v849 = vunpack.c.l.b16 %v785
  %v850 = vunpack.c.l.b16 %v786
  %v851 = vunpack.c.l.b16 %v787
  %v852 = vunpack.c.l.b16 %v788
  %v853 = vunpack.c.l.b16 %v789
  %v854 = vunpack.c.l.b16 %v790
  %v855 = vunpack.c.l.b16 %v791
  %v856 = vunpack.c.l.b16 %v792
  %v857 = vunpack.c.l.b16 %v793
  %v858 = vunpack.c.l.b16 %v794
  %v859 = vunpack.c.l.b16 %v795
  %v860 = vunpack.c.l.b16 %v796
  %v861 = vunpack.c.l.b16 %v797
  %v862 = vunpack.c.l.b16 %v798
  %v863 = vunpack.c.l.b16 %v799
  %v864 = vunpack.c.l.b16 %v800
  %v865 = vunpack.c.l.b16 %v801
  %v866 = vunpack.c.l.b16 %v802
  %v867 = vunpack.c.l.b16 %v803
  %v868 = vunpack.c.l.b16 %v804
  %v869 = vunpack.c.l.b16 %v805
  %v870 = vunpack.c.l.b16 %v806
  %v871 = vunpack.c.l.b16 %v807
  %v872 = vunpack.c.l.b16 %v808
  %v873 = vunpack.c.l.b16 %v809
  %v874 = vunpack.c.l.b16 %v810
  %v875 = vunpack.c.l.b16 %v811
  %v876 = vunpack.c.l.b16 %v812
  %v877 = vunpack.c.l.b16 %v813
  %v878 = vunpack.c.l.b16 %v814
  %v879 = vunpack.c.l.b16 %v815
  %v880 = vunpack.c.l.b16 %v816
  %v881 = vpack.c.b16 %v850, %v849
  %v882 = vpack.c.b16 %v852, %v851
  %v883 = vpack.c.b16 %v854, %v853
  %v884 = vpack.c.b16 %v856, %v855
  %v885 = vpack.c.b16 %v858, %v857
  %v886 = vpack.c.b16 %v860, %v859
  %v887 = vpack.c.b16 %v862, %v861
  %v888 = vpack.c.b16 %v864, %v863
  %v889 = vpack.c.b16 %v866, %v865
  %v890 = vpack.c.b16 %v868, %v867
  %v891 = vpack.c.b16 %v870, %v869
  %v892 = vpack.c.b16 %v872, %v871
  %v893 = vpack.c.b16 %v874, %v873
  %v894 = vpack.c.b16 %v876, %v875
  %v895 = vpack.c.b16 %v878, %v877
  %v896 = vpack.c.b16 %v880, %v879
  %913 = vmatprep.subr.bf16.mxu0 0
  %914 = vmatpush1.bf16.msra.mxu0 %v881
  %915 = vmatprep.subr.bf16.mxu0 0
  %916 = vmatpush1.bf16.msra.mxu0 %v882
  %917 = vmatprep.subr.bf16.mxu0 0
  %918 = vmatpush1.bf16.msra.mxu0 %v883
  %919 = vmatprep.subr.bf16.mxu0 0
  %920 = vmatpush1.bf16.msra.mxu0 %v884
  %921 = vmatprep.subr.bf16.mxu0 0
  %922 = vmatpush1.bf16.msra.mxu0 %v885
  %923 = vmatprep.subr.bf16.mxu0 0
  %924 = vmatpush1.bf16.msra.mxu0 %v886
  %925 = vmatprep.subr.bf16.mxu0 0
  %926 = vmatpush1.bf16.msra.mxu0 %v887
  %927 = vmatprep.subr.bf16.mxu0 0
  %928 = vmatpush1.bf16.msra.mxu0 %v888
  %929 = vmatprep.subr.bf16.mxu0 0
  %930 = vmatpush1.bf16.msra.mxu0 %v889
  %931 = vmatprep.subr.bf16.mxu0 0
  %932 = vmatpush1.bf16.msra.mxu0 %v890
  %933 = vmatprep.subr.bf16.mxu0 0
  %934 = vmatpush1.bf16.msra.mxu0 %v891
  %935 = vmatprep.subr.bf16.mxu0 0
  %936 = vmatpush1.bf16.msra.mxu0 %v892
  %937 = vmatprep.subr.bf16.mxu0 0
  %938 = vmatpush1.bf16.msra.mxu0 %v893
  %939 = vmatprep.subr.bf16.mxu0 0
  %940 = vmatpush1.bf16.msra.mxu0 %v894
  %941 = vmatprep.subr.bf16.mxu0 0
  %942 = vmatpush1.bf16.msra.mxu0 %v895
  %943 = vmatprep.subr.bf16.mxu0 0
  %944 = vmatpush1.bf16.msra.mxu0 %v896
  %945 = vmatprep.mubr.bf16.mxu0 %v753
  %946 = vmatmul.mubr.bf16.gmra.mrb[0].mxu0 %v752
  %v947 = vpop.f32.mrb[0].mxu0
  %v948 = vadd.f32 0.0, %v947
  %v949 = vpop.f32.mrb[0].mxu0
  %v950 = vpop.f32.mrb[0].mxu0
  %v951 = vadd.f32 0.0, %v950
  %v952 = vpop.f32.mrb[0].mxu0
  %953 = vmatprep.mubr.bf16.mxu0 %v757
  %954 = vmatmul.mubr.bf16.gmra.mrb[0].mxu0 %v756
  %v955 = vpop.f32.mrb[0].mxu0
  %v956 = vadd.f32 0.0, %v955
  %v957 = vpop.f32.mrb[0].mxu0
  %v958 = vpop.f32.mrb[0].mxu0
  %v959 = vadd.f32 0.0, %v958
  %v960 = vpop.f32.mrb[0].mxu0
  %961 = vmatprep.mubr.bf16.mxu0 %v761
  %962 = vmatmul.mubr.bf16.gmra.mrb[0].mxu0 %v760
  %v963 = vpop.f32.mrb[0].mxu0
  %v964 = vadd.f32 0.0, %v963
  %v965 = vpop.f32.mrb[0].mxu0
  %v966 = vpop.f32.mrb[0].mxu0
  %v967 = vadd.f32 0.0, %v966
  %v968 = vpop.f32.mrb[0].mxu0
  %969 = vmatprep.mubr.bf16.mxu0 %v765
  %970 = vmatmul.mubr.bf16.gmra.mrb[0].mxu0 %v764
  %v971 = vpop.f32.mrb[0].mxu0
  %v972 = vadd.f32 0.0, %v971
  %v973 = vpop.f32.mrb[0].mxu0
  %v974 = vpop.f32.mrb[0].mxu0
  %v975 = vadd.f32 0.0, %v974
  %v976 = vpop.f32.mrb[0].mxu0
  %977 = vmatprep.mubr.bf16.mxu0 %v769
  %978 = vmatmul.mubr.bf16.gmra.mrb[0].mxu0 %v768
  %v979 = vpop.f32.mrb[0].mxu0
  %v980 = vadd.f32 0.0, %v979
  %v981 = vpop.f32.mrb[0].mxu0
  %v982 = vpop.f32.mrb[0].mxu0
  %v983 = vadd.f32 0.0, %v982
  %v984 = vpop.f32.mrb[0].mxu0
  %985 = vmatprep.mubr.bf16.mxu0 %v773
  %986 = vmatmul.mubr.bf16.gmra.mrb[0].mxu0 %v772
  %v987 = vpop.f32.mrb[0].mxu0
  %v988 = vadd.f32 0.0, %v987
  %v989 = vpop.f32.mrb[0].mxu0
  %v990 = vpop.f32.mrb[0].mxu0
  %v991 = vadd.f32 0.0, %v990
  %v992 = vpop.f32.mrb[0].mxu0
  %993 = vmatprep.mubr.bf16.mxu0 %v777
  %994 = vmatmul.mubr.bf16.gmra.mrb[0].mxu0 %v776
  %v995 = vpop.f32.mrb[0].mxu0
  %v996 = vadd.f32 0.0, %v995
  %v997 = vpop.f32.mrb[0].mxu0
  %v998 = vpop.f32.mrb[0].mxu0
  %v999 = vadd.f32 0.0, %v998
  %v1000 = vpop.f32.mrb[0].mxu0
  %1001 = vmatprep.mubr.bf16.mxu0 %v781
  %1002 = vmatmul.mubr.bf16.gmra.mrb[0].mxu0 %v780
  %v1003 = vpop.f32.mrb[0].mxu0
  %v1004 = vadd.f32 0.0, %v1003
  %v1005 = vpop.f32.mrb[0].mxu0
  %v1006 = vpop.f32.mrb[0].mxu0
  %v1007 = vadd.f32 0.0, %v1006
  %v1008 = vpop.f32.mrb[0].mxu0
  %1009 = vdwg.mxu0
  %v1042 = vunpack.c.l.b16 %v446
  %v1043 = vunpack.c.l.b16 %v447
  %v1044 = vunpack.c.l.b16 %v448
  %v1045 = vunpack.c.l.b16 %v449
  %v1046 = vunpack.c.l.b16 %v450
  %v1047 = vunpack.c.l.b16 %v451
  %v1048 = vunpack.c.l.b16 %v452
  %v1049 = vunpack.c.l.b16 %v453
  %v1050 = vunpack.c.l.b16 %v454
  %v1051 = vunpack.c.l.b16 %v455
  %v1052 = vunpack.c.l.b16 %v456
  %v1053 = vunpack.c.l.b16 %v457
  %v1054 = vunpack.c.l.b16 %v458
  %v1055 = vunpack.c.l.b16 %v459
  %v1056 = vunpack.c.l.b16 %v460
  %v1057 = vunpack.c.l.b16 %v461
  %v1058 = vunpack.c.l.b16 %v462
  %v1059 = vunpack.c.l.b16 %v463
  %v1060 = vunpack.c.l.b16 %v464
  %v1061 = vunpack.c.l.b16 %v465
  %v1062 = vunpack.c.l.b16 %v466
  %v1063 = vunpack.c.l.b16 %v467
  %v1064 = vunpack.c.l.b16 %v468
  %v1065 = vunpack.c.l.b16 %v469
  %v1066 = vunpack.c.l.b16 %v470
  %v1067 = vunpack.c.l.b16 %v471
  %v1068 = vunpack.c.l.b16 %v472
  %v1069 = vunpack.c.l.b16 %v473
  %v1070 = vunpack.c.l.b16 %v474
  %v1071 = vunpack.c.l.b16 %v475
  %v1072 = vunpack.c.l.b16 %v476
  %v1073 = vunpack.c.l.b16 %v477
  %v1074 = vpack.c.b16 %v1043, %v1042
  %v1075 = vpack.c.b16 %v1045, %v1044
  %v1076 = vpack.c.b16 %v1047, %v1046
  %v1077 = vpack.c.b16 %v1049, %v1048
  %v1078 = vpack.c.b16 %v1051, %v1050
  %v1079 = vpack.c.b16 %v1053, %v1052
  %v1080 = vpack.c.b16 %v1055, %v1054
  %v1081 = vpack.c.b16 %v1057, %v1056
  %v1082 = vpack.c.b16 %v1059, %v1058
  %v1083 = vpack.c.b16 %v1061, %v1060
  %v1084 = vpack.c.b16 %v1063, %v1062
  %v1085 = vpack.c.b16 %v1065, %v1064
  %v1086 = vpack.c.b16 %v1067, %v1066
  %v1087 = vpack.c.b16 %v1069, %v1068
  %v1088 = vpack.c.b16 %v1071, %v1070
  %v1089 = vpack.c.b16 %v1073, %v1072
  %1106 = vmatprep.subr.bf16.mxu0 0
  %1107 = vmatpush1.bf16.msra.mxu0 %v1074
  %1108 = vmatprep.subr.bf16.mxu0 0
  %1109 = vmatpush1.bf16.msra.mxu0 %v1075
  %1110 = vmatprep.subr.bf16.mxu0 0
  %1111 = vmatpush1.bf16.msra.mxu0 %v1076
  %1112 = vmatprep.subr.bf16.mxu0 0
  %1113 = vmatpush1.bf16.msra.mxu0 %v1077
  %1114 = vmatprep.subr.bf16.mxu0 0
  %1115 = vmatpush1.bf16.msra.mxu0 %v1078
  %1116 = vmatprep.subr.bf16.mxu0 0
  %1117 = vmatpush1.bf16.msra.mxu0 %v1079
  %1118 = vmatprep.subr.bf16.mxu0 0
  %1119 = vmatpush1.bf16.msra.mxu0 %v1080
  %1120 = vmatprep.subr.bf16.mxu0 0
  %1121 = vmatpush1.bf16.msra.mxu0 %v1081
  %1122 = vmatprep.subr.bf16.mxu0 0
  %1123 = vmatpush1.bf16.msra.mxu0 %v1082
  %1124 = vmatprep.subr.bf16.mxu0 0
  %1125 = vmatpush1.bf16.msra.mxu0 %v1083
  %1126 = vmatprep.subr.bf16.mxu0 0
  %1127 = vmatpush1.bf16.msra.mxu0 %v1084
  %1128 = vmatprep.subr.bf16.mxu0 0
  %1129 = vmatpush1.bf16.msra.mxu0 %v1085
  %1130 = vmatprep.subr.bf16.mxu0 0
  %1131 = vmatpush1.bf16.msra.mxu0 %v1086
  %1132 = vmatprep.subr.bf16.mxu0 0
  %1133 = vmatpush1.bf16.msra.mxu0 %v1087
  %1134 = vmatprep.subr.bf16.mxu0 0
  %1135 = vmatpush1.bf16.msra.mxu0 %v1088
  %1136 = vmatprep.subr.bf16.mxu0 0
  %1137 = vmatpush1.bf16.msra.mxu0 %v1089
  %1138 = vmatprep.mubr.bf16.mxu0 %v415
  %1139 = vmatmul.mubr.bf16.gmra.mrb[0].mxu0 %v414
  %v1140 = vpop.f32.mrb[0].mxu0
  %v1141 = vadd.f32 %v948, %v1140
  %v1142 = vpop.f32.mrb[0].mxu0
  %v1143 = vpop.f32.mrb[0].mxu0
  %v1144 = vadd.f32 %v951, %v1143
  %v1145 = vpop.f32.mrb[0].mxu0
  %1146 = vmatprep.mubr.bf16.mxu0 %v419
  %1147 = vmatmul.mubr.bf16.gmra.mrb[0].mxu0 %v418
  %v1148 = vpop.f32.mrb[0].mxu0
  %v1149 = vadd.f32 %v956, %v1148
  %v1150 = vpop.f32.mrb[0].mxu0
  %v1151 = vpop.f32.mrb[0].mxu0
  %v1152 = vadd.f32 %v959, %v1151
  %v1153 = vpop.f32.mrb[0].mxu0
  %1154 = vmatprep.mubr.bf16.mxu0 %v423
  %1155 = vmatmul.mubr.bf16.gmra.mrb[0].mxu0 %v422
  %v1156 = vpop.f32.mrb[0].mxu0
  %v1157 = vadd.f32 %v964, %v1156
  %v1158 = vpop.f32.mrb[0].mxu0
  %v1159 = vpop.f32.mrb[0].mxu0
  %v1160 = vadd.f32 %v967, %v1159
  %v1161 = vpop.f32.mrb[0].mxu0
  %1162 = vmatprep.mubr.bf16.mxu0 %v427
  %1163 = vmatmul.mubr.bf16.gmra.mrb[0].mxu0 %v426
  %v1164 = vpop.f32.mrb[0].mxu0
  %v1165 = vadd.f32 %v972, %v1164
  %v1166 = vpop.f32.mrb[0].mxu0
  %v1167 = vpop.f32.mrb[0].mxu0
  %v1168 = vadd.f32 %v975, %v1167
  %v1169 = vpop.f32.mrb[0].mxu0
  %1170 = vmatprep.mubr.bf16.mxu0 %v431
  %1171 = vmatmul.mubr.bf16.gmra.mrb[0].mxu0 %v430
  %v1172 = vpop.f32.mrb[0].mxu0
  %v1173 = vadd.f32 %v980, %v1172
  %v1174 = vpop.f32.mrb[0].mxu0
  %v1175 = vpop.f32.mrb[0].mxu0
  %v1176 = vadd.f32 %v983, %v1175
  %v1177 = vpop.f32.mrb[0].mxu0
  %1178 = vmatprep.mubr.bf16.mxu0 %v435
  %1179 = vmatmul.mubr.bf16.gmra.mrb[0].mxu0 %v434
  %v1180 = vpop.f32.mrb[0].mxu0
  %v1181 = vadd.f32 %v988, %v1180
  %v1182 = vpop.f32.mrb[0].mxu0
  %v1183 = vpop.f32.mrb[0].mxu0
  %v1184 = vadd.f32 %v991, %v1183
  %v1185 = vpop.f32.mrb[0].mxu0
  %1186 = vmatprep.mubr.bf16.mxu0 %v439
  %1187 = vmatmul.mubr.bf16.gmra.mrb[0].mxu0 %v438
  %v1188 = vpop.f32.mrb[0].mxu0
  %v1189 = vadd.f32 %v996, %v1188
  %v1190 = vpop.f32.mrb[0].mxu0
  %v1191 = vpop.f32.mrb[0].mxu0
  %v1192 = vadd.f32 %v999, %v1191
  %v1193 = vpop.f32.mrb[0].mxu0
  %1194 = vmatprep.mubr.bf16.mxu0 %v443
  %1195 = vmatmul.mubr.bf16.gmra.mrb[0].mxu0 %v442
  %v1196 = vpop.f32.mrb[0].mxu0
  %v1197 = vadd.f32 %v1004, %v1196
  %v1198 = vpop.f32.mrb[0].mxu0
  %v1199 = vpop.f32.mrb[0].mxu0
  %v1200 = vadd.f32 %v1007, %v1199
  %v1201 = vpop.f32.mrb[0].mxu0
  %1202 = vdwg.mxu0
  %1203 = vmatprep.subr.bf16.mxu0 0
  %1204 = vmatpush1.bf16.msra.mxu0 %v881
  %1205 = vmatprep.subr.bf16.mxu0 0
  %1206 = vmatpush1.bf16.msra.mxu0 %v882
  %1207 = vmatprep.subr.bf16.mxu0 0
  %1208 = vmatpush1.bf16.msra.mxu0 %v883
  %1209 = vmatprep.subr.bf16.mxu0 0
  %1210 = vmatpush1.bf16.msra.mxu0 %v884
  %1211 = vmatprep.subr.bf16.mxu0 0
  %1212 = vmatpush1.bf16.msra.mxu0 %v885
  %1213 = vmatprep.subr.bf16.mxu0 0
  %1214 = vmatpush1.bf16.msra.mxu0 %v886
  %1215 = vmatprep.subr.bf16.mxu0 0
  %1216 = vmatpush1.bf16.msra.mxu0 %v887
  %1217 = vmatprep.subr.bf16.mxu0 0
  %1218 = vmatpush1.bf16.msra.mxu0 %v888
  %1219 = vmatprep.subr.bf16.mxu0 0
  %1220 = vmatpush1.bf16.msra.mxu0 %v889
  %1221 = vmatprep.subr.bf16.mxu0 0
  %1222 = vmatpush1.bf16.msra.mxu0 %v890
  %1223 = vmatprep.subr.bf16.mxu0 0
  %1224 = vmatpush1.bf16.msra.mxu0 %v891
  %1225 = vmatprep.subr.bf16.mxu0 0
  %1226 = vmatpush1.bf16.msra.mxu0 %v892
  %1227 = vmatprep.subr.bf16.mxu0 0
  %1228 = vmatpush1.bf16.msra.mxu0 %v893
  %1229 = vmatprep.subr.bf16.mxu0 0
  %1230 = vmatpush1.bf16.msra.mxu0 %v894
  %1231 = vmatprep.subr.bf16.mxu0 0
  %1232 = vmatpush1.bf16.msra.mxu0 %v895
  %1233 = vmatprep.subr.bf16.mxu0 0
  %1234 = vmatpush1.bf16.msra.mxu0 %v896
  %1235 = vmatprep.mubr.bf16.mxu0 %v755
  %1236 = vmatmul.mubr.bf16.gmra.mrb[0].mxu0 %v754
  %v1237 = vpop.f32.mrb[0].mxu0
  %v1238 = vadd.f32 0.0, %v1237
  %v1239 = vpop.f32.mrb[0].mxu0
  %v1240 = vpop.f32.mrb[0].mxu0
  %v1241 = vadd.f32 0.0, %v1240
  %v1242 = vpop.f32.mrb[0].mxu0
  %1243 = vmatprep.mubr.bf16.mxu0 %v759
  %1244 = vmatmul.mubr.bf16.gmra.mrb[0].mxu0 %v758
  %v1245 = vpop.f32.mrb[0].mxu0
  %v1246 = vadd.f32 0.0, %v1245
  %v1247 = vpop.f32.mrb[0].mxu0
  %v1248 = vpop.f32.mrb[0].mxu0
  %v1249 = vadd.f32 0.0, %v1248
  %v1250 = vpop.f32.mrb[0].mxu0
  %1251 = vmatprep.mubr.bf16.mxu0 %v763
  %1252 = vmatmul.mubr.bf16.gmra.mrb[0].mxu0 %v762
  %v1253 = vpop.f32.mrb[0].mxu0
  %v1254 = vadd.f32 0.0, %v1253
  %v1255 = vpop.f32.mrb[0].mxu0
  %v1256 = vpop.f32.mrb[0].mxu0
  %v1257 = vadd.f32 0.0, %v1256
  %v1258 = vpop.f32.mrb[0].mxu0
  %1259 = vmatprep.mubr.bf16.mxu0 %v767
  %1260 = vmatmul.mubr.bf16.gmra.mrb[0].mxu0 %v766
  %v1261 = vpop.f32.mrb[0].mxu0
  %v1262 = vadd.f32 0.0, %v1261
  %v1263 = vpop.f32.mrb[0].mxu0
  %v1264 = vpop.f32.mrb[0].mxu0
  %v1265 = vadd.f32 0.0, %v1264
  %v1266 = vpop.f32.mrb[0].mxu0
  %1267 = vmatprep.mubr.bf16.mxu0 %v771
  %1268 = vmatmul.mubr.bf16.gmra.mrb[0].mxu0 %v770
  %v1269 = vpop.f32.mrb[0].mxu0
  %v1270 = vadd.f32 0.0, %v1269
  %v1271 = vpop.f32.mrb[0].mxu0
  %v1272 = vpop.f32.mrb[0].mxu0
  %v1273 = vadd.f32 0.0, %v1272
  %v1274 = vpop.f32.mrb[0].mxu0
  %1275 = vmatprep.mubr.bf16.mxu0 %v775
  %1276 = vmatmul.mubr.bf16.gmra.mrb[0].mxu0 %v774
  %v1277 = vpop.f32.mrb[0].mxu0
  %v1278 = vadd.f32 0.0, %v1277
  %v1279 = vpop.f32.mrb[0].mxu0
  %v1280 = vpop.f32.mrb[0].mxu0
  %v1281 = vadd.f32 0.0, %v1280
  %v1282 = vpop.f32.mrb[0].mxu0
  %1283 = vmatprep.mubr.bf16.mxu0 %v779
  %1284 = vmatmul.mubr.bf16.gmra.mrb[0].mxu0 %v778
  %v1285 = vpop.f32.mrb[0].mxu0
  %v1286 = vadd.f32 0.0, %v1285
  %v1287 = vpop.f32.mrb[0].mxu0
  %v1288 = vpop.f32.mrb[0].mxu0
  %v1289 = vadd.f32 0.0, %v1288
  %v1290 = vpop.f32.mrb[0].mxu0
  %1291 = vmatprep.mubr.bf16.mxu0 %v783
  %1292 = vmatmul.mubr.bf16.gmra.mrb[0].mxu0 %v782
  %v1293 = vpop.f32.mrb[0].mxu0
  %v1294 = vadd.f32 0.0, %v1293
  %v1295 = vpop.f32.mrb[0].mxu0
  %v1296 = vpop.f32.mrb[0].mxu0
  %v1297 = vadd.f32 0.0, %v1296
  %v1298 = vpop.f32.mrb[0].mxu0
  %1299 = vdwg.mxu0
  %1300 = vmatprep.subr.bf16.mxu0 0
  %1301 = vmatpush1.bf16.msra.mxu0 %v1074
  %1302 = vmatprep.subr.bf16.mxu0 0
  %1303 = vmatpush1.bf16.msra.mxu0 %v1075
  %1304 = vmatprep.subr.bf16.mxu0 0
  %1305 = vmatpush1.bf16.msra.mxu0 %v1076
  %1306 = vmatprep.subr.bf16.mxu0 0
  %1307 = vmatpush1.bf16.msra.mxu0 %v1077
  %1308 = vmatprep.subr.bf16.mxu0 0
  %1309 = vmatpush1.bf16.msra.mxu0 %v1078
  %1310 = vmatprep.subr.bf16.mxu0 0
  %1311 = vmatpush1.bf16.msra.mxu0 %v1079
  %1312 = vmatprep.subr.bf16.mxu0 0
  %1313 = vmatpush1.bf16.msra.mxu0 %v1080
  %1314 = vmatprep.subr.bf16.mxu0 0
  %1315 = vmatpush1.bf16.msra.mxu0 %v1081
  %1316 = vmatprep.subr.bf16.mxu0 0
  %1317 = vmatpush1.bf16.msra.mxu0 %v1082
  %1318 = vmatprep.subr.bf16.mxu0 0
  %1319 = vmatpush1.bf16.msra.mxu0 %v1083
  %1320 = vmatprep.subr.bf16.mxu0 0
  %1321 = vmatpush1.bf16.msra.mxu0 %v1084
  %1322 = vmatprep.subr.bf16.mxu0 0
  %1323 = vmatpush1.bf16.msra.mxu0 %v1085
  %1324 = vmatprep.subr.bf16.mxu0 0
  %1325 = vmatpush1.bf16.msra.mxu0 %v1086
  %1326 = vmatprep.subr.bf16.mxu0 0
  %1327 = vmatpush1.bf16.msra.mxu0 %v1087
  %1328 = vmatprep.subr.bf16.mxu0 0
  %1329 = vmatpush1.bf16.msra.mxu0 %v1088
  %1330 = vmatprep.subr.bf16.mxu0 0
  %1331 = vmatpush1.bf16.msra.mxu0 %v1089
  %1332 = vmatprep.mubr.bf16.mxu0 %v417
  %1333 = vmatmul.mubr.bf16.gmra.mrb[0].mxu0 %v416
  %v1334 = vpop.f32.mrb[0].mxu0
  %v1335 = vadd.f32 %v1238, %v1334
  %v1336 = vpop.f32.mrb[0].mxu0
  %v1337 = vpop.f32.mrb[0].mxu0
  %v1338 = vadd.f32 %v1241, %v1337
  %v1339 = vpop.f32.mrb[0].mxu0
  %1340 = vmatprep.mubr.bf16.mxu0 %v421
  %1341 = vmatmul.mubr.bf16.gmra.mrb[0].mxu0 %v420
  %v1342 = vpop.f32.mrb[0].mxu0
  %v1343 = vadd.f32 %v1246, %v1342
  %v1344 = vpop.f32.mrb[0].mxu0
  %v1345 = vpop.f32.mrb[0].mxu0
  %v1346 = vadd.f32 %v1249, %v1345
  %v1347 = vpop.f32.mrb[0].mxu0
  %1348 = vmatprep.mubr.bf16.mxu0 %v425
  %1349 = vmatmul.mubr.bf16.gmra.mrb[0].mxu0 %v424
  %v1350 = vpop.f32.mrb[0].mxu0
  %v1351 = vadd.f32 %v1254, %v1350
  %v1352 = vpop.f32.mrb[0].mxu0
  %v1353 = vpop.f32.mrb[0].mxu0
  %v1354 = vadd.f32 %v1257, %v1353
  %v1355 = vpop.f32.mrb[0].mxu0
  %1356 = vmatprep.mubr.bf16.mxu0 %v429
  %1357 = vmatmul.mubr.bf16.gmra.mrb[0].mxu0 %v428
  %v1358 = vpop.f32.mrb[0].mxu0
  %v1359 = vadd.f32 %v1262, %v1358
  %v1360 = vpop.f32.mrb[0].mxu0
  %v1361 = vpop.f32.mrb[0].mxu0
  %v1362 = vadd.f32 %v1265, %v1361
  %v1363 = vpop.f32.mrb[0].mxu0
  %1364 = vmatprep.mubr.bf16.mxu0 %v433
  %1365 = vmatmul.mubr.bf16.gmra.mrb[0].mxu0 %v432
  %v1366 = vpop.f32.mrb[0].mxu0
  %v1367 = vadd.f32 %v1270, %v1366
  %v1368 = vpop.f32.mrb[0].mxu0
  %v1369 = vpop.f32.mrb[0].mxu0
  %v1370 = vadd.f32 %v1273, %v1369
  %v1371 = vpop.f32.mrb[0].mxu0
  %1372 = vmatprep.mubr.bf16.mxu0 %v437
  %1373 = vmatmul.mubr.bf16.gmra.mrb[0].mxu0 %v436
  %v1374 = vpop.f32.mrb[0].mxu0
  %v1375 = vadd.f32 %v1278, %v1374
  %v1376 = vpop.f32.mrb[0].mxu0
  %v1377 = vpop.f32.mrb[0].mxu0
  %v1378 = vadd.f32 %v1281, %v1377
  %v1379 = vpop.f32.mrb[0].mxu0
  %1380 = vmatprep.mubr.bf16.mxu0 %v441
  %1381 = vmatmul.mubr.bf16.gmra.mrb[0].mxu0 %v440
  %v1382 = vpop.f32.mrb[0].mxu0
  %v1383 = vadd.f32 %v1286, %v1382
  %v1384 = vpop.f32.mrb[0].mxu0
  %v1385 = vpop.f32.mrb[0].mxu0
  %v1386 = vadd.f32 %v1289, %v1385
  %v1387 = vpop.f32.mrb[0].mxu0
  %1388 = vmatprep.mubr.bf16.mxu0 %v445
  %1389 = vmatmul.mubr.bf16.gmra.mrb[0].mxu0 %v444
  %v1390 = vpop.f32.mrb[0].mxu0
  %v1391 = vadd.f32 %v1294, %v1390
  %v1392 = vpop.f32.mrb[0].mxu0
  %v1393 = vpop.f32.mrb[0].mxu0
  %v1394 = vadd.f32 %v1297, %v1393
  %v1395 = vpop.f32.mrb[0].mxu0
  %1396 = vdwg.mxu0
  %v1413 = vunpack.c.l.b16 %v43
  %v1414 = vunpack.c.l.b16 %v44
  %v1415 = vunpack.c.l.b16 %v45
  %v1416 = vunpack.c.l.b16 %v46
  %v1417 = vunpack.c.l.b16 %v47
  %v1418 = vunpack.c.l.b16 %v48
  %v1419 = vunpack.c.l.b16 %v49
  %v1420 = vunpack.c.l.b16 %v50
  %v1421 = vunpack.c.l.b16 %v51
  %v1422 = vunpack.c.l.b16 %v52
  %v1423 = vunpack.c.l.b16 %v53
  %v1424 = vunpack.c.l.b16 %v54
  %v1425 = vunpack.c.l.b16 %v55
  %v1426 = vunpack.c.l.b16 %v56
  %v1427 = vunpack.c.l.b16 %v57
  %v1428 = vunpack.c.l.b16 %v58
  %v1429 = vpack.c.b16 %v1414, %v1413
  %v1430 = vpack.c.b16 %v1416, %v1415
  %v1431 = vpack.c.b16 %v1418, %v1417
  %v1432 = vpack.c.b16 %v1420, %v1419
  %v1433 = vpack.c.b16 %v1422, %v1421
  %v1434 = vpack.c.b16 %v1424, %v1423
  %v1435 = vpack.c.b16 %v1426, %v1425
  %v1436 = vpack.c.b16 %v1428, %v1427
  %1445 = vmatprep.subr.bf16.mxu0 %v753
  %1446 = vmatpush1.bf16.msra.mxu0 %v752
  %1447 = vmatprep.subr.bf16.mxu0 %v757
  %1448 = vmatpush1.bf16.msra.mxu0 %v756
  %1449 = vmatprep.subr.bf16.mxu0 %v761
  %1450 = vmatpush1.bf16.msra.mxu0 %v760
  %1451 = vmatprep.subr.bf16.mxu0 %v765
  %1452 = vmatpush1.bf16.msra.mxu0 %v764
  %1453 = vmatprep.subr.bf16.mxu0 %v769
  %1454 = vmatpush1.bf16.msra.mxu0 %v768
  %1455 = vmatprep.subr.bf16.mxu0 %v773
  %1456 = vmatpush1.bf16.msra.mxu0 %v772
  %1457 = vmatprep.subr.bf16.mxu0 %v777
  %1458 = vmatpush1.bf16.msra.mxu0 %v776
  %1459 = vmatprep.subr.bf16.mxu0 %v781
  %1460 = vmatpush1.bf16.msra.mxu0 %v780
  %1461 = vmatprep.subr.bf16.mxu0 0
  %1462 = vmatpush1.bf16.msra.mxu0 0
  %1463 = vmatprep.subr.bf16.mxu0 0
  %1464 = vmatpush1.bf16.msra.mxu0 0
  %1465 = vmatprep.subr.bf16.mxu0 0
  %1466 = vmatpush1.bf16.msra.mxu0 0
  %1467 = vmatprep.subr.bf16.mxu0 0
  %1468 = vmatpush1.bf16.msra.mxu0 0
  %1469 = vmatprep.subr.bf16.mxu0 0
  %1470 = vmatpush1.bf16.msra.mxu0 0
  %1471 = vmatprep.subr.bf16.mxu0 0
  %1472 = vmatpush1.bf16.msra.mxu0 0
  %1473 = vmatprep.subr.bf16.mxu0 0
  %1474 = vmatpush1.bf16.msra.mxu0 0
  %1475 = vmatprep.subr.bf16.mxu0 0
  %1476 = vmatpush1.bf16.msra.mxu0 0
  %1477 = vmatprep.mubr.bf16.mxu0 0
  %1478 = vmatmul.mubr.bf16.gmra.mrb[0].mxu0 %v1429
  %v1479 = vpop.f32.mrb[0].mxu0
  %v1480 = vadd.f32 0.0, %v1479
  %v1481 = vpop.f32.mrb[0].mxu0
  %v1482 = vadd.f32 0.0, %v1481
  %v1483 = vpop.f32.mrb[0].mxu0
  %v1484 = vadd.f32 0.0, %v1483
  %v1485 = vpop.f32.mrb[0].mxu0
  %v1486 = vadd.f32 0.0, %v1485
  %1487 = vmatprep.mubr.bf16.mxu0 0
  %1488 = vmatmul.mubr.bf16.gmra.mrb[0].mxu0 %v1430
  %v1489 = vpop.f32.mrb[0].mxu0
  %v1490 = vadd.f32 0.0, %v1489
  %v1491 = vpop.f32.mrb[0].mxu0
  %v1492 = vadd.f32 0.0, %v1491
  %v1493 = vpop.f32.mrb[0].mxu0
  %v1494 = vadd.f32 0.0, %v1493
  %v1495 = vpop.f32.mrb[0].mxu0
  %v1496 = vadd.f32 0.0, %v1495
  %1497 = vmatprep.mubr.bf16.mxu0 0
  %1498 = vmatmul.mubr.bf16.gmra.mrb[0].mxu0 %v1431
  %v1499 = vpop.f32.mrb[0].mxu0
  %v1500 = vadd.f32 0.0, %v1499
  %v1501 = vpop.f32.mrb[0].mxu0
  %v1502 = vadd.f32 0.0, %v1501
  %v1503 = vpop.f32.mrb[0].mxu0
  %v1504 = vadd.f32 0.0, %v1503
  %v1505 = vpop.f32.mrb[0].mxu0
  %v1506 = vadd.f32 0.0, %v1505
  %1507 = vmatprep.mubr.bf16.mxu0 0
  %1508 = vmatmul.mubr.bf16.gmra.mrb[0].mxu0 %v1432
  %v1509 = vpop.f32.mrb[0].mxu0
  %v1510 = vadd.f32 0.0, %v1509
  %v1511 = vpop.f32.mrb[0].mxu0
  %v1512 = vadd.f32 0.0, %v1511
  %v1513 = vpop.f32.mrb[0].mxu0
  %v1514 = vadd.f32 0.0, %v1513
  %v1515 = vpop.f32.mrb[0].mxu0
  %v1516 = vadd.f32 0.0, %v1515
  %1517 = vmatprep.mubr.bf16.mxu0 0
  %1518 = vmatmul.mubr.bf16.gmra.mrb[0].mxu0 %v1433
  %v1519 = vpop.f32.mrb[0].mxu0
  %v1520 = vadd.f32 0.0, %v1519
  %v1521 = vpop.f32.mrb[0].mxu0
  %v1522 = vadd.f32 0.0, %v1521
  %v1523 = vpop.f32.mrb[0].mxu0
  %v1524 = vadd.f32 0.0, %v1523
  %v1525 = vpop.f32.mrb[0].mxu0
  %v1526 = vadd.f32 0.0, %v1525
  %1527 = vmatprep.mubr.bf16.mxu0 0
  %1528 = vmatmul.mubr.bf16.gmra.mrb[0].mxu0 %v1434
  %v1529 = vpop.f32.mrb[0].mxu0
  %v1530 = vadd.f32 0.0, %v1529
  %v1531 = vpop.f32.mrb[0].mxu0
  %v1532 = vadd.f32 0.0, %v1531
  %v1533 = vpop.f32.mrb[0].mxu0
  %v1534 = vadd.f32 0.0, %v1533
  %v1535 = vpop.f32.mrb[0].mxu0
  %v1536 = vadd.f32 0.0, %v1535
  %1537 = vmatprep.mubr.bf16.mxu0 0
  %1538 = vmatmul.mubr.bf16.gmra.mrb[0].mxu0 %v1435
  %v1539 = vpop.f32.mrb[0].mxu0
  %v1540 = vadd.f32 0.0, %v1539
  %v1541 = vpop.f32.mrb[0].mxu0
  %v1542 = vadd.f32 0.0, %v1541
  %v1543 = vpop.f32.mrb[0].mxu0
  %v1544 = vadd.f32 0.0, %v1543
  %v1545 = vpop.f32.mrb[0].mxu0
  %v1546 = vadd.f32 0.0, %v1545
  %1547 = vmatprep.mubr.bf16.mxu0 0
  %1548 = vmatmul.mubr.bf16.gmra.mrb[0].mxu0 %v1436
  %v1549 = vpop.f32.mrb[0].mxu0
  %v1550 = vadd.f32 0.0, %v1549
  %v1551 = vpop.f32.mrb[0].mxu0
  %v1552 = vadd.f32 0.0, %v1551
  %v1553 = vpop.f32.mrb[0].mxu0
  %v1554 = vadd.f32 0.0, %v1553
  %v1555 = vpop.f32.mrb[0].mxu0
  %v1556 = vadd.f32 0.0, %v1555
  %1557 = vdwg.mxu0
  %1558 = vmatprep.subr.bf16.mxu0 %v755
  %1559 = vmatpush1.bf16.msra.mxu0 %v754
  %1560 = vmatprep.subr.bf16.mxu0 %v759
  %1561 = vmatpush1.bf16.msra.mxu0 %v758
  %1562 = vmatprep.subr.bf16.mxu0 %v763
  %1563 = vmatpush1.bf16.msra.mxu0 %v762
  %1564 = vmatprep.subr.bf16.mxu0 %v767
  %1565 = vmatpush1.bf16.msra.mxu0 %v766
  %1566 = vmatprep.subr.bf16.mxu0 %v771
  %1567 = vmatpush1.bf16.msra.mxu0 %v770
  %1568 = vmatprep.subr.bf16.mxu0 %v775
  %1569 = vmatpush1.bf16.msra.mxu0 %v774
  %1570 = vmatprep.subr.bf16.mxu0 %v779
  %1571 = vmatpush1.bf16.msra.mxu0 %v778
  %1572 = vmatprep.subr.bf16.mxu0 %v783
  %1573 = vmatpush1.bf16.msra.mxu0 %v782
  %1574 = vmatprep.subr.bf16.mxu0 0
  %1575 = vmatpush1.bf16.msra.mxu0 0
  %1576 = vmatprep.subr.bf16.mxu0 0
  %1577 = vmatpush1.bf16.msra.mxu0 0
  %1578 = vmatprep.subr.bf16.mxu0 0
  %1579 = vmatpush1.bf16.msra.mxu0 0
  %1580 = vmatprep.subr.bf16.mxu0 0
  %1581 = vmatpush1.bf16.msra.mxu0 0
  %1582 = vmatprep.subr.bf16.mxu0 0
  %1583 = vmatpush1.bf16.msra.mxu0 0
  %1584 = vmatprep.subr.bf16.mxu0 0
  %1585 = vmatpush1.bf16.msra.mxu0 0
  %1586 = vmatprep.subr.bf16.mxu0 0
  %1587 = vmatpush1.bf16.msra.mxu0 0
  %1588 = vmatprep.subr.bf16.mxu0 0
  %1589 = vmatpush1.bf16.msra.mxu0 0
  %1590 = vmatprep.mubr.bf16.mxu0 0
  %1591 = vmatmul.mubr.bf16.gmra.mrb[0].mxu0 %v1429
  %v1592 = vpop.f32.mrb[0].mxu0
  %v1593 = vadd.f32 0.0, %v1592
  %v1594 = vpop.f32.mrb[0].mxu0
  %v1595 = vadd.f32 0.0, %v1594
  %v1596 = vpop.f32.mrb[0].mxu0
  %v1597 = vadd.f32 0.0, %v1596
  %v1598 = vpop.f32.mrb[0].mxu0
  %v1599 = vadd.f32 0.0, %v1598
  %1600 = vmatprep.mubr.bf16.mxu0 0
  %1601 = vmatmul.mubr.bf16.gmra.mrb[0].mxu0 %v1430
  %v1602 = vpop.f32.mrb[0].mxu0
  %v1603 = vadd.f32 0.0, %v1602
  %v1604 = vpop.f32.mrb[0].mxu0
  %v1605 = vadd.f32 0.0, %v1604
  %v1606 = vpop.f32.mrb[0].mxu0
  %v1607 = vadd.f32 0.0, %v1606
  %v1608 = vpop.f32.mrb[0].mxu0
  %v1609 = vadd.f32 0.0, %v1608
  %1610 = vmatprep.mubr.bf16.mxu0 0
  %1611 = vmatmul.mubr.bf16.gmra.mrb[0].mxu0 %v1431
  %v1612 = vpop.f32.mrb[0].mxu0
  %v1613 = vadd.f32 0.0, %v1612
  %v1614 = vpop.f32.mrb[0].mxu0
  %v1615 = vadd.f32 0.0, %v1614
  %v1616 = vpop.f32.mrb[0].mxu0
  %v1617 = vadd.f32 0.0, %v1616
  %v1618 = vpop.f32.mrb[0].mxu0
  %v1619 = vadd.f32 0.0, %v1618
  %1620 = vmatprep.mubr.bf16.mxu0 0
  %1621 = vmatmul.mubr.bf16.gmra.mrb[0].mxu0 %v1432
  %v1622 = vpop.f32.mrb[0].mxu0
  %v1623 = vadd.f32 0.0, %v1622
  %v1624 = vpop.f32.mrb[0].mxu0
  %v1625 = vadd.f32 0.0, %v1624
  %v1626 = vpop.f32.mrb[0].mxu0
  %v1627 = vadd.f32 0.0, %v1626
  %v1628 = vpop.f32.mrb[0].mxu0
  %v1629 = vadd.f32 0.0, %v1628
  %1630 = vmatprep.mubr.bf16.mxu0 0
  %1631 = vmatmul.mubr.bf16.gmra.mrb[0].mxu0 %v1433
  %v1632 = vpop.f32.mrb[0].mxu0
  %v1633 = vadd.f32 0.0, %v1632
  %v1634 = vpop.f32.mrb[0].mxu0
  %v1635 = vadd.f32 0.0, %v1634
  %v1636 = vpop.f32.mrb[0].mxu0
  %v1637 = vadd.f32 0.0, %v1636
  %v1638 = vpop.f32.mrb[0].mxu0
  %v1639 = vadd.f32 0.0, %v1638
  %1640 = vmatprep.mubr.bf16.mxu0 0
  %1641 = vmatmul.mubr.bf16.gmra.mrb[0].mxu0 %v1434
  %v1642 = vpop.f32.mrb[0].mxu0
  %v1643 = vadd.f32 0.0, %v1642
  %v1644 = vpop.f32.mrb[0].mxu0
  %v1645 = vadd.f32 0.0, %v1644
  %v1646 = vpop.f32.mrb[0].mxu0
  %v1647 = vadd.f32 0.0, %v1646
  %v1648 = vpop.f32.mrb[0].mxu0
  %v1649 = vadd.f32 0.0, %v1648
  %1650 = vmatprep.mubr.bf16.mxu0 0
  %1651 = vmatmul.mubr.bf16.gmra.mrb[0].mxu0 %v1435
  %v1652 = vpop.f32.mrb[0].mxu0
  %v1653 = vadd.f32 0.0, %v1652
  %v1654 = vpop.f32.mrb[0].mxu0
  %v1655 = vadd.f32 0.0, %v1654
  %v1656 = vpop.f32.mrb[0].mxu0
  %v1657 = vadd.f32 0.0, %v1656
  %v1658 = vpop.f32.mrb[0].mxu0
  %v1659 = vadd.f32 0.0, %v1658
  %1660 = vmatprep.mubr.bf16.mxu0 0
  %1661 = vmatmul.mubr.bf16.gmra.mrb[0].mxu0 %v1436
  %v1662 = vpop.f32.mrb[0].mxu0
  %v1663 = vadd.f32 0.0, %v1662
  %v1664 = vpop.f32.mrb[0].mxu0
  %v1665 = vadd.f32 0.0, %v1664
  %v1666 = vpop.f32.mrb[0].mxu0
  %v1667 = vadd.f32 0.0, %v1666
  %v1668 = vpop.f32.mrb[0].mxu0
  %v1669 = vadd.f32 0.0, %v1668
  %1670 = vdwg.mxu0
  %v1671 = vsub.f32 %v1480, %v223
  %v1672 = vsub.f32 %v1482, %v225
  %v1673 = vsub.f32 %v1593, %v336
  %v1674 = vsub.f32 %v1595, %v338
  %v1675 = vsub.f32 %v1484, %v227
  %v1676 = vsub.f32 %v1486, %v229
  %v1677 = vsub.f32 %v1597, %v340
  %v1678 = vsub.f32 %v1599, %v342
  %v1679 = vsub.f32 %v1490, %v233
  %v1680 = vsub.f32 %v1492, %v235
  %v1681 = vsub.f32 %v1603, %v346
  %v1682 = vsub.f32 %v1605, %v348
  %v1683 = vsub.f32 %v1494, %v237
  %v1684 = vsub.f32 %v1496, %v239
  %v1685 = vsub.f32 %v1607, %v350
  %v1686 = vsub.f32 %v1609, %v352
  %v1687 = vsub.f32 %v1500, %v243
  %v1688 = vsub.f32 %v1502, %v245
  %v1689 = vsub.f32 %v1613, %v356
  %v1690 = vsub.f32 %v1615, %v358
  %v1691 = vsub.f32 %v1504, %v247
  %v1692 = vsub.f32 %v1506, %v249
  %v1693 = vsub.f32 %v1617, %v360
  %v1694 = vsub.f32 %v1619, %v362
  %v1695 = vsub.f32 %v1510, %v253
  %v1696 = vsub.f32 %v1512, %v255
  %v1697 = vsub.f32 %v1623, %v366
  %v1698 = vsub.f32 %v1625, %v368
  %v1699 = vsub.f32 %v1514, %v257
  %v1700 = vsub.f32 %v1516, %v259
  %v1701 = vsub.f32 %v1627, %v370
  %v1702 = vsub.f32 %v1629, %v372
  %v1703 = vsub.f32 %v1520, %v263
  %v1704 = vsub.f32 %v1522, %v265
  %v1705 = vsub.f32 %v1633, %v376
  %v1706 = vsub.f32 %v1635, %v378
  %v1707 = vsub.f32 %v1524, %v267
  %v1708 = vsub.f32 %v1526, %v269
  %v1709 = vsub.f32 %v1637, %v380
  %v1710 = vsub.f32 %v1639, %v382
  %v1711 = vsub.f32 %v1530, %v273
  %v1712 = vsub.f32 %v1532, %v275
  %v1713 = vsub.f32 %v1643, %v386
  %v1714 = vsub.f32 %v1645, %v388
  %v1715 = vsub.f32 %v1534, %v277
  %v1716 = vsub.f32 %v1536, %v279
  %v1717 = vsub.f32 %v1647, %v390
  %v1718 = vsub.f32 %v1649, %v392
  %v1719 = vsub.f32 %v1540, %v283
  %v1720 = vsub.f32 %v1542, %v285
  %v1721 = vsub.f32 %v1653, %v396
  %v1722 = vsub.f32 %v1655, %v398
  %v1723 = vsub.f32 %v1544, %v287
  %v1724 = vsub.f32 %v1546, %v289
  %v1725 = vsub.f32 %v1657, %v400
  %v1726 = vsub.f32 %v1659, %v402
  %v1727 = vsub.f32 %v1550, %v293
  %v1728 = vsub.f32 %v1552, %v295
  %v1729 = vsub.f32 %v1663, %v406
  %v1730 = vsub.f32 %v1665, %v408
  %v1731 = vsub.f32 %v1554, %v297
  %v1732 = vsub.f32 %v1556, %v299
  %v1733 = vsub.f32 %v1667, %v410
  %v1734 = vsub.f32 %v1669, %v412
  %v1735 = vpack.c.bf16 %v1675, %v1671
  %v1736 = vpack.c.bf16 %v1676, %v1672
  %v1737 = vpack.c.bf16 %v1677, %v1673
  %v1738 = vpack.c.bf16 %v1678, %v1674
  %v1739 = vpack.c.bf16 %v1683, %v1679
  %v1740 = vpack.c.bf16 %v1684, %v1680
  %v1741 = vpack.c.bf16 %v1685, %v1681
  %v1742 = vpack.c.bf16 %v1686, %v1682
  %v1743 = vpack.c.bf16 %v1691, %v1687
  %v1744 = vpack.c.bf16 %v1692, %v1688
  %v1745 = vpack.c.bf16 %v1693, %v1689
  %v1746 = vpack.c.bf16 %v1694, %v1690
  %v1747 = vpack.c.bf16 %v1699, %v1695
  %v1748 = vpack.c.bf16 %v1700, %v1696
  %v1749 = vpack.c.bf16 %v1701, %v1697
  %v1750 = vpack.c.bf16 %v1702, %v1698
  %v1751 = vpack.c.bf16 %v1707, %v1703
  %v1752 = vpack.c.bf16 %v1708, %v1704
  %v1753 = vpack.c.bf16 %v1709, %v1705
  %v1754 = vpack.c.bf16 %v1710, %v1706
  %v1755 = vpack.c.bf16 %v1715, %v1711
  %v1756 = vpack.c.bf16 %v1716, %v1712
  %v1757 = vpack.c.bf16 %v1717, %v1713
  %v1758 = vpack.c.bf16 %v1718, %v1714
  %v1759 = vpack.c.bf16 %v1723, %v1719
  %v1760 = vpack.c.bf16 %v1724, %v1720
  %v1761 = vpack.c.bf16 %v1725, %v1721
  %v1762 = vpack.c.bf16 %v1726, %v1722
  %v1763 = vpack.c.bf16 %v1731, %v1727
  %v1764 = vpack.c.bf16 %v1732, %v1728
  %v1765 = vpack.c.bf16 %v1733, %v1729
  %v1766 = vpack.c.bf16 %v1734, %v1730
  %s1767 = scalar_lea.vmem %s3, 256
  %v1768 = vld [vmem:[%s1767] sm:$0xf]
  %v1769 = vld [vmem:[%s1767 + $0x4] sm:$0xf]
  %v1770 = vld [vmem:[%s1767 + $0x8] sm:$0xf]
  %v1771 = vld [vmem:[%s1767 + $0xc] sm:$0xf]
  %v1772 = vld [vmem:[%s1767 + $0x10] sm:$0xf]
  %v1773 = vld [vmem:[%s1767 + $0x14] sm:$0xf]
  %v1774 = vld [vmem:[%s1767 + $0x18] sm:$0xf]
  %v1775 = vld [vmem:[%s1767 + $0x1c] sm:$0xf]
  %v1776 = vld [vmem:[%s1767 + $0x20] sm:$0xf]
  %v1777 = vld [vmem:[%s1767 + $0x24] sm:$0xf]
  %v1778 = vld [vmem:[%s1767 + $0x28] sm:$0xf]
  %v1779 = vld [vmem:[%s1767 + $0x2c] sm:$0xf]
  %v1780 = vld [vmem:[%s1767 + $0x30] sm:$0xf]
  %v1781 = vld [vmem:[%s1767 + $0x34] sm:$0xf]
  %v1782 = vld [vmem:[%s1767 + $0x38] sm:$0xf]
  %v1783 = vld [vmem:[%s1767 + $0x3c] sm:$0xf]
  %v1784 = vld [vmem:[%s1767 + $0x40] sm:$0xf]
  %v1785 = vld [vmem:[%s1767 + $0x44] sm:$0xf]
  %v1786 = vld [vmem:[%s1767 + $0x48] sm:$0xf]
  %v1787 = vld [vmem:[%s1767 + $0x4c] sm:$0xf]
  %v1788 = vld [vmem:[%s1767 + $0x50] sm:$0xf]
  %v1789 = vld [vmem:[%s1767 + $0x54] sm:$0xf]
  %v1790 = vld [vmem:[%s1767 + $0x58] sm:$0xf]
  %v1791 = vld [vmem:[%s1767 + $0x5c] sm:$0xf]
  %v1792 = vld [vmem:[%s1767 + $0x60] sm:$0xf]
  %v1793 = vld [vmem:[%s1767 + $0x64] sm:$0xf]
  %v1794 = vld [vmem:[%s1767 + $0x68] sm:$0xf]
  %v1795 = vld [vmem:[%s1767 + $0x6c] sm:$0xf]
  %v1796 = vld [vmem:[%s1767 + $0x70] sm:$0xf]
  %v1797 = vld [vmem:[%s1767 + $0x74] sm:$0xf]
  %v1798 = vld [vmem:[%s1767 + $0x78] sm:$0xf]
  %v1799 = vld [vmem:[%s1767 + $0x7c] sm:$0xf]
  %v1832 = vunpack.c.l.b16 %v1768
  %v1833 = vunpack.c.l.b16 %v1769
  %v1834 = vunpack.c.l.b16 %v1770
  %v1835 = vunpack.c.l.b16 %v1771
  %v1836 = vunpack.c.l.b16 %v1772
  %v1837 = vunpack.c.l.b16 %v1773
  %v1838 = vunpack.c.l.b16 %v1774
  %v1839 = vunpack.c.l.b16 %v1775
  %v1840 = vunpack.c.l.b16 %v1776
  %v1841 = vunpack.c.l.b16 %v1777
  %v1842 = vunpack.c.l.b16 %v1778
  %v1843 = vunpack.c.l.b16 %v1779
  %v1844 = vunpack.c.l.b16 %v1780
  %v1845 = vunpack.c.l.b16 %v1781
  %v1846 = vunpack.c.l.b16 %v1782
  %v1847 = vunpack.c.l.b16 %v1783
  %v1848 = vunpack.c.l.b16 %v1784
  %v1849 = vunpack.c.l.b16 %v1785
  %v1850 = vunpack.c.l.b16 %v1786
  %v1851 = vunpack.c.l.b16 %v1787
  %v1852 = vunpack.c.l.b16 %v1788
  %v1853 = vunpack.c.l.b16 %v1789
  %v1854 = vunpack.c.l.b16 %v1790
  %v1855 = vunpack.c.l.b16 %v1791
  %v1856 = vunpack.c.l.b16 %v1792
  %v1857 = vunpack.c.l.b16 %v1793
  %v1858 = vunpack.c.l.b16 %v1794
  %v1859 = vunpack.c.l.b16 %v1795
  %v1860 = vunpack.c.l.b16 %v1796
  %v1861 = vunpack.c.l.b16 %v1797
  %v1862 = vunpack.c.l.b16 %v1798
  %v1863 = vunpack.c.l.b16 %v1799
  %v1864 = vpack.c.b16 %v1833, %v1832
  %v1865 = vpack.c.b16 %v1835, %v1834
  %v1866 = vpack.c.b16 %v1837, %v1836
  %v1867 = vpack.c.b16 %v1839, %v1838
  %v1868 = vpack.c.b16 %v1841, %v1840
  %v1869 = vpack.c.b16 %v1843, %v1842
  %v1870 = vpack.c.b16 %v1845, %v1844
  %v1871 = vpack.c.b16 %v1847, %v1846
  %v1872 = vpack.c.b16 %v1849, %v1848
  %v1873 = vpack.c.b16 %v1851, %v1850
  %v1874 = vpack.c.b16 %v1853, %v1852
  %v1875 = vpack.c.b16 %v1855, %v1854
  %v1876 = vpack.c.b16 %v1857, %v1856
  %v1877 = vpack.c.b16 %v1859, %v1858
  %v1878 = vpack.c.b16 %v1861, %v1860
  %v1879 = vpack.c.b16 %v1863, %v1862
  %1896 = vmatprep.subr.bf16.mxu0 0
  %1897 = vmatpush1.bf16.msra.mxu0 %v1864
  %1898 = vmatprep.subr.bf16.mxu0 0
  %1899 = vmatpush1.bf16.msra.mxu0 %v1865
  %1900 = vmatprep.subr.bf16.mxu0 0
  %1901 = vmatpush1.bf16.msra.mxu0 %v1866
  %1902 = vmatprep.subr.bf16.mxu0 0
  %1903 = vmatpush1.bf16.msra.mxu0 %v1867
  %1904 = vmatprep.subr.bf16.mxu0 0
  %1905 = vmatpush1.bf16.msra.mxu0 %v1868
  %1906 = vmatprep.subr.bf16.mxu0 0
  %1907 = vmatpush1.bf16.msra.mxu0 %v1869
  %1908 = vmatprep.subr.bf16.mxu0 0
  %1909 = vmatpush1.bf16.msra.mxu0 %v1870
  %1910 = vmatprep.subr.bf16.mxu0 0
  %1911 = vmatpush1.bf16.msra.mxu0 %v1871
  %1912 = vmatprep.subr.bf16.mxu0 0
  %1913 = vmatpush1.bf16.msra.mxu0 %v1872
  %1914 = vmatprep.subr.bf16.mxu0 0
  %1915 = vmatpush1.bf16.msra.mxu0 %v1873
  %1916 = vmatprep.subr.bf16.mxu0 0
  %1917 = vmatpush1.bf16.msra.mxu0 %v1874
  %1918 = vmatprep.subr.bf16.mxu0 0
  %1919 = vmatpush1.bf16.msra.mxu0 %v1875
  %1920 = vmatprep.subr.bf16.mxu0 0
  %1921 = vmatpush1.bf16.msra.mxu0 %v1876
  %1922 = vmatprep.subr.bf16.mxu0 0
  %1923 = vmatpush1.bf16.msra.mxu0 %v1877
  %1924 = vmatprep.subr.bf16.mxu0 0
  %1925 = vmatpush1.bf16.msra.mxu0 %v1878
  %1926 = vmatprep.subr.bf16.mxu0 0
  %1927 = vmatpush1.bf16.msra.mxu0 %v1879
  %1928 = vmatprep.mubr.bf16.mxu0 %v1736
  %1929 = vmatmul.mubr.bf16.gmra.mrb[0].mxu0 %v1735
  %v1930 = vpop.f32.mrb[0].mxu0
  %v1931 = vadd.f32 0.0, %v1930
  %v1932 = vpop.f32.mrb[0].mxu0
  %v1933 = vpop.f32.mrb[0].mxu0
  %v1934 = vadd.f32 0.0, %v1933
  %v1935 = vpop.f32.mrb[0].mxu0
  %1936 = vmatprep.mubr.bf16.mxu0 %v1740
  %1937 = vmatmul.mubr.bf16.gmra.mrb[0].mxu0 %v1739
  %v1938 = vpop.f32.mrb[0].mxu0
  %v1939 = vadd.f32 0.0, %v1938
  %v1940 = vpop.f32.mrb[0].mxu0
  %v1941 = vpop.f32.mrb[0].mxu0
  %v1942 = vadd.f32 0.0, %v1941
  %v1943 = vpop.f32.mrb[0].mxu0
  %1944 = vmatprep.mubr.bf16.mxu0 %v1744
  %1945 = vmatmul.mubr.bf16.gmra.mrb[0].mxu0 %v1743
  %v1946 = vpop.f32.mrb[0].mxu0
  %v1947 = vadd.f32 0.0, %v1946
  %v1948 = vpop.f32.mrb[0].mxu0
  %v1949 = vpop.f32.mrb[0].mxu0
  %v1950 = vadd.f32 0.0, %v1949
  %v1951 = vpop.f32.mrb[0].mxu0
  %1952 = vmatprep.mubr.bf16.mxu0 %v1748
  %1953 = vmatmul.mubr.bf16.gmra.mrb[0].mxu0 %v1747
  %v1954 = vpop.f32.mrb[0].mxu0
  %v1955 = vadd.f32 0.0, %v1954
  %v1956 = vpop.f32.mrb[0].mxu0
  %v1957 = vpop.f32.mrb[0].mxu0
  %v1958 = vadd.f32 0.0, %v1957
  %v1959 = vpop.f32.mrb[0].mxu0
  %1960 = vmatprep.mubr.bf16.mxu0 %v1752
  %1961 = vmatmul.mubr.bf16.gmra.mrb[0].mxu0 %v1751
  %v1962 = vpop.f32.mrb[0].mxu0
  %v1963 = vadd.f32 0.0, %v1962
  %v1964 = vpop.f32.mrb[0].mxu0
  %v1965 = vpop.f32.mrb[0].mxu0
  %v1966 = vadd.f32 0.0, %v1965
  %v1967 = vpop.f32.mrb[0].mxu0
  %1968 = vmatprep.mubr.bf16.mxu0 %v1756
  %1969 = vmatmul.mubr.bf16.gmra.mrb[0].mxu0 %v1755
  %v1970 = vpop.f32.mrb[0].mxu0
  %v1971 = vadd.f32 0.0, %v1970
  %v1972 = vpop.f32.mrb[0].mxu0
  %v1973 = vpop.f32.mrb[0].mxu0
  %v1974 = vadd.f32 0.0, %v1973
  %v1975 = vpop.f32.mrb[0].mxu0
  %1976 = vmatprep.mubr.bf16.mxu0 %v1760
  %1977 = vmatmul.mubr.bf16.gmra.mrb[0].mxu0 %v1759
  %v1978 = vpop.f32.mrb[0].mxu0
  %v1979 = vadd.f32 0.0, %v1978
  %v1980 = vpop.f32.mrb[0].mxu0
  %v1981 = vpop.f32.mrb[0].mxu0
  %v1982 = vadd.f32 0.0, %v1981
  %v1983 = vpop.f32.mrb[0].mxu0
  %1984 = vmatprep.mubr.bf16.mxu0 %v1764
  %1985 = vmatmul.mubr.bf16.gmra.mrb[0].mxu0 %v1763
  %v1986 = vpop.f32.mrb[0].mxu0
  %v1987 = vadd.f32 0.0, %v1986
  %v1988 = vpop.f32.mrb[0].mxu0
  %v1989 = vpop.f32.mrb[0].mxu0
  %v1990 = vadd.f32 0.0, %v1989
  %v1991 = vpop.f32.mrb[0].mxu0
  %1992 = vdwg.mxu0
  %v1993 = vadd.f32 %v1141, %v1931
  %v1994 = vadd.f32 %v1144, %v1934
  %v1995 = vadd.f32 %v1149, %v1939
  %v1996 = vadd.f32 %v1152, %v1942
  %v1997 = vadd.f32 %v1157, %v1947
  %v1998 = vadd.f32 %v1160, %v1950
  %v1999 = vadd.f32 %v1165, %v1955
  %v2000 = vadd.f32 %v1168, %v1958
  %v2001 = vadd.f32 %v1173, %v1963
  %v2002 = vadd.f32 %v1176, %v1966
  %v2003 = vadd.f32 %v1181, %v1971
  %v2004 = vadd.f32 %v1184, %v1974
  %v2005 = vadd.f32 %v1189, %v1979
  %v2006 = vadd.f32 %v1192, %v1982
  %v2007 = vadd.f32 %v1197, %v1987
  %v2008 = vadd.f32 %v1200, %v1990
  %2009 = vmatprep.subr.bf16.mxu0 0
  %2010 = vmatpush1.bf16.msra.mxu0 %v1864
  %2011 = vmatprep.subr.bf16.mxu0 0
  %2012 = vmatpush1.bf16.msra.mxu0 %v1865
  %2013 = vmatprep.subr.bf16.mxu0 0
  %2014 = vmatpush1.bf16.msra.mxu0 %v1866
  %2015 = vmatprep.subr.bf16.mxu0 0
  %2016 = vmatpush1.bf16.msra.mxu0 %v1867
  %2017 = vmatprep.subr.bf16.mxu0 0
  %2018 = vmatpush1.bf16.msra.mxu0 %v1868
  %2019 = vmatprep.subr.bf16.mxu0 0
  %2020 = vmatpush1.bf16.msra.mxu0 %v1869
  %2021 = vmatprep.subr.bf16.mxu0 0
  %2022 = vmatpush1.bf16.msra.mxu0 %v1870
  %2023 = vmatprep.subr.bf16.mxu0 0
  %2024 = vmatpush1.bf16.msra.mxu0 %v1871
  %2025 = vmatprep.subr.bf16.mxu0 0
  %2026 = vmatpush1.bf16.msra.mxu0 %v1872
  %2027 = vmatprep.subr.bf16.mxu0 0
  %2028 = vmatpush1.bf16.msra.mxu0 %v1873
  %2029 = vmatprep.subr.bf16.mxu0 0
  %2030 = vmatpush1.bf16.msra.mxu0 %v1874
  %2031 = vmatprep.subr.bf16.mxu0 0
  %2032 = vmatpush1.bf16.msra.mxu0 %v1875
  %2033 = vmatprep.subr.bf16.mxu0 0
  %2034 = vmatpush1.bf16.msra.mxu0 %v1876
  %2035 = vmatprep.subr.bf16.mxu0 0
  %2036 = vmatpush1.bf16.msra.mxu0 %v1877
  %2037 = vmatprep.subr.bf16.mxu0 0
  %2038 = vmatpush1.bf16.msra.mxu0 %v1878
  %2039 = vmatprep.subr.bf16.mxu0 0
  %2040 = vmatpush1.bf16.msra.mxu0 %v1879
  %2041 = vmatprep.mubr.bf16.mxu0 %v1738
  %2042 = vmatmul.mubr.bf16.gmra.mrb[0].mxu0 %v1737
  %v2043 = vpop.f32.mrb[0].mxu0
  %v2044 = vadd.f32 0.0, %v2043
  %v2045 = vpop.f32.mrb[0].mxu0
  %v2046 = vpop.f32.mrb[0].mxu0
  %v2047 = vadd.f32 0.0, %v2046
  %v2048 = vpop.f32.mrb[0].mxu0
  %2049 = vmatprep.mubr.bf16.mxu0 %v1742
  %2050 = vmatmul.mubr.bf16.gmra.mrb[0].mxu0 %v1741
  %v2051 = vpop.f32.mrb[0].mxu0
  %v2052 = vadd.f32 0.0, %v2051
  %v2053 = vpop.f32.mrb[0].mxu0
  %v2054 = vpop.f32.mrb[0].mxu0
  %v2055 = vadd.f32 0.0, %v2054
  %v2056 = vpop.f32.mrb[0].mxu0
  %2057 = vmatprep.mubr.bf16.mxu0 %v1746
  %2058 = vmatmul.mubr.bf16.gmra.mrb[0].mxu0 %v1745
  %v2059 = vpop.f32.mrb[0].mxu0
  %v2060 = vadd.f32 0.0, %v2059
  %v2061 = vpop.f32.mrb[0].mxu0
  %v2062 = vpop.f32.mrb[0].mxu0
  %v2063 = vadd.f32 0.0, %v2062
  %v2064 = vpop.f32.mrb[0].mxu0
  %2065 = vmatprep.mubr.bf16.mxu0 %v1750
  %2066 = vmatmul.mubr.bf16.gmra.mrb[0].mxu0 %v1749
  %v2067 = vpop.f32.mrb[0].mxu0
  %v2068 = vadd.f32 0.0, %v2067
  %v2069 = vpop.f32.mrb[0].mxu0
  %v2070 = vpop.f32.mrb[0].mxu0
  %v2071 = vadd.f32 0.0, %v2070
  %v2072 = vpop.f32.mrb[0].mxu0
  %2073 = vmatprep.mubr.bf16.mxu0 %v1754
  %2074 = vmatmul.mubr.bf16.gmra.mrb[0].mxu0 %v1753
  %v2075 = vpop.f32.mrb[0].mxu0
  %v2076 = vadd.f32 0.0, %v2075
  %v2077 = vpop.f32.mrb[0].mxu0
  %v2078 = vpop.f32.mrb[0].mxu0
  %v2079 = vadd.f32 0.0, %v2078
  %v2080 = vpop.f32.mrb[0].mxu0
  %2081 = vmatprep.mubr.bf16.mxu0 %v1758
  %2082 = vmatmul.mubr.bf16.gmra.mrb[0].mxu0 %v1757
  %v2083 = vpop.f32.mrb[0].mxu0
  %v2084 = vadd.f32 0.0, %v2083
  %v2085 = vpop.f32.mrb[0].mxu0
  %v2086 = vpop.f32.mrb[0].mxu0
  %v2087 = vadd.f32 0.0, %v2086
  %v2088 = vpop.f32.mrb[0].mxu0
  %2089 = vmatprep.mubr.bf16.mxu0 %v1762
  %2090 = vmatmul.mubr.bf16.gmra.mrb[0].mxu0 %v1761
  %v2091 = vpop.f32.mrb[0].mxu0
  %v2092 = vadd.f32 0.0, %v2091
  %v2093 = vpop.f32.mrb[0].mxu0
  %v2094 = vpop.f32.mrb[0].mxu0
  %v2095 = vadd.f32 0.0, %v2094
  %v2096 = vpop.f32.mrb[0].mxu0
  %2097 = vmatprep.mubr.bf16.mxu0 %v1766
  %2098 = vmatmul.mubr.bf16.gmra.mrb[0].mxu0 %v1765
  %v2099 = vpop.f32.mrb[0].mxu0
  %v2100 = vadd.f32 0.0, %v2099
  %v2101 = vpop.f32.mrb[0].mxu0
  %v2102 = vpop.f32.mrb[0].mxu0
  %v2103 = vadd.f32 0.0, %v2102
  %v2104 = vpop.f32.mrb[0].mxu0
  %2105 = vdwg.mxu0
  %v2106 = vadd.f32 %v1335, %v2044
  %v2107 = vadd.f32 %v1338, %v2047
  %v2108 = vadd.f32 %v1343, %v2052
  %v2109 = vadd.f32 %v1346, %v2055
  %v2110 = vadd.f32 %v1351, %v2060
  %v2111 = vadd.f32 %v1354, %v2063
  %v2112 = vadd.f32 %v1359, %v2068
  %v2113 = vadd.f32 %v1362, %v2071
  %v2114 = vadd.f32 %v1367, %v2076
  %v2115 = vadd.f32 %v1370, %v2079
  %v2116 = vadd.f32 %v1375, %v2084
  %v2117 = vadd.f32 %v1378, %v2087
  %v2118 = vadd.f32 %v1383, %v2092
  %v2119 = vadd.f32 %v1386, %v2095
  %v2120 = vadd.f32 %v1391, %v2100
  %v2121 = vadd.f32 %v1394, %v2103
  %v2122 = vld [vmem:[%s4] sm:$0x1]
  %v2124 = vlaneseq
  %v2125 = vshrl.u32 %v2124, 7
  %v2126 = vsub.s32 0, %v2125
  %v2127 = vrot.slane %v2122, %v2126
  %v2129 = vadd.f32 %v1993, %v2127
  %v2130 = vadd.f32 %v1994, %v2127
  %v2131 = vadd.f32 %v1995, %v2127
  %v2132 = vadd.f32 %v1996, %v2127
  %v2133 = vadd.f32 %v1997, %v2127
  %v2134 = vadd.f32 %v1998, %v2127
  %v2135 = vadd.f32 %v1999, %v2127
  %v2136 = vadd.f32 %v2000, %v2127
  %v2137 = vadd.f32 %v2001, %v2127
  %v2138 = vadd.f32 %v2002, %v2127
  %v2139 = vadd.f32 %v2003, %v2127
  %v2140 = vadd.f32 %v2004, %v2127
  %v2141 = vadd.f32 %v2005, %v2127
  %v2142 = vadd.f32 %v2006, %v2127
  %v2143 = vadd.f32 %v2007, %v2127
  %v2144 = vadd.f32 %v2008, %v2127
  %v2145 = vmax.f32 %v2129, 0.0
  %v2146 = vmax.f32 %v2130, 0.0
  %v2147 = vmax.f32 %v2131, 0.0
  %v2148 = vmax.f32 %v2132, 0.0
  %v2149 = vmax.f32 %v2133, 0.0
  %v2150 = vmax.f32 %v2134, 0.0
  %v2151 = vmax.f32 %v2135, 0.0
  %v2152 = vmax.f32 %v2136, 0.0
  %v2153 = vmax.f32 %v2137, 0.0
  %v2154 = vmax.f32 %v2138, 0.0
  %v2155 = vmax.f32 %v2139, 0.0
  %v2156 = vmax.f32 %v2140, 0.0
  %v2157 = vmax.f32 %v2141, 0.0
  %v2158 = vmax.f32 %v2142, 0.0
  %v2159 = vmax.f32 %v2143, 0.0
  %v2160 = vmax.f32 %v2144, 0.0
  %v2161 = vadd.f32 %v2106, %v2127
  %v2162 = vadd.f32 %v2107, %v2127
  %v2163 = vadd.f32 %v2108, %v2127
  %v2164 = vadd.f32 %v2109, %v2127
  %v2165 = vadd.f32 %v2110, %v2127
  %v2166 = vadd.f32 %v2111, %v2127
  %v2167 = vadd.f32 %v2112, %v2127
  %v2168 = vadd.f32 %v2113, %v2127
  %v2169 = vadd.f32 %v2114, %v2127
  %v2170 = vadd.f32 %v2115, %v2127
  %v2171 = vadd.f32 %v2116, %v2127
  %v2172 = vadd.f32 %v2117, %v2127
  %v2173 = vadd.f32 %v2118, %v2127
  %v2174 = vadd.f32 %v2119, %v2127
  %v2175 = vadd.f32 %v2120, %v2127
  %v2176 = vadd.f32 %v2121, %v2127
  %v2177 = vmax.f32 %v2161, 0.0
  %v2178 = vmax.f32 %v2162, 0.0
  %v2179 = vmax.f32 %v2163, 0.0
  %v2180 = vmax.f32 %v2164, 0.0
  %v2181 = vmax.f32 %v2165, 0.0
  %v2182 = vmax.f32 %v2166, 0.0
  %v2183 = vmax.f32 %v2167, 0.0
  %v2184 = vmax.f32 %v2168, 0.0
  %v2185 = vmax.f32 %v2169, 0.0
  %v2186 = vmax.f32 %v2170, 0.0
  %v2187 = vmax.f32 %v2171, 0.0
  %v2188 = vmax.f32 %v2172, 0.0
  %v2189 = vmax.f32 %v2173, 0.0
  %v2190 = vmax.f32 %v2174, 0.0
  %v2191 = vmax.f32 %v2175, 0.0
  %v2192 = vmax.f32 %v2176, 0.0
  %v2193 = vpack.c.bf16 %v2146, %v2145
  %v2194 = vpack.c.bf16 %v2178, %v2177
  %v2195 = vpack.c.bf16 %v2148, %v2147
  %v2196 = vpack.c.bf16 %v2180, %v2179
  %v2197 = vpack.c.bf16 %v2150, %v2149
  %v2198 = vpack.c.bf16 %v2182, %v2181
  %v2199 = vpack.c.bf16 %v2152, %v2151
  %v2200 = vpack.c.bf16 %v2184, %v2183
  %v2201 = vpack.c.bf16 %v2154, %v2153
  %v2202 = vpack.c.bf16 %v2186, %v2185
  %v2203 = vpack.c.bf16 %v2156, %v2155
  %v2204 = vpack.c.bf16 %v2188, %v2187
  %v2205 = vpack.c.bf16 %v2158, %v2157
  %v2206 = vpack.c.bf16 %v2190, %v2189
  %v2207 = vpack.c.bf16 %v2160, %v2159
  %v2208 = vpack.c.bf16 %v2192, %v2191
  %v2209 = vld [vmem:[%s5] sm:$0xf]
  %v2210 = vld [vmem:[%s5 + $0x4] sm:$0xf]
  %v2211 = vld [vmem:[%s5 + $0x8] sm:$0xf]
  %v2212 = vld [vmem:[%s5 + $0xc] sm:$0xf]
  %v2213 = vld [vmem:[%s5 + $0x10] sm:$0xf]
  %v2214 = vld [vmem:[%s5 + $0x14] sm:$0xf]
  %v2215 = vld [vmem:[%s5 + $0x18] sm:$0xf]
  %v2216 = vld [vmem:[%s5 + $0x1c] sm:$0xf]
  %v2217 = vld [vmem:[%s5 + $0x20] sm:$0xf]
  %v2218 = vld [vmem:[%s5 + $0x24] sm:$0xf]
  %v2219 = vld [vmem:[%s5 + $0x28] sm:$0xf]
  %v2220 = vld [vmem:[%s5 + $0x2c] sm:$0xf]
  %v2221 = vld [vmem:[%s5 + $0x30] sm:$0xf]
  %v2222 = vld [vmem:[%s5 + $0x34] sm:$0xf]
  %v2223 = vld [vmem:[%s5 + $0x38] sm:$0xf]
  %v2224 = vld [vmem:[%s5 + $0x3c] sm:$0xf]
  %2225 = vmatprep.subr.bf16.mxu0 %v2194
  %2226 = vmatpush1.bf16.msra.mxu0 %v2193
  %2227 = vmatprep.subr.bf16.mxu0 %v2196
  %2228 = vmatpush1.bf16.msra.mxu0 %v2195
  %2229 = vmatprep.subr.bf16.mxu0 %v2198
  %2230 = vmatpush1.bf16.msra.mxu0 %v2197
  %2231 = vmatprep.subr.bf16.mxu0 %v2200
  %2232 = vmatpush1.bf16.msra.mxu0 %v2199
  %2233 = vmatprep.subr.bf16.mxu0 %v2202
  %2234 = vmatpush1.bf16.msra.mxu0 %v2201
  %2235 = vmatprep.subr.bf16.mxu0 %v2204
  %2236 = vmatpush1.bf16.msra.mxu0 %v2203
  %2237 = vmatprep.subr.bf16.mxu0 %v2206
  %2238 = vmatpush1.bf16.msra.mxu0 %v2205
  %2239 = vmatprep.subr.bf16.mxu0 %v2208
  %2240 = vmatpush1.bf16.msra.mxu0 %v2207
  %2241 = vmatprep.subr.bf16.mxu0 0
  %2242 = vmatpush1.bf16.msra.mxu0 0
  %2243 = vmatprep.subr.bf16.mxu0 0
  %2244 = vmatpush1.bf16.msra.mxu0 0
  %2245 = vmatprep.subr.bf16.mxu0 0
  %2246 = vmatpush1.bf16.msra.mxu0 0
  %2247 = vmatprep.subr.bf16.mxu0 0
  %2248 = vmatpush1.bf16.msra.mxu0 0
  %2249 = vmatprep.subr.bf16.mxu0 0
  %2250 = vmatpush1.bf16.msra.mxu0 0
  %2251 = vmatprep.subr.bf16.mxu0 0
  %2252 = vmatpush1.bf16.msra.mxu0 0
  %2253 = vmatprep.subr.bf16.mxu0 0
  %2254 = vmatpush1.bf16.msra.mxu0 0
  %2255 = vmatprep.subr.bf16.mxu0 0
  %2256 = vmatpush1.bf16.msra.mxu0 0
  %2257 = vmatprep.mubr.bf16.mxu0 0
  %2258 = vmatmul.mubr.bf16.gmra.mrb[0].mxu0 %v510
  %v2259 = vpop.f32.mrb[0].mxu0
  %v2260 = vadd.f32 0.0, %v2259
  %v2261 = vpop.f32.mrb[0].mxu0
  %v2262 = vadd.f32 0.0, %v2261
  %v2263 = vpop.f32.mrb[0].mxu0
  %v2264 = vadd.f32 0.0, %v2263
  %v2265 = vpop.f32.mrb[0].mxu0
  %v2266 = vadd.f32 0.0, %v2265
  %2267 = vmatprep.mubr.bf16.mxu0 0
  %2268 = vmatmul.mubr.bf16.gmra.mrb[0].mxu0 %v511
  %v2269 = vpop.f32.mrb[0].mxu0
  %v2270 = vadd.f32 0.0, %v2269
  %v2271 = vpop.f32.mrb[0].mxu0
  %v2272 = vadd.f32 0.0, %v2271
  %v2273 = vpop.f32.mrb[0].mxu0
  %v2274 = vadd.f32 0.0, %v2273
  %v2275 = vpop.f32.mrb[0].mxu0
  %v2276 = vadd.f32 0.0, %v2275
  %2277 = vmatprep.mubr.bf16.mxu0 0
  %2278 = vmatmul.mubr.bf16.gmra.mrb[0].mxu0 %v512
  %v2279 = vpop.f32.mrb[0].mxu0
  %v2280 = vadd.f32 0.0, %v2279
  %v2281 = vpop.f32.mrb[0].mxu0
  %v2282 = vadd.f32 0.0, %v2281
  %v2283 = vpop.f32.mrb[0].mxu0
  %v2284 = vadd.f32 0.0, %v2283
  %v2285 = vpop.f32.mrb[0].mxu0
  %v2286 = vadd.f32 0.0, %v2285
  %2287 = vmatprep.mubr.bf16.mxu0 0
  %2288 = vmatmul.mubr.bf16.gmra.mrb[0].mxu0 %v513
  %v2289 = vpop.f32.mrb[0].mxu0
  %v2290 = vadd.f32 0.0, %v2289
  %v2291 = vpop.f32.mrb[0].mxu0
  %v2292 = vadd.f32 0.0, %v2291
  %v2293 = vpop.f32.mrb[0].mxu0
  %v2294 = vadd.f32 0.0, %v2293
  %v2295 = vpop.f32.mrb[0].mxu0
  %v2296 = vadd.f32 0.0, %v2295
  %2297 = vmatprep.mubr.bf16.mxu0 0
  %2298 = vmatmul.mubr.bf16.gmra.mrb[0].mxu0 %v514
  %v2299 = vpop.f32.mrb[0].mxu0
  %v2300 = vadd.f32 0.0, %v2299
  %v2301 = vpop.f32.mrb[0].mxu0
  %v2302 = vadd.f32 0.0, %v2301
  %v2303 = vpop.f32.mrb[0].mxu0
  %v2304 = vadd.f32 0.0, %v2303
  %v2305 = vpop.f32.mrb[0].mxu0
  %v2306 = vadd.f32 0.0, %v2305
  %2307 = vmatprep.mubr.bf16.mxu0 0
  %2308 = vmatmul.mubr.bf16.gmra.mrb[0].mxu0 %v515
  %v2309 = vpop.f32.mrb[0].mxu0
  %v2310 = vadd.f32 0.0, %v2309
  %v2311 = vpop.f32.mrb[0].mxu0
  %v2312 = vadd.f32 0.0, %v2311
  %v2313 = vpop.f32.mrb[0].mxu0
  %v2314 = vadd.f32 0.0, %v2313
  %v2315 = vpop.f32.mrb[0].mxu0
  %v2316 = vadd.f32 0.0, %v2315
  %2317 = vmatprep.mubr.bf16.mxu0 0
  %2318 = vmatmul.mubr.bf16.gmra.mrb[0].mxu0 %v516
  %v2319 = vpop.f32.mrb[0].mxu0
  %v2320 = vadd.f32 0.0, %v2319
  %v2321 = vpop.f32.mrb[0].mxu0
  %v2322 = vadd.f32 0.0, %v2321
  %v2323 = vpop.f32.mrb[0].mxu0
  %v2324 = vadd.f32 0.0, %v2323
  %v2325 = vpop.f32.mrb[0].mxu0
  %v2326 = vadd.f32 0.0, %v2325
  %2327 = vmatprep.mubr.bf16.mxu0 0
  %2328 = vmatmul.mubr.bf16.gmra.mrb[0].mxu0 %v517
  %v2329 = vpop.f32.mrb[0].mxu0
  %v2330 = vadd.f32 0.0, %v2329
  %v2331 = vpop.f32.mrb[0].mxu0
  %v2332 = vadd.f32 0.0, %v2331
  %v2333 = vpop.f32.mrb[0].mxu0
  %v2334 = vadd.f32 0.0, %v2333
  %v2335 = vpop.f32.mrb[0].mxu0
  %v2336 = vadd.f32 0.0, %v2335
  %2337 = vdwg.mxu0
  %v2338 = vpack.c.bf16 %v2264, %v2260
  %v2339 = vpack.c.bf16 %v2266, %v2262
  %v2340 = vpack.c.bf16 %v2274, %v2270
  %v2341 = vpack.c.bf16 %v2276, %v2272
  %v2342 = vpack.c.bf16 %v2284, %v2280
  %v2343 = vpack.c.bf16 %v2286, %v2282
  %v2344 = vpack.c.bf16 %v2294, %v2290
  %v2345 = vpack.c.bf16 %v2296, %v2292
  %v2346 = vpack.c.bf16 %v2304, %v2300
  %v2347 = vpack.c.bf16 %v2306, %v2302
  %v2348 = vpack.c.bf16 %v2314, %v2310
  %v2349 = vpack.c.bf16 %v2316, %v2312
  %v2350 = vpack.c.bf16 %v2324, %v2320
  %v2351 = vpack.c.bf16 %v2326, %v2322
  %v2352 = vpack.c.bf16 %v2334, %v2330
  %v2353 = vpack.c.bf16 %v2336, %v2332
  %s2354 = scalar_lea.vmem %s5, 64
  %v2355 = vld [vmem:[%s2354] sm:$0xf]
  %v2356 = vld [vmem:[%s2354 + $0x4] sm:$0xf]
  %v2357 = vld [vmem:[%s2354 + $0x8] sm:$0xf]
  %v2358 = vld [vmem:[%s2354 + $0xc] sm:$0xf]
  %v2359 = vld [vmem:[%s2354 + $0x10] sm:$0xf]
  %v2360 = vld [vmem:[%s2354 + $0x14] sm:$0xf]
  %v2361 = vld [vmem:[%s2354 + $0x18] sm:$0xf]
  %v2362 = vld [vmem:[%s2354 + $0x1c] sm:$0xf]
  %v2363 = vld [vmem:[%s2354 + $0x20] sm:$0xf]
  %v2364 = vld [vmem:[%s2354 + $0x24] sm:$0xf]
  %v2365 = vld [vmem:[%s2354 + $0x28] sm:$0xf]
  %v2366 = vld [vmem:[%s2354 + $0x2c] sm:$0xf]
  %v2367 = vld [vmem:[%s2354 + $0x30] sm:$0xf]
  %v2368 = vld [vmem:[%s2354 + $0x34] sm:$0xf]
  %v2369 = vld [vmem:[%s2354 + $0x38] sm:$0xf]
  %v2370 = vld [vmem:[%s2354 + $0x3c] sm:$0xf]
  %v2387 = vunpack.c.l.b16 %v2355
  %v2388 = vunpack.c.l.b16 %v2356
  %v2389 = vunpack.c.l.b16 %v2357
  %v2390 = vunpack.c.l.b16 %v2358
  %v2391 = vunpack.c.l.b16 %v2359
  %v2392 = vunpack.c.l.b16 %v2360
  %v2393 = vunpack.c.l.b16 %v2361
  %v2394 = vunpack.c.l.b16 %v2362
  %v2395 = vunpack.c.l.b16 %v2363
  %v2396 = vunpack.c.l.b16 %v2364
  %v2397 = vunpack.c.l.b16 %v2365
  %v2398 = vunpack.c.l.b16 %v2366
  %v2399 = vunpack.c.l.b16 %v2367
  %v2400 = vunpack.c.l.b16 %v2368
  %v2401 = vunpack.c.l.b16 %v2369
  %v2402 = vunpack.c.l.b16 %v2370
  %v2403 = vpack.c.b16 %v2388, %v2387
  %v2404 = vpack.c.b16 %v2390, %v2389
  %v2405 = vpack.c.b16 %v2392, %v2391
  %v2406 = vpack.c.b16 %v2394, %v2393
  %v2407 = vpack.c.b16 %v2396, %v2395
  %v2408 = vpack.c.b16 %v2398, %v2397
  %v2409 = vpack.c.b16 %v2400, %v2399
  %v2410 = vpack.c.b16 %v2402, %v2401
  %2419 = vmatprep.subr.bf16.mxu0 0
  %2420 = vmatpush1.bf16.msra.mxu0 %v2403
  %2421 = vmatprep.subr.bf16.mxu0 0
  %2422 = vmatpush1.bf16.msra.mxu0 %v2404
  %2423 = vmatprep.subr.bf16.mxu0 0
  %2424 = vmatpush1.bf16.msra.mxu0 %v2405
  %2425 = vmatprep.subr.bf16.mxu0 0
  %2426 = vmatpush1.bf16.msra.mxu0 %v2406
  %2427 = vmatprep.subr.bf16.mxu0 0
  %2428 = vmatpush1.bf16.msra.mxu0 %v2407
  %2429 = vmatprep.subr.bf16.mxu0 0
  %2430 = vmatpush1.bf16.msra.mxu0 %v2408
  %2431 = vmatprep.subr.bf16.mxu0 0
  %2432 = vmatpush1.bf16.msra.mxu0 %v2409
  %2433 = vmatprep.subr.bf16.mxu0 0
  %2434 = vmatpush1.bf16.msra.mxu0 %v2410
  %2435 = vmatprep.subr.bf16.mxu0 0
  %2436 = vmatpush1.bf16.msra.mxu0 0
  %2437 = vmatprep.subr.bf16.mxu0 0
  %2438 = vmatpush1.bf16.msra.mxu0 0
  %2439 = vmatprep.subr.bf16.mxu0 0
  %2440 = vmatpush1.bf16.msra.mxu0 0
  %2441 = vmatprep.subr.bf16.mxu0 0
  %2442 = vmatpush1.bf16.msra.mxu0 0
  %2443 = vmatprep.subr.bf16.mxu0 0
  %2444 = vmatpush1.bf16.msra.mxu0 0
  %2445 = vmatprep.subr.bf16.mxu0 0
  %2446 = vmatpush1.bf16.msra.mxu0 0
  %2447 = vmatprep.subr.bf16.mxu0 0
  %2448 = vmatpush1.bf16.msra.mxu0 0
  %2449 = vmatprep.subr.bf16.mxu0 0
  %2450 = vmatpush1.bf16.msra.mxu0 0
  %2451 = vmatprep.mubr.bf16.mxu0 0
  %2452 = vmatmul.mubr.bf16.gmra.mrb[0].mxu0 %v2338
  %v2453 = vpop.f32.mrb[0].mxu0
  %v2454 = vadd.f32 0.0, %v2453
  %v2455 = vpop.f32.mrb[0].mxu0
  %v2456 = vpop.f32.mrb[0].mxu0
  %v2457 = vadd.f32 0.0, %v2456
  %v2458 = vpop.f32.mrb[0].mxu0
  %2459 = vmatprep.mubr.bf16.mxu0 0
  %2460 = vmatmul.mubr.bf16.gmra.mrb[0].mxu0 %v2340
  %v2461 = vpop.f32.mrb[0].mxu0
  %v2462 = vadd.f32 0.0, %v2461
  %v2463 = vpop.f32.mrb[0].mxu0
  %v2464 = vpop.f32.mrb[0].mxu0
  %v2465 = vadd.f32 0.0, %v2464
  %v2466 = vpop.f32.mrb[0].mxu0
  %2467 = vmatprep.mubr.bf16.mxu0 0
  %2468 = vmatmul.mubr.bf16.gmra.mrb[0].mxu0 %v2342
  %v2469 = vpop.f32.mrb[0].mxu0
  %v2470 = vadd.f32 0.0, %v2469
  %v2471 = vpop.f32.mrb[0].mxu0
  %v2472 = vpop.f32.mrb[0].mxu0
  %v2473 = vadd.f32 0.0, %v2472
  %v2474 = vpop.f32.mrb[0].mxu0
  %2475 = vmatprep.mubr.bf16.mxu0 0
  %2476 = vmatmul.mubr.bf16.gmra.mrb[0].mxu0 %v2344
  %v2477 = vpop.f32.mrb[0].mxu0
  %v2478 = vadd.f32 0.0, %v2477
  %v2479 = vpop.f32.mrb[0].mxu0
  %v2480 = vpop.f32.mrb[0].mxu0
  %v2481 = vadd.f32 0.0, %v2480
  %v2482 = vpop.f32.mrb[0].mxu0
  %2483 = vmatprep.mubr.bf16.mxu0 0
  %2484 = vmatmul.mubr.bf16.gmra.mrb[0].mxu0 %v2346
  %v2485 = vpop.f32.mrb[0].mxu0
  %v2486 = vadd.f32 0.0, %v2485
  %v2487 = vpop.f32.mrb[0].mxu0
  %v2488 = vpop.f32.mrb[0].mxu0
  %v2489 = vadd.f32 0.0, %v2488
  %v2490 = vpop.f32.mrb[0].mxu0
  %2491 = vmatprep.mubr.bf16.mxu0 0
  %2492 = vmatmul.mubr.bf16.gmra.mrb[0].mxu0 %v2348
  %v2493 = vpop.f32.mrb[0].mxu0
  %v2494 = vadd.f32 0.0, %v2493
  %v2495 = vpop.f32.mrb[0].mxu0
  %v2496 = vpop.f32.mrb[0].mxu0
  %v2497 = vadd.f32 0.0, %v2496
  %v2498 = vpop.f32.mrb[0].mxu0
  %2499 = vmatprep.mubr.bf16.mxu0 0
  %2500 = vmatmul.mubr.bf16.gmra.mrb[0].mxu0 %v2350
  %v2501 = vpop.f32.mrb[0].mxu0
  %v2502 = vadd.f32 0.0, %v2501
  %v2503 = vpop.f32.mrb[0].mxu0
  %v2504 = vpop.f32.mrb[0].mxu0
  %v2505 = vadd.f32 0.0, %v2504
  %v2506 = vpop.f32.mrb[0].mxu0
  %2507 = vmatprep.mubr.bf16.mxu0 0
  %2508 = vmatmul.mubr.bf16.gmra.mrb[0].mxu0 %v2352
  %v2509 = vpop.f32.mrb[0].mxu0
  %v2510 = vadd.f32 0.0, %v2509
  %v2511 = vpop.f32.mrb[0].mxu0
  %v2512 = vpop.f32.mrb[0].mxu0
  %v2513 = vadd.f32 0.0, %v2512
  %v2514 = vpop.f32.mrb[0].mxu0
  %2515 = vdwg.mxu0
  %v2532 = vunpack.c.l.b16 %v2209
  %v2533 = vunpack.c.l.b16 %v2210
  %v2534 = vunpack.c.l.b16 %v2211
  %v2535 = vunpack.c.l.b16 %v2212
  %v2536 = vunpack.c.l.b16 %v2213
  %v2537 = vunpack.c.l.b16 %v2214
  %v2538 = vunpack.c.l.b16 %v2215
  %v2539 = vunpack.c.l.b16 %v2216
  %v2540 = vunpack.c.l.b16 %v2217
  %v2541 = vunpack.c.l.b16 %v2218
  %v2542 = vunpack.c.l.b16 %v2219
  %v2543 = vunpack.c.l.b16 %v2220
  %v2544 = vunpack.c.l.b16 %v2221
  %v2545 = vunpack.c.l.b16 %v2222
  %v2546 = vunpack.c.l.b16 %v2223
  %v2547 = vunpack.c.l.b16 %v2224
  %v2548 = vpack.c.b16 %v2533, %v2532
  %v2549 = vpack.c.b16 %v2535, %v2534
  %v2550 = vpack.c.b16 %v2537, %v2536
  %v2551 = vpack.c.b16 %v2539, %v2538
  %v2552 = vpack.c.b16 %v2541, %v2540
  %v2553 = vpack.c.b16 %v2543, %v2542
  %v2554 = vpack.c.b16 %v2545, %v2544
  %v2555 = vpack.c.b16 %v2547, %v2546
  %2564 = vmatprep.subr.bf16.mxu0 0
  %2565 = vmatpush1.bf16.msra.mxu0 %v2548
  %2566 = vmatprep.subr.bf16.mxu0 0
  %2567 = vmatpush1.bf16.msra.mxu0 %v2549
  %2568 = vmatprep.subr.bf16.mxu0 0
  %2569 = vmatpush1.bf16.msra.mxu0 %v2550
  %2570 = vmatprep.subr.bf16.mxu0 0
  %2571 = vmatpush1.bf16.msra.mxu0 %v2551
  %2572 = vmatprep.subr.bf16.mxu0 0
  %2573 = vmatpush1.bf16.msra.mxu0 %v2552
  %2574 = vmatprep.subr.bf16.mxu0 0
  %2575 = vmatpush1.bf16.msra.mxu0 %v2553
  %2576 = vmatprep.subr.bf16.mxu0 0
  %2577 = vmatpush1.bf16.msra.mxu0 %v2554
  %2578 = vmatprep.subr.bf16.mxu0 0
  %2579 = vmatpush1.bf16.msra.mxu0 %v2555
  %2580 = vmatprep.subr.bf16.mxu0 0
  %2581 = vmatpush1.bf16.msra.mxu0 0
  %2582 = vmatprep.subr.bf16.mxu0 0
  %2583 = vmatpush1.bf16.msra.mxu0 0
  %2584 = vmatprep.subr.bf16.mxu0 0
  %2585 = vmatpush1.bf16.msra.mxu0 0
  %2586 = vmatprep.subr.bf16.mxu0 0
  %2587 = vmatpush1.bf16.msra.mxu0 0
  %2588 = vmatprep.subr.bf16.mxu0 0
  %2589 = vmatpush1.bf16.msra.mxu0 0
  %2590 = vmatprep.subr.bf16.mxu0 0
  %2591 = vmatpush1.bf16.msra.mxu0 0
  %2592 = vmatprep.subr.bf16.mxu0 0
  %2593 = vmatpush1.bf16.msra.mxu0 0
  %2594 = vmatprep.subr.bf16.mxu0 0
  %2595 = vmatpush1.bf16.msra.mxu0 0
  %2596 = vmatprep.mubr.bf16.mxu0 0
  %2597 = vmatmul.mubr.bf16.gmra.mrb[0].mxu0 %v2193
  %v2598 = vpop.f32.mrb[0].mxu0
  %v2599 = vadd.f32 %v2454, %v2598
  %v2600 = vpop.f32.mrb[0].mxu0
  %v2601 = vpop.f32.mrb[0].mxu0
  %v2602 = vadd.f32 %v2457, %v2601
  %v2603 = vpop.f32.mrb[0].mxu0
  %2604 = vmatprep.mubr.bf16.mxu0 0
  %2605 = vmatmul.mubr.bf16.gmra.mrb[0].mxu0 %v2195
  %v2606 = vpop.f32.mrb[0].mxu0
  %v2607 = vadd.f32 %v2462, %v2606
  %v2608 = vpop.f32.mrb[0].mxu0
  %v2609 = vpop.f32.mrb[0].mxu0
  %v2610 = vadd.f32 %v2465, %v2609
  %v2611 = vpop.f32.mrb[0].mxu0
  %2612 = vmatprep.mubr.bf16.mxu0 0
  %2613 = vmatmul.mubr.bf16.gmra.mrb[0].mxu0 %v2197
  %v2614 = vpop.f32.mrb[0].mxu0
  %v2615 = vadd.f32 %v2470, %v2614
  %v2616 = vpop.f32.mrb[0].mxu0
  %v2617 = vpop.f32.mrb[0].mxu0
  %v2618 = vadd.f32 %v2473, %v2617
  %v2619 = vpop.f32.mrb[0].mxu0
  %2620 = vmatprep.mubr.bf16.mxu0 0
  %2621 = vmatmul.mubr.bf16.gmra.mrb[0].mxu0 %v2199
  %v2622 = vpop.f32.mrb[0].mxu0
  %v2623 = vadd.f32 %v2478, %v2622
  %v2624 = vpop.f32.mrb[0].mxu0
  %v2625 = vpop.f32.mrb[0].mxu0
  %v2626 = vadd.f32 %v2481, %v2625
  %v2627 = vpop.f32.mrb[0].mxu0
  %2628 = vmatprep.mubr.bf16.mxu0 0
  %2629 = vmatmul.mubr.bf16.gmra.mrb[0].mxu0 %v2201
  %v2630 = vpop.f32.mrb[0].mxu0
  %v2631 = vadd.f32 %v2486, %v2630
  %v2632 = vpop.f32.mrb[0].mxu0
  %v2633 = vpop.f32.mrb[0].mxu0
  %v2634 = vadd.f32 %v2489, %v2633
  %v2635 = vpop.f32.mrb[0].mxu0
  %2636 = vmatprep.mubr.bf16.mxu0 0
  %2637 = vmatmul.mubr.bf16.gmra.mrb[0].mxu0 %v2203
  %v2638 = vpop.f32.mrb[0].mxu0
  %v2639 = vadd.f32 %v2494, %v2638
  %v2640 = vpop.f32.mrb[0].mxu0
  %v2641 = vpop.f32.mrb[0].mxu0
  %v2642 = vadd.f32 %v2497, %v2641
  %v2643 = vpop.f32.mrb[0].mxu0
  %2644 = vmatprep.mubr.bf16.mxu0 0
  %2645 = vmatmul.mubr.bf16.gmra.mrb[0].mxu0 %v2205
  %v2646 = vpop.f32.mrb[0].mxu0
  %v2647 = vadd.f32 %v2502, %v2646
  %v2648 = vpop.f32.mrb[0].mxu0
  %v2649 = vpop.f32.mrb[0].mxu0
  %v2650 = vadd.f32 %v2505, %v2649
  %v2651 = vpop.f32.mrb[0].mxu0
  %2652 = vmatprep.mubr.bf16.mxu0 0
  %2653 = vmatmul.mubr.bf16.gmra.mrb[0].mxu0 %v2207
  %v2654 = vpop.f32.mrb[0].mxu0
  %v2655 = vadd.f32 %v2510, %v2654
  %v2656 = vpop.f32.mrb[0].mxu0
  %v2657 = vpop.f32.mrb[0].mxu0
  %v2658 = vadd.f32 %v2513, %v2657
  %v2659 = vpop.f32.mrb[0].mxu0
  %2660 = vdwg.mxu0
  %2661 = vmatprep.subr.bf16.mxu0 0
  %2662 = vmatpush1.bf16.msra.mxu0 %v2403
  %2663 = vmatprep.subr.bf16.mxu0 0
  %2664 = vmatpush1.bf16.msra.mxu0 %v2404
  %2665 = vmatprep.subr.bf16.mxu0 0
  %2666 = vmatpush1.bf16.msra.mxu0 %v2405
  %2667 = vmatprep.subr.bf16.mxu0 0
  %2668 = vmatpush1.bf16.msra.mxu0 %v2406
  %2669 = vmatprep.subr.bf16.mxu0 0
  %2670 = vmatpush1.bf16.msra.mxu0 %v2407
  %2671 = vmatprep.subr.bf16.mxu0 0
  %2672 = vmatpush1.bf16.msra.mxu0 %v2408
  %2673 = vmatprep.subr.bf16.mxu0 0
  %2674 = vmatpush1.bf16.msra.mxu0 %v2409
  %2675 = vmatprep.subr.bf16.mxu0 0
  %2676 = vmatpush1.bf16.msra.mxu0 %v2410
  %2677 = vmatprep.subr.bf16.mxu0 0
  %2678 = vmatpush1.bf16.msra.mxu0 0
  %2679 = vmatprep.subr.bf16.mxu0 0
  %2680 = vmatpush1.bf16.msra.mxu0 0
  %2681 = vmatprep.subr.bf16.mxu0 0
  %2682 = vmatpush1.bf16.msra.mxu0 0
  %2683 = vmatprep.subr.bf16.mxu0 0
  %2684 = vmatpush1.bf16.msra.mxu0 0
  %2685 = vmatprep.subr.bf16.mxu0 0
  %2686 = vmatpush1.bf16.msra.mxu0 0
  %2687 = vmatprep.subr.bf16.mxu0 0
  %2688 = vmatpush1.bf16.msra.mxu0 0
  %2689 = vmatprep.subr.bf16.mxu0 0
  %2690 = vmatpush1.bf16.msra.mxu0 0
  %2691 = vmatprep.subr.bf16.mxu0 0
  %2692 = vmatpush1.bf16.msra.mxu0 0
  %2693 = vmatprep.mubr.bf16.mxu0 0
  %2694 = vmatmul.mubr.bf16.gmra.mrb[0].mxu0 %v2339
  %v2695 = vpop.f32.mrb[0].mxu0
  %v2696 = vadd.f32 0.0, %v2695
  %v2697 = vpop.f32.mrb[0].mxu0
  %v2698 = vpop.f32.mrb[0].mxu0
  %v2699 = vadd.f32 0.0, %v2698
  %v2700 = vpop.f32.mrb[0].mxu0
  %2701 = vmatprep.mubr.bf16.mxu0 0
  %2702 = vmatmul.mubr.bf16.gmra.mrb[0].mxu0 %v2341
  %v2703 = vpop.f32.mrb[0].mxu0
  %v2704 = vadd.f32 0.0, %v2703
  %v2705 = vpop.f32.mrb[0].mxu0
  %v2706 = vpop.f32.mrb[0].mxu0
  %v2707 = vadd.f32 0.0, %v2706
  %v2708 = vpop.f32.mrb[0].mxu0
  %2709 = vmatprep.mubr.bf16.mxu0 0
  %2710 = vmatmul.mubr.bf16.gmra.mrb[0].mxu0 %v2343
  %v2711 = vpop.f32.mrb[0].mxu0
  %v2712 = vadd.f32 0.0, %v2711
  %v2713 = vpop.f32.mrb[0].mxu0
  %v2714 = vpop.f32.mrb[0].mxu0
  %v2715 = vadd.f32 0.0, %v2714
  %v2716 = vpop.f32.mrb[0].mxu0
  %2717 = vmatprep.mubr.bf16.mxu0 0
  %2718 = vmatmul.mubr.bf16.gmra.mrb[0].mxu0 %v2345
  %v2719 = vpop.f32.mrb[0].mxu0
  %v2720 = vadd.f32 0.0, %v2719
  %v2721 = vpop.f32.mrb[0].mxu0
  %v2722 = vpop.f32.mrb[0].mxu0
  %v2723 = vadd.f32 0.0, %v2722
  %v2724 = vpop.f32.mrb[0].mxu0
  %2725 = vmatprep.mubr.bf16.mxu0 0
  %2726 = vmatmul.mubr.bf16.gmra.mrb[0].mxu0 %v2347
  %v2727 = vpop.f32.mrb[0].mxu0
  %v2728 = vadd.f32 0.0, %v2727
  %v2729 = vpop.f32.mrb[0].mxu0
  %v2730 = vpop.f32.mrb[0].mxu0
  %v2731 = vadd.f32 0.0, %v2730
  %v2732 = vpop.f32.mrb[0].mxu0
  %2733 = vmatprep.mubr.bf16.mxu0 0
  %2734 = vmatmul.mubr.bf16.gmra.mrb[0].mxu0 %v2349
  %v2735 = vpop.f32.mrb[0].mxu0
  %v2736 = vadd.f32 0.0, %v2735
  %v2737 = vpop.f32.mrb[0].mxu0
  %v2738 = vpop.f32.mrb[0].mxu0
  %v2739 = vadd.f32 0.0, %v2738
  %v2740 = vpop.f32.mrb[0].mxu0
  %2741 = vmatprep.mubr.bf16.mxu0 0
  %2742 = vmatmul.mubr.bf16.gmra.mrb[0].mxu0 %v2351
  %v2743 = vpop.f32.mrb[0].mxu0
  %v2744 = vadd.f32 0.0, %v2743
  %v2745 = vpop.f32.mrb[0].mxu0
  %v2746 = vpop.f32.mrb[0].mxu0
  %v2747 = vadd.f32 0.0, %v2746
  %v2748 = vpop.f32.mrb[0].mxu0
  %2749 = vmatprep.mubr.bf16.mxu0 0
  %2750 = vmatmul.mubr.bf16.gmra.mrb[0].mxu0 %v2353
  %v2751 = vpop.f32.mrb[0].mxu0
  %v2752 = vadd.f32 0.0, %v2751
  %v2753 = vpop.f32.mrb[0].mxu0
  %v2754 = vpop.f32.mrb[0].mxu0
  %v2755 = vadd.f32 0.0, %v2754
  %v2756 = vpop.f32.mrb[0].mxu0
  %2757 = vdwg.mxu0
  %2758 = vmatprep.subr.bf16.mxu0 0
  %2759 = vmatpush1.bf16.msra.mxu0 %v2548
  %2760 = vmatprep.subr.bf16.mxu0 0
  %2761 = vmatpush1.bf16.msra.mxu0 %v2549
  %2762 = vmatprep.subr.bf16.mxu0 0
  %2763 = vmatpush1.bf16.msra.mxu0 %v2550
  %2764 = vmatprep.subr.bf16.mxu0 0
  %2765 = vmatpush1.bf16.msra.mxu0 %v2551
  %2766 = vmatprep.subr.bf16.mxu0 0
  %2767 = vmatpush1.bf16.msra.mxu0 %v2552
  %2768 = vmatprep.subr.bf16.mxu0 0
  %2769 = vmatpush1.bf16.msra.mxu0 %v2553
  %2770 = vmatprep.subr.bf16.mxu0 0
  %2771 = vmatpush1.bf16.msra.mxu0 %v2554
  %2772 = vmatprep.subr.bf16.mxu0 0
  %2773 = vmatpush1.bf16.msra.mxu0 %v2555
  %2774 = vmatprep.subr.bf16.mxu0 0
  %2775 = vmatpush1.bf16.msra.mxu0 0
  %2776 = vmatprep.subr.bf16.mxu0 0
  %2777 = vmatpush1.bf16.msra.mxu0 0
  %2778 = vmatprep.subr.bf16.mxu0 0
  %2779 = vmatpush1.bf16.msra.mxu0 0
  %2780 = vmatprep.subr.bf16.mxu0 0
  %2781 = vmatpush1.bf16.msra.mxu0 0
  %2782 = vmatprep.subr.bf16.mxu0 0
  %2783 = vmatpush1.bf16.msra.mxu0 0
  %2784 = vmatprep.subr.bf16.mxu0 0
  %2785 = vmatpush1.bf16.msra.mxu0 0
  %2786 = vmatprep.subr.bf16.mxu0 0
  %2787 = vmatpush1.bf16.msra.mxu0 0
  %2788 = vmatprep.subr.bf16.mxu0 0
  %2789 = vmatpush1.bf16.msra.mxu0 0
  %2790 = vmatprep.mubr.bf16.mxu0 0
  %2791 = vmatmul.mubr.bf16.gmra.mrb[0].mxu0 %v2194
  %v2792 = vpop.f32.mrb[0].mxu0
  %v2793 = vadd.f32 %v2696, %v2792
  %v2794 = vpop.f32.mrb[0].mxu0
  %v2795 = vpop.f32.mrb[0].mxu0
  %v2796 = vadd.f32 %v2699, %v2795
  %v2797 = vpop.f32.mrb[0].mxu0
  %2798 = vmatprep.mubr.bf16.mxu0 0
  %2799 = vmatmul.mubr.bf16.gmra.mrb[0].mxu0 %v2196
  %v2800 = vpop.f32.mrb[0].mxu0
  %v2801 = vadd.f32 %v2704, %v2800
  %v2802 = vpop.f32.mrb[0].mxu0
  %v2803 = vpop.f32.mrb[0].mxu0
  %v2804 = vadd.f32 %v2707, %v2803
  %v2805 = vpop.f32.mrb[0].mxu0
  %2806 = vmatprep.mubr.bf16.mxu0 0
  %2807 = vmatmul.mubr.bf16.gmra.mrb[0].mxu0 %v2198
  %v2808 = vpop.f32.mrb[0].mxu0
  %v2809 = vadd.f32 %v2712, %v2808
  %v2810 = vpop.f32.mrb[0].mxu0
  %v2811 = vpop.f32.mrb[0].mxu0
  %v2812 = vadd.f32 %v2715, %v2811
  %v2813 = vpop.f32.mrb[0].mxu0
  %2814 = vmatprep.mubr.bf16.mxu0 0
  %2815 = vmatmul.mubr.bf16.gmra.mrb[0].mxu0 %v2200
  %v2816 = vpop.f32.mrb[0].mxu0
  %v2817 = vadd.f32 %v2720, %v2816
  %v2818 = vpop.f32.mrb[0].mxu0
  %v2819 = vpop.f32.mrb[0].mxu0
  %v2820 = vadd.f32 %v2723, %v2819
  %v2821 = vpop.f32.mrb[0].mxu0
  %2822 = vmatprep.mubr.bf16.mxu0 0
  %2823 = vmatmul.mubr.bf16.gmra.mrb[0].mxu0 %v2202
  %v2824 = vpop.f32.mrb[0].mxu0
  %v2825 = vadd.f32 %v2728, %v2824
  %v2826 = vpop.f32.mrb[0].mxu0
  %v2827 = vpop.f32.mrb[0].mxu0
  %v2828 = vadd.f32 %v2731, %v2827
  %v2829 = vpop.f32.mrb[0].mxu0
  %2830 = vmatprep.mubr.bf16.mxu0 0
  %2831 = vmatmul.mubr.bf16.gmra.mrb[0].mxu0 %v2204
  %v2832 = vpop.f32.mrb[0].mxu0
  %v2833 = vadd.f32 %v2736, %v2832
  %v2834 = vpop.f32.mrb[0].mxu0
  %v2835 = vpop.f32.mrb[0].mxu0
  %v2836 = vadd.f32 %v2739, %v2835
  %v2837 = vpop.f32.mrb[0].mxu0
  %2838 = vmatprep.mubr.bf16.mxu0 0
  %2839 = vmatmul.mubr.bf16.gmra.mrb[0].mxu0 %v2206
  %v2840 = vpop.f32.mrb[0].mxu0
  %v2841 = vadd.f32 %v2744, %v2840
  %v2842 = vpop.f32.mrb[0].mxu0
  %v2843 = vpop.f32.mrb[0].mxu0
  %v2844 = vadd.f32 %v2747, %v2843
  %v2845 = vpop.f32.mrb[0].mxu0
  %2846 = vmatprep.mubr.bf16.mxu0 0
  %2847 = vmatmul.mubr.bf16.gmra.mrb[0].mxu0 %v2208
  %v2848 = vpop.f32.mrb[0].mxu0
  %v2849 = vadd.f32 %v2752, %v2848
  %v2850 = vpop.f32.mrb[0].mxu0
  %v2851 = vpop.f32.mrb[0].mxu0
  %v2852 = vadd.f32 %v2755, %v2851
  %v2853 = vpop.f32.mrb[0].mxu0
  %2854 = vdwg.mxu0
  %2855 = vmatprep.subr.bf16.mxu0 %v2339
  %2856 = vmatpush1.bf16.msra.mxu0 %v2338
  %2857 = vmatprep.subr.bf16.mxu0 %v2341
  %2858 = vmatpush1.bf16.msra.mxu0 %v2340
  %2859 = vmatprep.subr.bf16.mxu0 %v2343
  %2860 = vmatpush1.bf16.msra.mxu0 %v2342
  %2861 = vmatprep.subr.bf16.mxu0 %v2345
  %2862 = vmatpush1.bf16.msra.mxu0 %v2344
  %2863 = vmatprep.subr.bf16.mxu0 %v2347
  %2864 = vmatpush1.bf16.msra.mxu0 %v2346
  %2865 = vmatprep.subr.bf16.mxu0 %v2349
  %2866 = vmatpush1.bf16.msra.mxu0 %v2348
  %2867 = vmatprep.subr.bf16.mxu0 %v2351
  %2868 = vmatpush1.bf16.msra.mxu0 %v2350
  %2869 = vmatprep.subr.bf16.mxu0 %v2353
  %2870 = vmatpush1.bf16.msra.mxu0 %v2352
  %2871 = vmatprep.subr.bf16.mxu0 0
  %2872 = vmatpush1.bf16.msra.mxu0 0
  %2873 = vmatprep.subr.bf16.mxu0 0
  %2874 = vmatpush1.bf16.msra.mxu0 0
  %2875 = vmatprep.subr.bf16.mxu0 0
  %2876 = vmatpush1.bf16.msra.mxu0 0
  %2877 = vmatprep.subr.bf16.mxu0 0
  %2878 = vmatpush1.bf16.msra.mxu0 0
  %2879 = vmatprep.subr.bf16.mxu0 0
  %2880 = vmatpush1.bf16.msra.mxu0 0
  %2881 = vmatprep.subr.bf16.mxu0 0
  %2882 = vmatpush1.bf16.msra.mxu0 0
  %2883 = vmatprep.subr.bf16.mxu0 0
  %2884 = vmatpush1.bf16.msra.mxu0 0
  %2885 = vmatprep.subr.bf16.mxu0 0
  %2886 = vmatpush1.bf16.msra.mxu0 0
  %2887 = vmatprep.mubr.bf16.mxu0 0
  %2888 = vmatmul.mubr.bf16.gmra.mrb[0].mxu0 %v1429
  %v2889 = vpop.f32.mrb[0].mxu0
  %v2890 = vadd.f32 0.0, %v2889
  %v2891 = vpop.f32.mrb[0].mxu0
  %v2892 = vadd.f32 0.0, %v2891
  %v2893 = vpop.f32.mrb[0].mxu0
  %v2894 = vadd.f32 0.0, %v2893
  %v2895 = vpop.f32.mrb[0].mxu0
  %v2896 = vadd.f32 0.0, %v2895
  %2897 = vmatprep.mubr.bf16.mxu0 0
  %2898 = vmatmul.mubr.bf16.gmra.mrb[0].mxu0 %v1430
  %v2899 = vpop.f32.mrb[0].mxu0
  %v2900 = vadd.f32 0.0, %v2899
  %v2901 = vpop.f32.mrb[0].mxu0
  %v2902 = vadd.f32 0.0, %v2901
  %v2903 = vpop.f32.mrb[0].mxu0
  %v2904 = vadd.f32 0.0, %v2903
  %v2905 = vpop.f32.mrb[0].mxu0
  %v2906 = vadd.f32 0.0, %v2905
  %2907 = vmatprep.mubr.bf16.mxu0 0
  %2908 = vmatmul.mubr.bf16.gmra.mrb[0].mxu0 %v1431
  %v2909 = vpop.f32.mrb[0].mxu0
  %v2910 = vadd.f32 0.0, %v2909
  %v2911 = vpop.f32.mrb[0].mxu0
  %v2912 = vadd.f32 0.0, %v2911
  %v2913 = vpop.f32.mrb[0].mxu0
  %v2914 = vadd.f32 0.0, %v2913
  %v2915 = vpop.f32.mrb[0].mxu0
  %v2916 = vadd.f32 0.0, %v2915
  %2917 = vmatprep.mubr.bf16.mxu0 0
  %2918 = vmatmul.mubr.bf16.gmra.mrb[0].mxu0 %v1432
  %v2919 = vpop.f32.mrb[0].mxu0
  %v2920 = vadd.f32 0.0, %v2919
  %v2921 = vpop.f32.mrb[0].mxu0
  %v2922 = vadd.f32 0.0, %v2921
  %v2923 = vpop.f32.mrb[0].mxu0
  %v2924 = vadd.f32 0.0, %v2923
  %v2925 = vpop.f32.mrb[0].mxu0
  %v2926 = vadd.f32 0.0, %v2925
  %2927 = vmatprep.mubr.bf16.mxu0 0
  %2928 = vmatmul.mubr.bf16.gmra.mrb[0].mxu0 %v1433
  %v2929 = vpop.f32.mrb[0].mxu0
  %v2930 = vadd.f32 0.0, %v2929
  %v2931 = vpop.f32.mrb[0].mxu0
  %v2932 = vadd.f32 0.0, %v2931
  %v2933 = vpop.f32.mrb[0].mxu0
  %v2934 = vadd.f32 0.0, %v2933
  %v2935 = vpop.f32.mrb[0].mxu0
  %v2936 = vadd.f32 0.0, %v2935
  %2937 = vmatprep.mubr.bf16.mxu0 0
  %2938 = vmatmul.mubr.bf16.gmra.mrb[0].mxu0 %v1434
  %v2939 = vpop.f32.mrb[0].mxu0
  %v2940 = vadd.f32 0.0, %v2939
  %v2941 = vpop.f32.mrb[0].mxu0
  %v2942 = vadd.f32 0.0, %v2941
  %v2943 = vpop.f32.mrb[0].mxu0
  %v2944 = vadd.f32 0.0, %v2943
  %v2945 = vpop.f32.mrb[0].mxu0
  %v2946 = vadd.f32 0.0, %v2945
  %2947 = vmatprep.mubr.bf16.mxu0 0
  %2948 = vmatmul.mubr.bf16.gmra.mrb[0].mxu0 %v1435
  %v2949 = vpop.f32.mrb[0].mxu0
  %v2950 = vadd.f32 0.0, %v2949
  %v2951 = vpop.f32.mrb[0].mxu0
  %v2952 = vadd.f32 0.0, %v2951
  %v2953 = vpop.f32.mrb[0].mxu0
  %v2954 = vadd.f32 0.0, %v2953
  %v2955 = vpop.f32.mrb[0].mxu0
  %v2956 = vadd.f32 0.0, %v2955
  %2957 = vmatprep.mubr.bf16.mxu0 0
  %2958 = vmatmul.mubr.bf16.gmra.mrb[0].mxu0 %v1436
  %v2959 = vpop.f32.mrb[0].mxu0
  %v2960 = vadd.f32 0.0, %v2959
  %v2961 = vpop.f32.mrb[0].mxu0
  %v2962 = vadd.f32 0.0, %v2961
  %v2963 = vpop.f32.mrb[0].mxu0
  %v2964 = vadd.f32 0.0, %v2963
  %v2965 = vpop.f32.mrb[0].mxu0
  %v2966 = vadd.f32 0.0, %v2965
  %2967 = vdwg.mxu0
  %v2968 = vsub.f32 %v2890, %v2145
  %v2969 = vsub.f32 %v2892, %v2177
  %v2970 = vsub.f32 %v2894, %v2146
  %v2971 = vsub.f32 %v2896, %v2178
  %v2972 = vsub.f32 %v2900, %v2147
  %v2973 = vsub.f32 %v2902, %v2179
  %v2974 = vsub.f32 %v2904, %v2148
  %v2975 = vsub.f32 %v2906, %v2180
  %v2976 = vsub.f32 %v2910, %v2149
  %v2977 = vsub.f32 %v2912, %v2181
  %v2978 = vsub.f32 %v2914, %v2150
  %v2979 = vsub.f32 %v2916, %v2182
  %v2980 = vsub.f32 %v2920, %v2151
  %v2981 = vsub.f32 %v2922, %v2183
  %v2982 = vsub.f32 %v2924, %v2152
  %v2983 = vsub.f32 %v2926, %v2184
  %v2984 = vsub.f32 %v2930, %v2153
  %v2985 = vsub.f32 %v2932, %v2185
  %v2986 = vsub.f32 %v2934, %v2154
  %v2987 = vsub.f32 %v2936, %v2186
  %v2988 = vsub.f32 %v2940, %v2155
  %v2989 = vsub.f32 %v2942, %v2187
  %v2990 = vsub.f32 %v2944, %v2156
  %v2991 = vsub.f32 %v2946, %v2188
  %v2992 = vsub.f32 %v2950, %v2157
  %v2993 = vsub.f32 %v2952, %v2189
  %v2994 = vsub.f32 %v2954, %v2158
  %v2995 = vsub.f32 %v2956, %v2190
  %v2996 = vsub.f32 %v2960, %v2159
  %v2997 = vsub.f32 %v2962, %v2191
  %v2998 = vsub.f32 %v2964, %v2160
  %v2999 = vsub.f32 %v2966, %v2192
  %v3000 = vpack.c.bf16 %v2970, %v2968
  %v3001 = vpack.c.bf16 %v2971, %v2969
  %v3002 = vpack.c.bf16 %v2974, %v2972
  %v3003 = vpack.c.bf16 %v2975, %v2973
  %v3004 = vpack.c.bf16 %v2978, %v2976
  %v3005 = vpack.c.bf16 %v2979, %v2977
  %v3006 = vpack.c.bf16 %v2982, %v2980
  %v3007 = vpack.c.bf16 %v2983, %v2981
  %v3008 = vpack.c.bf16 %v2986, %v2984
  %v3009 = vpack.c.bf16 %v2987, %v2985
  %v3010 = vpack.c.bf16 %v2990, %v2988
  %v3011 = vpack.c.bf16 %v2991, %v2989
  %v3012 = vpack.c.bf16 %v2994, %v2992
  %v3013 = vpack.c.bf16 %v2995, %v2993
  %v3014 = vpack.c.bf16 %v2998, %v2996
  %v3015 = vpack.c.bf16 %v2999, %v2997
  %s3016 = scalar_lea.vmem %s5, 128
  %v3017 = vld [vmem:[%s3016] sm:$0xf]
  %v3018 = vld [vmem:[%s3016 + $0x4] sm:$0xf]
  %v3019 = vld [vmem:[%s3016 + $0x8] sm:$0xf]
  %v3020 = vld [vmem:[%s3016 + $0xc] sm:$0xf]
  %v3021 = vld [vmem:[%s3016 + $0x10] sm:$0xf]
  %v3022 = vld [vmem:[%s3016 + $0x14] sm:$0xf]
  %v3023 = vld [vmem:[%s3016 + $0x18] sm:$0xf]
  %v3024 = vld [vmem:[%s3016 + $0x1c] sm:$0xf]
  %v3025 = vld [vmem:[%s3016 + $0x20] sm:$0xf]
  %v3026 = vld [vmem:[%s3016 + $0x24] sm:$0xf]
  %v3027 = vld [vmem:[%s3016 + $0x28] sm:$0xf]
  %v3028 = vld [vmem:[%s3016 + $0x2c] sm:$0xf]
  %v3029 = vld [vmem:[%s3016 + $0x30] sm:$0xf]
  %v3030 = vld [vmem:[%s3016 + $0x34] sm:$0xf]
  %v3031 = vld [vmem:[%s3016 + $0x38] sm:$0xf]
  %v3032 = vld [vmem:[%s3016 + $0x3c] sm:$0xf]
  %v3049 = vunpack.c.l.b16 %v3017
  %v3050 = vunpack.c.l.b16 %v3018
  %v3051 = vunpack.c.l.b16 %v3019
  %v3052 = vunpack.c.l.b16 %v3020
  %v3053 = vunpack.c.l.b16 %v3021
  %v3054 = vunpack.c.l.b16 %v3022
  %v3055 = vunpack.c.l.b16 %v3023
  %v3056 = vunpack.c.l.b16 %v3024
  %v3057 = vunpack.c.l.b16 %v3025
  %v3058 = vunpack.c.l.b16 %v3026
  %v3059 = vunpack.c.l.b16 %v3027
  %v3060 = vunpack.c.l.b16 %v3028
  %v3061 = vunpack.c.l.b16 %v3029
  %v3062 = vunpack.c.l.b16 %v3030
  %v3063 = vunpack.c.l.b16 %v3031
  %v3064 = vunpack.c.l.b16 %v3032
  %v3065 = vpack.c.b16 %v3050, %v3049
  %v3066 = vpack.c.b16 %v3052, %v3051
  %v3067 = vpack.c.b16 %v3054, %v3053
  %v3068 = vpack.c.b16 %v3056, %v3055
  %v3069 = vpack.c.b16 %v3058, %v3057
  %v3070 = vpack.c.b16 %v3060, %v3059
  %v3071 = vpack.c.b16 %v3062, %v3061
  %v3072 = vpack.c.b16 %v3064, %v3063
  %3081 = vmatprep.subr.bf16.mxu0 0
  %3082 = vmatpush1.bf16.msra.mxu0 %v3065
  %3083 = vmatprep.subr.bf16.mxu0 0
  %3084 = vmatpush1.bf16.msra.mxu0 %v3066
  %3085 = vmatprep.subr.bf16.mxu0 0
  %3086 = vmatpush1.bf16.msra.mxu0 %v3067
  %3087 = vmatprep.subr.bf16.mxu0 0
  %3088 = vmatpush1.bf16.msra.mxu0 %v3068
  %3089 = vmatprep.subr.bf16.mxu0 0
  %3090 = vmatpush1.bf16.msra.mxu0 %v3069
  %3091 = vmatprep.subr.bf16.mxu0 0
  %3092 = vmatpush1.bf16.msra.mxu0 %v3070
  %3093 = vmatprep.subr.bf16.mxu0 0
  %3094 = vmatpush1.bf16.msra.mxu0 %v3071
  %3095 = vmatprep.subr.bf16.mxu0 0
  %3096 = vmatpush1.bf16.msra.mxu0 %v3072
  %3097 = vmatprep.subr.bf16.mxu0 0
  %3098 = vmatpush1.bf16.msra.mxu0 0
  %3099 = vmatprep.subr.bf16.mxu0 0
  %3100 = vmatpush1.bf16.msra.mxu0 0
  %3101 = vmatprep.subr.bf16.mxu0 0
  %3102 = vmatpush1.bf16.msra.mxu0 0
  %3103 = vmatprep.subr.bf16.mxu0 0
  %3104 = vmatpush1.bf16.msra.mxu0 0
  %3105 = vmatprep.subr.bf16.mxu0 0
  %3106 = vmatpush1.bf16.msra.mxu0 0
  %3107 = vmatprep.subr.bf16.mxu0 0
  %3108 = vmatpush1.bf16.msra.mxu0 0
  %3109 = vmatprep.subr.bf16.mxu0 0
  %3110 = vmatpush1.bf16.msra.mxu0 0
  %3111 = vmatprep.subr.bf16.mxu0 0
  %3112 = vmatpush1.bf16.msra.mxu0 0
  %3113 = vmatprep.mubr.bf16.mxu0 0
  %3114 = vmatmul.mubr.bf16.gmra.mrb[0].mxu0 %v3000
  %v3115 = vpop.f32.mrb[0].mxu0
  %v3116 = vadd.f32 0.0, %v3115
  %v3117 = vpop.f32.mrb[0].mxu0
  %v3118 = vpop.f32.mrb[0].mxu0
  %v3119 = vadd.f32 0.0, %v3118
  %v3120 = vpop.f32.mrb[0].mxu0
  %3121 = vmatprep.mubr.bf16.mxu0 0
  %3122 = vmatmul.mubr.bf16.gmra.mrb[0].mxu0 %v3002
  %v3123 = vpop.f32.mrb[0].mxu0
  %v3124 = vadd.f32 0.0, %v3123
  %v3125 = vpop.f32.mrb[0].mxu0
  %v3126 = vpop.f32.mrb[0].mxu0
  %v3127 = vadd.f32 0.0, %v3126
  %v3128 = vpop.f32.mrb[0].mxu0
  %3129 = vmatprep.mubr.bf16.mxu0 0
  %3130 = vmatmul.mubr.bf16.gmra.mrb[0].mxu0 %v3004
  %v3131 = vpop.f32.mrb[0].mxu0
  %v3132 = vadd.f32 0.0, %v3131
  %v3133 = vpop.f32.mrb[0].mxu0
  %v3134 = vpop.f32.mrb[0].mxu0
  %v3135 = vadd.f32 0.0, %v3134
  %v3136 = vpop.f32.mrb[0].mxu0
  %3137 = vmatprep.mubr.bf16.mxu0 0
  %3138 = vmatmul.mubr.bf16.gmra.mrb[0].mxu0 %v3006
  %v3139 = vpop.f32.mrb[0].mxu0
  %v3140 = vadd.f32 0.0, %v3139
  %v3141 = vpop.f32.mrb[0].mxu0
  %v3142 = vpop.f32.mrb[0].mxu0
  %v3143 = vadd.f32 0.0, %v3142
  %v3144 = vpop.f32.mrb[0].mxu0
  %3145 = vmatprep.mubr.bf16.mxu0 0
  %3146 = vmatmul.mubr.bf16.gmra.mrb[0].mxu0 %v3008
  %v3147 = vpop.f32.mrb[0].mxu0
  %v3148 = vadd.f32 0.0, %v3147
  %v3149 = vpop.f32.mrb[0].mxu0
  %v3150 = vpop.f32.mrb[0].mxu0
  %v3151 = vadd.f32 0.0, %v3150
  %v3152 = vpop.f32.mrb[0].mxu0
  %3153 = vmatprep.mubr.bf16.mxu0 0
  %3154 = vmatmul.mubr.bf16.gmra.mrb[0].mxu0 %v3010
  %v3155 = vpop.f32.mrb[0].mxu0
  %v3156 = vadd.f32 0.0, %v3155
  %v3157 = vpop.f32.mrb[0].mxu0
  %v3158 = vpop.f32.mrb[0].mxu0
  %v3159 = vadd.f32 0.0, %v3158
  %v3160 = vpop.f32.mrb[0].mxu0
  %3161 = vmatprep.mubr.bf16.mxu0 0
  %3162 = vmatmul.mubr.bf16.gmra.mrb[0].mxu0 %v3012
  %v3163 = vpop.f32.mrb[0].mxu0
  %v3164 = vadd.f32 0.0, %v3163
  %v3165 = vpop.f32.mrb[0].mxu0
  %v3166 = vpop.f32.mrb[0].mxu0
  %v3167 = vadd.f32 0.0, %v3166
  %v3168 = vpop.f32.mrb[0].mxu0
  %3169 = vmatprep.mubr.bf16.mxu0 0
  %3170 = vmatmul.mubr.bf16.gmra.mrb[0].mxu0 %v3014
  %v3171 = vpop.f32.mrb[0].mxu0
  %v3172 = vadd.f32 0.0, %v3171
  %v3173 = vpop.f32.mrb[0].mxu0
  %v3174 = vpop.f32.mrb[0].mxu0
  %v3175 = vadd.f32 0.0, %v3174
  %v3176 = vpop.f32.mrb[0].mxu0
  %3177 = vdwg.mxu0
  %v3178 = vadd.f32 %v2599, %v3116
  %v3179 = vadd.f32 %v2602, %v3119
  %v3180 = vadd.f32 %v2607, %v3124
  %v3181 = vadd.f32 %v2610, %v3127
  %v3182 = vadd.f32 %v2615, %v3132
  %v3183 = vadd.f32 %v2618, %v3135
  %v3184 = vadd.f32 %v2623, %v3140
  %v3185 = vadd.f32 %v2626, %v3143
  %v3186 = vadd.f32 %v2631, %v3148
  %v3187 = vadd.f32 %v2634, %v3151
  %v3188 = vadd.f32 %v2639, %v3156
  %v3189 = vadd.f32 %v2642, %v3159
  %v3190 = vadd.f32 %v2647, %v3164
  %v3191 = vadd.f32 %v2650, %v3167
  %v3192 = vadd.f32 %v2655, %v3172
  %v3193 = vadd.f32 %v2658, %v3175
  %3194 = vmatprep.subr.bf16.mxu0 0
  %3195 = vmatpush1.bf16.msra.mxu0 %v3065
  %3196 = vmatprep.subr.bf16.mxu0 0
  %3197 = vmatpush1.bf16.msra.mxu0 %v3066
  %3198 = vmatprep.subr.bf16.mxu0 0
  %3199 = vmatpush1.bf16.msra.mxu0 %v3067
  %3200 = vmatprep.subr.bf16.mxu0 0
  %3201 = vmatpush1.bf16.msra.mxu0 %v3068
  %3202 = vmatprep.subr.bf16.mxu0 0
  %3203 = vmatpush1.bf16.msra.mxu0 %v3069
  %3204 = vmatprep.subr.bf16.mxu0 0
  %3205 = vmatpush1.bf16.msra.mxu0 %v3070
  %3206 = vmatprep.subr.bf16.mxu0 0
  %3207 = vmatpush1.bf16.msra.mxu0 %v3071
  %3208 = vmatprep.subr.bf16.mxu0 0
  %3209 = vmatpush1.bf16.msra.mxu0 %v3072
  %3210 = vmatprep.subr.bf16.mxu0 0
  %3211 = vmatpush1.bf16.msra.mxu0 0
  %3212 = vmatprep.subr.bf16.mxu0 0
  %3213 = vmatpush1.bf16.msra.mxu0 0
  %3214 = vmatprep.subr.bf16.mxu0 0
  %3215 = vmatpush1.bf16.msra.mxu0 0
  %3216 = vmatprep.subr.bf16.mxu0 0
  %3217 = vmatpush1.bf16.msra.mxu0 0
  %3218 = vmatprep.subr.bf16.mxu0 0
  %3219 = vmatpush1.bf16.msra.mxu0 0
  %3220 = vmatprep.subr.bf16.mxu0 0
  %3221 = vmatpush1.bf16.msra.mxu0 0
  %3222 = vmatprep.subr.bf16.mxu0 0
  %3223 = vmatpush1.bf16.msra.mxu0 0
  %3224 = vmatprep.subr.bf16.mxu0 0
  %3225 = vmatpush1.bf16.msra.mxu0 0
  %3226 = vmatprep.mubr.bf16.mxu0 0
  %3227 = vmatmul.mubr.bf16.gmra.mrb[0].mxu0 %v3001
  %v3228 = vpop.f32.mrb[0].mxu0
  %v3229 = vadd.f32 0.0, %v3228
  %v3230 = vpop.f32.mrb[0].mxu0
  %v3231 = vpop.f32.mrb[0].mxu0
  %v3232 = vadd.f32 0.0, %v3231
  %v3233 = vpop.f32.mrb[0].mxu0
  %3234 = vmatprep.mubr.bf16.mxu0 0
  %3235 = vmatmul.mubr.bf16.gmra.mrb[0].mxu0 %v3003
  %v3236 = vpop.f32.mrb[0].mxu0
  %v3237 = vadd.f32 0.0, %v3236
  %v3238 = vpop.f32.mrb[0].mxu0
  %v3239 = vpop.f32.mrb[0].mxu0
  %v3240 = vadd.f32 0.0, %v3239
  %v3241 = vpop.f32.mrb[0].mxu0
  %3242 = vmatprep.mubr.bf16.mxu0 0
  %3243 = vmatmul.mubr.bf16.gmra.mrb[0].mxu0 %v3005
  %v3244 = vpop.f32.mrb[0].mxu0
  %v3245 = vadd.f32 0.0, %v3244
  %v3246 = vpop.f32.mrb[0].mxu0
  %v3247 = vpop.f32.mrb[0].mxu0
  %v3248 = vadd.f32 0.0, %v3247
  %v3249 = vpop.f32.mrb[0].mxu0
  %3250 = vmatprep.mubr.bf16.mxu0 0
  %3251 = vmatmul.mubr.bf16.gmra.mrb[0].mxu0 %v3007
  %v3252 = vpop.f32.mrb[0].mxu0
  %v3253 = vadd.f32 0.0, %v3252
  %v3254 = vpop.f32.mrb[0].mxu0
  %v3255 = vpop.f32.mrb[0].mxu0
  %v3256 = vadd.f32 0.0, %v3255
  %v3257 = vpop.f32.mrb[0].mxu0
  %3258 = vmatprep.mubr.bf16.mxu0 0
  %3259 = vmatmul.mubr.bf16.gmra.mrb[0].mxu0 %v3009
  %v3260 = vpop.f32.mrb[0].mxu0
  %v3261 = vadd.f32 0.0, %v3260
  %v3262 = vpop.f32.mrb[0].mxu0
  %v3263 = vpop.f32.mrb[0].mxu0
  %v3264 = vadd.f32 0.0, %v3263
  %v3265 = vpop.f32.mrb[0].mxu0
  %3266 = vmatprep.mubr.bf16.mxu0 0
  %3267 = vmatmul.mubr.bf16.gmra.mrb[0].mxu0 %v3011
  %v3268 = vpop.f32.mrb[0].mxu0
  %v3269 = vadd.f32 0.0, %v3268
  %v3270 = vpop.f32.mrb[0].mxu0
  %v3271 = vpop.f32.mrb[0].mxu0
  %v3272 = vadd.f32 0.0, %v3271
  %v3273 = vpop.f32.mrb[0].mxu0
  %3274 = vmatprep.mubr.bf16.mxu0 0
  %3275 = vmatmul.mubr.bf16.gmra.mrb[0].mxu0 %v3013
  %v3276 = vpop.f32.mrb[0].mxu0
  %v3277 = vadd.f32 0.0, %v3276
  %v3278 = vpop.f32.mrb[0].mxu0
  %v3279 = vpop.f32.mrb[0].mxu0
  %v3280 = vadd.f32 0.0, %v3279
  %v3281 = vpop.f32.mrb[0].mxu0
  %3282 = vmatprep.mubr.bf16.mxu0 0
  %3283 = vmatmul.mubr.bf16.gmra.mrb[0].mxu0 %v3015
  %v3284 = vpop.f32.mrb[0].mxu0
  %v3285 = vadd.f32 0.0, %v3284
  %v3286 = vpop.f32.mrb[0].mxu0
  %v3287 = vpop.f32.mrb[0].mxu0
  %v3288 = vadd.f32 0.0, %v3287
  %v3289 = vpop.f32.mrb[0].mxu0
  %3290 = vdwg.mxu0
  %v3291 = vadd.f32 %v2793, %v3229
  %v3292 = vadd.f32 %v2796, %v3232
  %v3293 = vadd.f32 %v2801, %v3237
  %v3294 = vadd.f32 %v2804, %v3240
  %v3295 = vadd.f32 %v2809, %v3245
  %v3296 = vadd.f32 %v2812, %v3248
  %v3297 = vadd.f32 %v2817, %v3253
  %v3298 = vadd.f32 %v2820, %v3256
  %v3299 = vadd.f32 %v2825, %v3261
  %v3300 = vadd.f32 %v2828, %v3264
  %v3301 = vadd.f32 %v2833, %v3269
  %v3302 = vadd.f32 %v2836, %v3272
  %v3303 = vadd.f32 %v2841, %v3277
  %v3304 = vadd.f32 %v2844, %v3280
  %v3305 = vadd.f32 %v2849, %v3285
  %v3306 = vadd.f32 %v2852, %v3288
  %v3307 = vld [vmem:[%s6] sm:$0x1]
  %v3309 = vlaneseq
  %v3310 = vshrl.u32 %v3309, 7
  %v3311 = vsub.s32 0, %v3310
  %v3312 = vrot.slane %v3307, %v3311
  %v3314 = vadd.f32 %v3178, %v3312
  %v3315 = vadd.f32 %v3179, %v3312
  %v3316 = vadd.f32 %v3180, %v3312
  %v3317 = vadd.f32 %v3181, %v3312
  %v3318 = vadd.f32 %v3182, %v3312
  %v3319 = vadd.f32 %v3183, %v3312
  %v3320 = vadd.f32 %v3184, %v3312
  %v3321 = vadd.f32 %v3185, %v3312
  %v3322 = vadd.f32 %v3186, %v3312
  %v3323 = vadd.f32 %v3187, %v3312
  %v3324 = vadd.f32 %v3188, %v3312
  %v3325 = vadd.f32 %v3189, %v3312
  %v3326 = vadd.f32 %v3190, %v3312
  %v3327 = vadd.f32 %v3191, %v3312
  %v3328 = vadd.f32 %v3192, %v3312
  %v3329 = vadd.f32 %v3193, %v3312
  %3330 = vst [vmem:[%s7] sm:$0xff] %v3314
  %3331 = vst [vmem:[%s7 + $0x8] sm:$0xff] %v3315
  %3332 = vst [vmem:[%s7 + $0x10] sm:$0xff] %v3316
  %3333 = vst [vmem:[%s7 + $0x18] sm:$0xff] %v3317
  %3334 = vst [vmem:[%s7 + $0x20] sm:$0xff] %v3318
  %3335 = vst [vmem:[%s7 + $0x28] sm:$0xff] %v3319
  %3336 = vst [vmem:[%s7 + $0x30] sm:$0xff] %v3320
  %3337 = vst [vmem:[%s7 + $0x38] sm:$0xff] %v3321
  %3338 = vst [vmem:[%s7 + $0x40] sm:$0xff] %v3322
  %3339 = vst [vmem:[%s7 + $0x48] sm:$0xff] %v3323
  %3340 = vst [vmem:[%s7 + $0x50] sm:$0xff] %v3324
  %3341 = vst [vmem:[%s7 + $0x58] sm:$0xff] %v3325
  %3342 = vst [vmem:[%s7 + $0x60] sm:$0xff] %v3326
  %3343 = vst [vmem:[%s7 + $0x68] sm:$0xff] %v3327
  %3344 = vst [vmem:[%s7 + $0x70] sm:$0xff] %v3328
  %3345 = vst [vmem:[%s7 + $0x78] sm:$0xff] %v3329
  %v3346 = vld [vmem:[%s6] sm:$0x1]
  %v3348 = vlaneseq
  %v3349 = vshrl.u32 %v3348, 7
  %v3350 = vsub.s32 0, %v3349
  %v3351 = vrot.slane %v3346, %v3350
  %v3353 = vadd.f32 %v3291, %v3351
  %v3354 = vadd.f32 %v3292, %v3351
  %v3355 = vadd.f32 %v3293, %v3351
  %v3356 = vadd.f32 %v3294, %v3351
  %v3357 = vadd.f32 %v3295, %v3351
  %v3358 = vadd.f32 %v3296, %v3351
  %v3359 = vadd.f32 %v3297, %v3351
  %v3360 = vadd.f32 %v3298, %v3351
  %v3361 = vadd.f32 %v3299, %v3351
  %v3362 = vadd.f32 %v3300, %v3351
  %v3363 = vadd.f32 %v3301, %v3351
  %v3364 = vadd.f32 %v3302, %v3351
  %v3365 = vadd.f32 %v3303, %v3351
  %v3366 = vadd.f32 %v3304, %v3351
  %v3367 = vadd.f32 %v3305, %v3351
  %v3368 = vadd.f32 %v3306, %v3351
  %s3369 = scalar_lea.vmem %s7, 128
  %3370 = vst [vmem:[%s3369] sm:$0xff] %v3353
  %3371 = vst [vmem:[%s3369 + $0x8] sm:$0xff] %v3354
  %3372 = vst [vmem:[%s3369 + $0x10] sm:$0xff] %v3355
  %3373 = vst [vmem:[%s3369 + $0x18] sm:$0xff] %v3356
  %3374 = vst [vmem:[%s3369 + $0x20] sm:$0xff] %v3357
  %3375 = vst [vmem:[%s3369 + $0x28] sm:$0xff] %v3358
  %3376 = vst [vmem:[%s3369 + $0x30] sm:$0xff] %v3359
  %3377 = vst [vmem:[%s3369 + $0x38] sm:$0xff] %v3360
  %3378 = vst [vmem:[%s3369 + $0x40] sm:$0xff] %v3361
  %3379 = vst [vmem:[%s3369 + $0x48] sm:$0xff] %v3362
  %3380 = vst [vmem:[%s3369 + $0x50] sm:$0xff] %v3363
  %3381 = vst [vmem:[%s3369 + $0x58] sm:$0xff] %v3364
  %3382 = vst [vmem:[%s3369 + $0x60] sm:$0xff] %v3365
  %3383 = vst [vmem:[%s3369 + $0x68] sm:$0xff] %v3366
  %3384 = vst [vmem:[%s3369 + $0x70] sm:$0xff] %v3367
  %3385 = vst [vmem:[%s3369 + $0x78] sm:$0xff] %v3368
  // Predicated region
  $region30: #{_lambda_.1} parent=0 // pred_check
    _
  $region31: #{_lambda_.1} parent=0 // pred_check_branch
    %3387 = sbr.rel (0) target = $region33
  $region32: #{_lambda_.1} parent=0 // pred_region
    _
  $region33: #{_lambda_.1} parent=0 // pred_fallthru
    _
  // Predicated region
  $region34: #{_lambda_.1} parent=0 // pred_check
    _
  $region35: #{_lambda_.1} parent=0 // pred_check_branch
    %3389 = sbr.rel (0) target = $region37
  $region36: #{_lambda_.1} parent=0 // pred_region
    _
  $region37: #{_lambda_.1} parent=0 // pred_fallthru
    _

</llo_original>
